<compile_context>
chip_gen: v7x
topology: tpu7x:2x2x1
jax: 0.10.0
libtpu: 0.0.40
codegen_flags: <defaults>
</compile_context>

<pallas_src>
import functools

import numpy as np
import jax
import jax.numpy as jnp
from jax.experimental import pallas as pl
from jax.experimental.pallas import tpu as pltpu


_DOWN_LENS = (10, 8, 6)          # lengths produced by down1 / down2 / down3 (module spec)


# ---------------------------------------------------------------------------
# Compile-time (python) descriptions of pooling / upsampling index arithmetic.
# ---------------------------------------------------------------------------
def _pool_segments(in_len, out_len):
    """AdaptiveMaxPool1d segments: [floor(i*in/out), ceil((i+1)*in/out)) per output i."""
    return tuple(((i * in_len) // out_len, -((-(i + 1) * in_len) // out_len))
                 for i in range(out_len))


def _interp_spec(in_len, out_len):
    """1-D linear interpolation (align_corners=True): (lo, hi, frac) per output row."""
    spec = []
    for i in range(out_len):
        if in_len == 1:
            spec.append((0, 0, 0.0))
            continue
        pos = i * (in_len - 1) / max(out_len - 1, 1)
        lo = min(int(np.floor(pos)), in_len - 1)
        hi = min(lo + 1, in_len - 1)
        spec.append((lo, hi, float(pos - lo)))
    return tuple(spec)


# ---------------------------------------------------------------------------
# The fused per-sample UNet kernel.  One grid step == one batch sample.
# Activations are (L, C) f32 slabs; weights / biases live in two packed slabs.
# ---------------------------------------------------------------------------
def _unet_kernel(x_ref, w_ref, b_ref, o_ref, *, layout, pool_segs, interp_specs):

    def getw(name):
        off, kdim, cout, _ = layout[name]
        return w_ref[off:off + kdim, :cout]

    def getb(name):
        _, _, cout, brow = layout[name]
        return b_ref[brow:brow + 1, :cout]

    def shift_prev(x):                       # x[l-1], zero at l == 0
        z = jnp.zeros((1, x.shape[1]), jnp.float32)
        return jnp.concatenate([z, x[:-1, :]], axis=0)

    def shift_next(x):                       # x[l+1], zero at l == L-1
        z = jnp.zeros((1, x.shape[1]), jnp.float32)
        return jnp.concatenate([x[1:, :], z], axis=0)

    def conv3(x, name, relu=True):
        # Conv1d(k=3, pad=1) + folded-BN bias (+ ReLU) as ONE im2col matmul: the
        # 'same'-padding halo is two sublane shifts with a zero boundary row,
        # the three taps become a single (L, 3*Cin) @ (3*Cin, Cout) MXU dot.
        xcat = jnp.concatenate([shift_prev(x), x, shift_next(x)], axis=-1)
        y = jnp.dot(xcat, getw(name), preferred_element_type=jnp.float32) + getb(name)
        return jnp.maximum(y, 0.0) if relu else y

    def double_conv(x, name_a, name_b):
        return conv3(conv3(x, name_a), name_b)

    def pool(x, segs):
        # Adaptive max pool along L: per-output-row static slices + jnp.maximum (VPU).
        rows = []
        for (s, e) in segs:
            r = x[s:s + 1, :]
            for j in range(s + 1, e):
                r = jnp.maximum(r, x[j:j + 1, :])
            rows.append(r)
        return jnp.concatenate(rows, axis=0)

    def upsample(x, spec):
        # Linear (align_corners=True) upsample along L: static row gathers +
        # constant-coefficient FMA — no interpolation matmul.
        rows = []
        for (lo, hi, frac) in spec:
            r = x[lo:lo + 1, :]
            if frac > 0.0:
                r = r * (1.0 - frac) + x[hi:hi + 1, :] * frac
            rows.append(r)
        return jnp.concatenate(rows, axis=0)

    x_in = x_ref[...]                                                  # (L0, Cin)

    # Encoder
    x1 = double_conv(x_in, "inc1", "inc2")                             # (L0, 8)
    x2 = double_conv(pool(x1, pool_segs[0]), "d1a", "d1b")             # (10, 16)
    x3 = double_conv(pool(x2, pool_segs[1]), "d2a", "d2b")             # (8, 32)
    x4 = double_conv(pool(x3, pool_segs[2]), "d3a", "d3b")             # (6, 64)

    # Decoder: channel concat [skip, upsampled] feeds the im2col conv directly.
    u = double_conv(jnp.concatenate([x3, upsample(x4, interp_specs[0])], axis=-1),
                    "u2a", "u2b")                                      # (8, 16)
    u = double_conv(jnp.concatenate([x2, upsample(u, interp_specs[1])], axis=-1),
                    "u3a", "u3b")                                      # (10, 8)
    u = double_conv(jnp.concatenate([x1, upsample(u, interp_specs[2])], axis=-1),
                    "u4a", "u4b")                                      # (L0, 8)

    # OutConv: Conv1d(k=1)
    logits = jnp.dot(u, getw("outc"), preferred_element_type=jnp.float32) + getb("outc")
    o_ref[...] = logits.astype(o_ref.dtype)                            # (L0, n_classes)


# ---------------------------------------------------------------------------
# Parameter packing: one weight slab + one bias slab + static layout metadata.
# ---------------------------------------------------------------------------
def _ordered_convs(params):
    return (("inc1", params["inc"][0]), ("inc2", params["inc"][1]),
            ("d1a", params["down1"][0]), ("d1b", params["down1"][1]),
            ("d2a", params["down2"][0]), ("d2b", params["down2"][1]),
            ("d3a", params["down3"][0]), ("d3b", params["down3"][1]),
            ("u2a", params["up2"][0]), ("u2b", params["up2"][1]),
            ("u3a", params["up3"][0]), ("u3b", params["up3"][1]),
            ("u4a", params["up4"][0]), ("u4b", params["up4"][1]),
            ("outc", params["outc"]))


def _pack_params(params):
    """Pack all (im2col-reshaped, BN-folded) conv weights into one (R, W) slab with
    8-aligned row offsets, and all bias rows into one (rows, W) slab.
    Returns (w_slab, b_slab, layout) with layout: name -> (row_off, kdim, cout, bias_row)."""
    order = _ordered_convs(params)
    width = max(p["w"].shape[-1] for _, p in order)
    layout, w_parts, b_rows, row = {}, [], [], 0
    for brow, (name, p) in enumerate(order):
        k, cin, cout = p["w"].shape
        kdim = k * cin
        w2 = p["w"].reshape(kdim, cout)
        w2 = jnp.pad(w2, ((0, (-kdim) % 8), (0, width - cout)))
        layout[name] = (row, kdim, cout, brow)
        row += w2.shape[0]
        w_parts.append(w2)
        b_rows.append(jnp.pad(p["b"].reshape(1, cout), ((0, 0), (0, width - cout))))
    pad_rows = (-len(b_rows)) % 8
    if pad_rows:
        b_rows.append(jnp.zeros((pad_rows, width), jnp.float32))
    return jnp.concatenate(w_parts, axis=0), jnp.concatenate(b_rows, axis=0), layout


# ---------------------------------------------------------------------------
# Forward wrapper: single pallas_call, grid over batch (parallel -> v7x 2 TCs).
# ---------------------------------------------------------------------------
def unet_forward(x_ncl, params):
    """x_ncl: (B, n_channels, L) PyTorch NCL layout -> (B, n_classes, L) logits."""
    B, C0, L0 = x_ncl.shape
    lens = (L0,) + _DOWN_LENS
    n_classes = params["outc"]["w"].shape[-1]

    pool_segs = tuple(_pool_segments(a, b) for a, b in zip(lens[:-1], lens[1:]))
    interp_specs = (_interp_spec(lens[3], lens[2]),      # 6  -> 8   (up2)
                    _interp_spec(lens[2], lens[1]),      # 8  -> 10  (up3)
                    _interp_spec(lens[1], lens[0]))      # 10 -> L0  (up4)

    w_slab, b_slab, layout = _pack_params(params)
    x_blc = jnp.transpose(x_ncl, (0, 2, 1))              # boundary transpose only

    kernel = functools.partial(_unet_kernel, layout=layout,
                               pool_segs=pool_segs, interp_specs=interp_specs)

    out = pl.pallas_call(
        kernel,
        grid=(B,),
        out_shape=jax.ShapeDtypeStruct((B, L0, n_classes), jnp.float32),
        in_specs=[
            pl.BlockSpec((None, L0, C0), lambda b: (b, 0, 0)),   # one sample per step
            pl.BlockSpec(w_slab.shape, lambda b: (0, 0)),        # weights: VMEM-resident
            pl.BlockSpec(b_slab.shape, lambda b: (0, 0)),        # biases:  VMEM-resident
        ],
        out_specs=pl.BlockSpec((None, L0, n_classes), lambda b: (b, 0, 0)),
        compiler_params=pltpu.CompilerParams(dimension_semantics=("parallel",)),
    )(x_blc, w_slab, b_slab)

    return jnp.transpose(out, (0, 2, 1))


# ---------------------------------------------------------------------------
# Deterministic parameter construction (eval-mode BatchNorm folded into w / b)
# ---------------------------------------------------------------------------
def _conv_params(key, cin, cout, k, with_bn=True):
    kw, kb, kg, kbe, km, kv = jax.random.split(key, 6)
    w = jax.random.normal(kw, (k, cin, cout), jnp.float32) / jnp.sqrt(float(cin * k))
    b = 0.05 * jax.random.normal(kb, (cout,), jnp.float32)
    if with_bn:
        gamma = 1.0 + 0.1 * jax.random.normal(kg, (cout,), jnp.float32)
        beta = 0.05 * jax.random.normal(kbe, (cout,), jnp.float32)
        mean = 0.05 * jax.random.normal(km, (cout,), jnp.float32)
        var = 1.0 + 0.1 * jax.random.uniform(kv, (cout,), jnp.float32)
        scale = gamma / jnp.sqrt(var + 1e-5)
        shift = beta - mean * scale + b * scale
    else:
        scale = jnp.ones((cout,), jnp.float32)
        shift = b
    # Fold the BN scale straight into the conv taps; only the bias row remains.
    return {"w": w * scale[None, None, :], "b": shift.reshape(1, cout)}


def _double_conv_params(key, cin, cout):
    k1, k2 = jax.random.split(key)
    return [_conv_params(k1, cin, cout, 3), _conv_params(k2, cout, cout, 3)]


def make_unet_params(key, n_channels, n_classes):
    keys = jax.random.split(key, 8)
    return {
        "inc":   _double_conv_params(keys[0], n_channels, 8),
        "down1": _double_conv_params(keys[1], 8, 16),
        "down2": _double_conv_params(keys[2], 16, 32),
        "down3": _double_conv_params(keys[3], 32, 64),
        # Up concatenates [skip, upsampled]: 32+64, 16+16, 8+8 input channels.
        "up2":   _double_conv_params(keys[4], 96, 16),
        "up3":   _double_conv_params(keys[5], 32, 8),
        "up4":   _double_conv_params(keys[6], 16, 8),
        "outc":  _conv_params(keys[7], 8, n_classes, 1, with_bn=False),
    }


# ---------------------------------------------------------------------------
if __name__ == "__main__":
    key = jax.random.PRNGKey(0)
    k_params, k_x = jax.random.split(key)

    n_channels, n_classes = 4, 3
    B, L = 2, 16
    params = make_unet_params(k_params, n_channels, n_classes)
    x = jax.random.normal(k_x, (B, n_channels, L), jnp.float32)

    logits = jax.jit(lambda inp: unet_forward(inp, params))(x)
    jax.block_until_ready(logits)

    assert logits.shape == (B, n_classes, L), logits.shape
    assert bool(jnp.all(jnp.isfinite(logits)))
    print("KERNEL_OK")
</pallas_src>

<mosaic_0001>
module attributes {stable_mosaic.version = 11 : i64} {
  func.func @_unet_kernel(%arg0: i32, %arg1: memref<1x16x4xf32, #tpu.memory_space<vmem>>, %arg2: memref<1080x64xf32, #tpu.memory_space<vmem>>, %arg3: memref<16x64xf32, #tpu.memory_space<vmem>>, %arg4: memref<1x16x3xf32, #tpu.memory_space<vmem>>) attributes {dimension_semantics = [#tpu.dimension_semantics<parallel>], iteration_bounds = array<i64: 2>, scalar_prefetch = 0 : i64, scratch_operands = 0 : i64, tpu.core_type = #tpu.core_type<tc>, window_params = [{transform_indices = @transform_0, window_bounds = array<i64: 1, 16, 4>}, {pipeline_mode = #tpu.pipeline_mode<synchronous>, transform_indices = @transform_1, window_bounds = array<i64: 1080, 64>}, {pipeline_mode = #tpu.pipeline_mode<synchronous>, transform_indices = @transform_2, window_bounds = array<i64: 16, 64>}, {transform_indices = @transform_3, window_bounds = array<i64: 1, 16, 3>}]} {
    %c0 = arith.constant 0 : index
    %c0_0 = arith.constant 0 : index
    %c0_1 = arith.constant 0 : index
    %0 = vector.load %arg1[%c0, %c0_0, %c0_1] : memref<1x16x4xf32, #tpu.memory_space<vmem>>, vector<1x16x4xf32>
    %1 = vector.shape_cast %0 : vector<1x16x4xf32> to vector<16x4xf32>
    %cst = arith.constant 0.000000e+00 : f32
    %2 = vector.broadcast %cst : f32 to vector<1x4xf32>
    %3 = vector.extract_strided_slice %1 {offsets = [0, 0], sizes = [15, 4], strides = [1, 1]} : vector<16x4xf32> to vector<15x4xf32>
    %4 = tpu.concatenate %2, %3 in 0 : vector<1x4xf32>, vector<15x4xf32> -> vector<16x4xf32>
    %cst_2 = arith.constant 0.000000e+00 : f32
    %5 = vector.broadcast %cst_2 : f32 to vector<1x4xf32>
    %6 = vector.extract_strided_slice %1 {offsets = [1, 0], sizes = [15, 4], strides = [1, 1]} : vector<16x4xf32> to vector<15x4xf32>
    %7 = tpu.concatenate %6, %5 in 0 : vector<15x4xf32>, vector<1x4xf32> -> vector<16x4xf32>
    %8 = tpu.concatenate %4, %1, %7 in 1 : vector<16x4xf32>, vector<16x4xf32>, vector<16x4xf32> -> vector<16x12xf32>
    %c0_3 = arith.constant 0 : index
    %c0_4 = arith.constant 0 : index
    %9 = vector.load %arg2[%c0_3, %c0_4] : memref<1080x64xf32, #tpu.memory_space<vmem>>, vector<12x8xf32>
    %cst_5 = arith.constant dense<0.000000e+00> : vector<16x8xf32>
    %10 = tpu.matmul %8, %9, %cst_5 {dimension_numbers = #tpu.dot_dimension_numbers<[1], [0], [0], [1], [0, 0, 1, 1], [], []>} : vector<16x12xf32>, vector<12x8xf32>, vector<16x8xf32> -> vector<16x8xf32>
    %c0_6 = arith.constant 0 : index
    %c0_7 = arith.constant 0 : index
    %11 = vector.load %arg3[%c0_6, %c0_7] : memref<16x64xf32, #tpu.memory_space<vmem>>, vector<1x8xf32>
    %12 = vector.broadcast %11 : vector<1x8xf32> to vector<16x8xf32>
    %13 = arith.addf %10, %12 : vector<16x8xf32>
    %cst_8 = arith.constant 0.000000e+00 : f32
    %14 = vector.broadcast %cst_8 : f32 to vector<16x8xf32>
    %15 = arith.maximumf %13, %14 : vector<16x8xf32>
    %cst_9 = arith.constant 0.000000e+00 : f32
    %16 = vector.broadcast %cst_9 : f32 to vector<1x8xf32>
    %17 = vector.extract_strided_slice %15 {offsets = [0, 0], sizes = [15, 8], strides = [1, 1]} : vector<16x8xf32> to vector<15x8xf32>
    %18 = tpu.concatenate %16, %17 in 0 : vector<1x8xf32>, vector<15x8xf32> -> vector<16x8xf32>
    %cst_10 = arith.constant 0.000000e+00 : f32
    %19 = vector.broadcast %cst_10 : f32 to vector<1x8xf32>
    %20 = vector.extract_strided_slice %15 {offsets = [1, 0], sizes = [15, 8], strides = [1, 1]} : vector<16x8xf32> to vector<15x8xf32>
    %21 = tpu.concatenate %20, %19 in 0 : vector<15x8xf32>, vector<1x8xf32> -> vector<16x8xf32>
    %22 = tpu.concatenate %18, %15, %21 in 1 : vector<16x8xf32>, vector<16x8xf32>, vector<16x8xf32> -> vector<16x24xf32>
    %c16 = arith.constant 16 : index
    %c0_11 = arith.constant 0 : index
    %23 = vector.load %arg2[%c16, %c0_11] : memref<1080x64xf32, #tpu.memory_space<vmem>>, vector<24x8xf32>
    %cst_12 = arith.constant dense<0.000000e+00> : vector<16x8xf32>
    %24 = tpu.matmul %22, %23, %cst_12 {dimension_numbers = #tpu.dot_dimension_numbers<[1], [0], [0], [1], [0, 0, 1, 1], [], []>} : vector<16x24xf32>, vector<24x8xf32>, vector<16x8xf32> -> vector<16x8xf32>
    %c1 = arith.constant 1 : index
    %c0_13 = arith.constant 0 : index
    %25 = vector.load %arg3[%c1, %c0_13] : memref<16x64xf32, #tpu.memory_space<vmem>>, vector<1x8xf32>
    %26 = vector.broadcast %25 : vector<1x8xf32> to vector<16x8xf32>
    %27 = arith.addf %24, %26 : vector<16x8xf32>
    %cst_14 = arith.constant 0.000000e+00 : f32
    %28 = vector.broadcast %cst_14 : f32 to vector<16x8xf32>
    %29 = arith.maximumf %27, %28 : vector<16x8xf32>
    %30 = vector.extract_strided_slice %29 {offsets = [0, 0], sizes = [1, 8], strides = [1, 1]} : vector<16x8xf32> to vector<1x8xf32>
    %31 = vector.extract_strided_slice %29 {offsets = [1, 0], sizes = [1, 8], strides = [1, 1]} : vector<16x8xf32> to vector<1x8xf32>
    %32 = arith.maximumf %30, %31 : vector<1x8xf32>
    %33 = vector.extract_strided_slice %29 {offsets = [1, 0], sizes = [1, 8], strides = [1, 1]} : vector<16x8xf32> to vector<1x8xf32>
    %34 = vector.extract_strided_slice %29 {offsets = [2, 0], sizes = [1, 8], strides = [1, 1]} : vector<16x8xf32> to vector<1x8xf32>
    %35 = arith.maximumf %33, %34 : vector<1x8xf32>
    %36 = vector.extract_strided_slice %29 {offsets = [3, 0], sizes = [1, 8], strides = [1, 1]} : vector<16x8xf32> to vector<1x8xf32>
    %37 = arith.maximumf %35, %36 : vector<1x8xf32>
    %38 = vector.extract_strided_slice %29 {offsets = [3, 0], sizes = [1, 8], strides = [1, 1]} : vector<16x8xf32> to vector<1x8xf32>
    %39 = vector.extract_strided_slice %29 {offsets = [4, 0], sizes = [1, 8], strides = [1, 1]} : vector<16x8xf32> to vector<1x8xf32>
    %40 = arith.maximumf %38, %39 : vector<1x8xf32>
    %41 = vector.extract_strided_slice %29 {offsets = [4, 0], sizes = [1, 8], strides = [1, 1]} : vector<16x8xf32> to vector<1x8xf32>
    %42 = vector.extract_strided_slice %29 {offsets = [5, 0], sizes = [1, 8], strides = [1, 1]} : vector<16x8xf32> to vector<1x8xf32>
    %43 = arith.maximumf %41, %42 : vector<1x8xf32>
    %44 = vector.extract_strided_slice %29 {offsets = [6, 0], sizes = [1, 8], strides = [1, 1]} : vector<16x8xf32> to vector<1x8xf32>
    %45 = arith.maximumf %43, %44 : vector<1x8xf32>
    %46 = vector.extract_strided_slice %29 {offsets = [6, 0], sizes = [1, 8], strides = [1, 1]} : vector<16x8xf32> to vector<1x8xf32>
    %47 = vector.extract_strided_slice %29 {offsets = [7, 0], sizes = [1, 8], strides = [1, 1]} : vector<16x8xf32> to vector<1x8xf32>
    %48 = arith.maximumf %46, %47 : vector<1x8xf32>
    %49 = vector.extract_strided_slice %29 {offsets = [8, 0], sizes = [1, 8], strides = [1, 1]} : vector<16x8xf32> to vector<1x8xf32>
    %50 = vector.extract_strided_slice %29 {offsets = [9, 0], sizes = [1, 8], strides = [1, 1]} : vector<16x8xf32> to vector<1x8xf32>
    %51 = arith.maximumf %49, %50 : vector<1x8xf32>
    %52 = vector.extract_strided_slice %29 {offsets = [9, 0], sizes = [1, 8], strides = [1, 1]} : vector<16x8xf32> to vector<1x8xf32>
    %53 = vector.extract_strided_slice %29 {offsets = [10, 0], sizes = [1, 8], strides = [1, 1]} : vector<16x8xf32> to vector<1x8xf32>
    %54 = arith.maximumf %52, %53 : vector<1x8xf32>
    %55 = vector.extract_strided_slice %29 {offsets = [11, 0], sizes = [1, 8], strides = [1, 1]} : vector<16x8xf32> to vector<1x8xf32>
    %56 = arith.maximumf %54, %55 : vector<1x8xf32>
    %57 = vector.extract_strided_slice %29 {offsets = [11, 0], sizes = [1, 8], strides = [1, 1]} : vector<16x8xf32> to vector<1x8xf32>
    %58 = vector.extract_strided_slice %29 {offsets = [12, 0], sizes = [1, 8], strides = [1, 1]} : vector<16x8xf32> to vector<1x8xf32>
    %59 = arith.maximumf %57, %58 : vector<1x8xf32>
    %60 = vector.extract_strided_slice %29 {offsets = [12, 0], sizes = [1, 8], strides = [1, 1]} : vector<16x8xf32> to vector<1x8xf32>
    %61 = vector.extract_strided_slice %29 {offsets = [13, 0], sizes = [1, 8], strides = [1, 1]} : vector<16x8xf32> to vector<1x8xf32>
    %62 = arith.maximumf %60, %61 : vector<1x8xf32>
    %63 = vector.extract_strided_slice %29 {offsets = [14, 0], sizes = [1, 8], strides = [1, 1]} : vector<16x8xf32> to vector<1x8xf32>
    %64 = arith.maximumf %62, %63 : vector<1x8xf32>
    %65 = vector.extract_strided_slice %29 {offsets = [14, 0], sizes = [1, 8], strides = [1, 1]} : vector<16x8xf32> to vector<1x8xf32>
    %66 = vector.extract_strided_slice %29 {offsets = [15, 0], sizes = [1, 8], strides = [1, 1]} : vector<16x8xf32> to vector<1x8xf32>
    %67 = arith.maximumf %65, %66 : vector<1x8xf32>
    %68 = tpu.concatenate %32, %37, %40, %45, %48, %51, %56, %59, %64, %67 in 0 : vector<1x8xf32>, vector<1x8xf32>, vector<1x8xf32>, vector<1x8xf32>, vector<1x8xf32>, vector<1x8xf32>, vector<1x8xf32>, vector<1x8xf32>, vector<1x8xf32>, vector<1x8xf32> -> vector<10x8xf32>
    %cst_15 = arith.constant 0.000000e+00 : f32
    %69 = vector.broadcast %cst_15 : f32 to vector<1x8xf32>
    %70 = vector.extract_strided_slice %68 {offsets = [0, 0], sizes = [9, 8], strides = [1, 1]} : vector<10x8xf32> to vector<9x8xf32>
    %71 = tpu.concatenate %69, %70 in 0 : vector<1x8xf32>, vector<9x8xf32> -> vector<10x8xf32>
    %cst_16 = arith.constant 0.000000e+00 : f32
    %72 = vector.broadcast %cst_16 : f32 to vector<1x8xf32>
    %73 = vector.extract_strided_slice %68 {offsets = [1, 0], sizes = [9, 8], strides = [1, 1]} : vector<10x8xf32> to vector<9x8xf32>
    %74 = tpu.concatenate %73, %72 in 0 : vector<9x8xf32>, vector<1x8xf32> -> vector<10x8xf32>
    %75 = tpu.concatenate %71, %68, %74 in 1 : vector<10x8xf32>, vector<10x8xf32>, vector<10x8xf32> -> vector<10x24xf32>
    %c40 = arith.constant 40 : index
    %c0_17 = arith.constant 0 : index
    %76 = vector.load %arg2[%c40, %c0_17] : memref<1080x64xf32, #tpu.memory_space<vmem>>, vector<24x16xf32>
    %cst_18 = arith.constant dense<0.000000e+00> : vector<10x16xf32>
    %77 = tpu.matmul %75, %76, %cst_18 {dimension_numbers = #tpu.dot_dimension_numbers<[1], [0], [0], [1], [0, 0, 1, 1], [], []>} : vector<10x24xf32>, vector<24x16xf32>, vector<10x16xf32> -> vector<10x16xf32>
    %c2 = arith.constant 2 : index
    %c0_19 = arith.constant 0 : index
    %78 = vector.load %arg3[%c2, %c0_19] : memref<16x64xf32, #tpu.memory_space<vmem>>, vector<1x16xf32>
    %79 = vector.broadcast %78 : vector<1x16xf32> to vector<10x16xf32>
    %80 = arith.addf %77, %79 : vector<10x16xf32>
    %cst_20 = arith.constant 0.000000e+00 : f32
    %81 = vector.broadcast %cst_20 : f32 to vector<10x16xf32>
    %82 = arith.maximumf %80, %81 : vector<10x16xf32>
    %cst_21 = arith.constant 0.000000e+00 : f32
    %83 = vector.broadcast %cst_21 : f32 to vector<1x16xf32>
    %84 = vector.extract_strided_slice %82 {offsets = [0, 0], sizes = [9, 16], strides = [1, 1]} : vector<10x16xf32> to vector<9x16xf32>
    %85 = tpu.concatenate %83, %84 in 0 : vector<1x16xf32>, vector<9x16xf32> -> vector<10x16xf32>
    %cst_22 = arith.constant 0.000000e+00 : f32
    %86 = vector.broadcast %cst_22 : f32 to vector<1x16xf32>
    %87 = vector.extract_strided_slice %82 {offsets = [1, 0], sizes = [9, 16], strides = [1, 1]} : vector<10x16xf32> to vector<9x16xf32>
    %88 = tpu.concatenate %87, %86 in 0 : vector<9x16xf32>, vector<1x16xf32> -> vector<10x16xf32>
    %89 = tpu.concatenate %85, %82, %88 in 1 : vector<10x16xf32>, vector<10x16xf32>, vector<10x16xf32> -> vector<10x48xf32>
    %c64 = arith.constant 64 : index
    %c0_23 = arith.constant 0 : index
    %90 = vector.load %arg2[%c64, %c0_23] : memref<1080x64xf32, #tpu.memory_space<vmem>>, vector<48x16xf32>
    %cst_24 = arith.constant dense<0.000000e+00> : vector<10x16xf32>
    %91 = tpu.matmul %89, %90, %cst_24 {dimension_numbers = #tpu.dot_dimension_numbers<[1], [0], [0], [1], [0, 0, 1, 1], [], []>} : vector<10x48xf32>, vector<48x16xf32>, vector<10x16xf32> -> vector<10x16xf32>
    %c3 = arith.constant 3 : index
    %c0_25 = arith.constant 0 : index
    %92 = vector.load %arg3[%c3, %c0_25] : memref<16x64xf32, #tpu.memory_space<vmem>>, vector<1x16xf32>
    %93 = vector.broadcast %92 : vector<1x16xf32> to vector<10x16xf32>
    %94 = arith.addf %91, %93 : vector<10x16xf32>
    %cst_26 = arith.constant 0.000000e+00 : f32
    %95 = vector.broadcast %cst_26 : f32 to vector<10x16xf32>
    %96 = arith.maximumf %94, %95 : vector<10x16xf32>
    %97 = vector.extract_strided_slice %96 {offsets = [0, 0], sizes = [1, 16], strides = [1, 1]} : vector<10x16xf32> to vector<1x16xf32>
    %98 = vector.extract_strided_slice %96 {offsets = [1, 0], sizes = [1, 16], strides = [1, 1]} : vector<10x16xf32> to vector<1x16xf32>
    %99 = arith.maximumf %97, %98 : vector<1x16xf32>
    %100 = vector.extract_strided_slice %96 {offsets = [1, 0], sizes = [1, 16], strides = [1, 1]} : vector<10x16xf32> to vector<1x16xf32>
    %101 = vector.extract_strided_slice %96 {offsets = [2, 0], sizes = [1, 16], strides = [1, 1]} : vector<10x16xf32> to vector<1x16xf32>
    %102 = arith.maximumf %100, %101 : vector<1x16xf32>
    %103 = vector.extract_strided_slice %96 {offsets = [2, 0], sizes = [1, 16], strides = [1, 1]} : vector<10x16xf32> to vector<1x16xf32>
    %104 = vector.extract_strided_slice %96 {offsets = [3, 0], sizes = [1, 16], strides = [1, 1]} : vector<10x16xf32> to vector<1x16xf32>
    %105 = arith.maximumf %103, %104 : vector<1x16xf32>
    %106 = vector.extract_strided_slice %96 {offsets = [3, 0], sizes = [1, 16], strides = [1, 1]} : vector<10x16xf32> to vector<1x16xf32>
    %107 = vector.extract_strided_slice %96 {offsets = [4, 0], sizes = [1, 16], strides = [1, 1]} : vector<10x16xf32> to vector<1x16xf32>
    %108 = arith.maximumf %106, %107 : vector<1x16xf32>
    %109 = vector.extract_strided_slice %96 {offsets = [5, 0], sizes = [1, 16], strides = [1, 1]} : vector<10x16xf32> to vector<1x16xf32>
    %110 = vector.extract_strided_slice %96 {offsets = [6, 0], sizes = [1, 16], strides = [1, 1]} : vector<10x16xf32> to vector<1x16xf32>
    %111 = arith.maximumf %109, %110 : vector<1x16xf32>
    %112 = vector.extract_strided_slice %96 {offsets = [6, 0], sizes = [1, 16], strides = [1, 1]} : vector<10x16xf32> to vector<1x16xf32>
    %113 = vector.extract_strided_slice %96 {offsets = [7, 0], sizes = [1, 16], strides = [1, 1]} : vector<10x16xf32> to vector<1x16xf32>
    %114 = arith.maximumf %112, %113 : vector<1x16xf32>
    %115 = vector.extract_strided_slice %96 {offsets = [7, 0], sizes = [1, 16], strides = [1, 1]} : vector<10x16xf32> to vector<1x16xf32>
    %116 = vector.extract_strided_slice %96 {offsets = [8, 0], sizes = [1, 16], strides = [1, 1]} : vector<10x16xf32> to vector<1x16xf32>
    %117 = arith.maximumf %115, %116 : vector<1x16xf32>
    %118 = vector.extract_strided_slice %96 {offsets = [8, 0], sizes = [1, 16], strides = [1, 1]} : vector<10x16xf32> to vector<1x16xf32>
    %119 = vector.extract_strided_slice %96 {offsets = [9, 0], sizes = [1, 16], strides = [1, 1]} : vector<10x16xf32> to vector<1x16xf32>
    %120 = arith.maximumf %118, %119 : vector<1x16xf32>
    %121 = tpu.concatenate %99, %102, %105, %108, %111, %114, %117, %120 in 0 : vector<1x16xf32>, vector<1x16xf32>, vector<1x16xf32>, vector<1x16xf32>, vector<1x16xf32>, vector<1x16xf32>, vector<1x16xf32>, vector<1x16xf32> -> vector<8x16xf32>
    %cst_27 = arith.constant 0.000000e+00 : f32
    %122 = vector.broadcast %cst_27 : f32 to vector<1x16xf32>
    %123 = vector.extract_strided_slice %121 {offsets = [0, 0], sizes = [7, 16], strides = [1, 1]} : vector<8x16xf32> to vector<7x16xf32>
    %124 = tpu.concatenate %122, %123 in 0 : vector<1x16xf32>, vector<7x16xf32> -> vector<8x16xf32>
    %cst_28 = arith.constant 0.000000e+00 : f32
    %125 = vector.broadcast %cst_28 : f32 to vector<1x16xf32>
    %126 = vector.extract_strided_slice %121 {offsets = [1, 0], sizes = [7, 16], strides = [1, 1]} : vector<8x16xf32> to vector<7x16xf32>
    %127 = tpu.concatenate %126, %125 in 0 : vector<7x16xf32>, vector<1x16xf32> -> vector<8x16xf32>
    %128 = tpu.concatenate %124, %121, %127 in 1 : vector<8x16xf32>, vector<8x16xf32>, vector<8x16xf32> -> vector<8x48xf32>
    %c112 = arith.constant 112 : index
    %c0_29 = arith.constant 0 : index
    %129 = vector.load %arg2[%c112, %c0_29] : memref<1080x64xf32, #tpu.memory_space<vmem>>, vector<48x32xf32>
    %cst_30 = arith.constant dense<0.000000e+00> : vector<8x32xf32>
    %130 = tpu.matmul %128, %129, %cst_30 {dimension_numbers = #tpu.dot_dimension_numbers<[1], [0], [0], [1], [0, 0, 1, 1], [], []>} : vector<8x48xf32>, vector<48x32xf32>, vector<8x32xf32> -> vector<8x32xf32>
    %c4 = arith.constant 4 : index
    %c0_31 = arith.constant 0 : index
    %131 = vector.load %arg3[%c4, %c0_31] : memref<16x64xf32, #tpu.memory_space<vmem>>, vector<1x32xf32>
    %132 = vector.broadcast %131 : vector<1x32xf32> to vector<8x32xf32>
    %133 = arith.addf %130, %132 : vector<8x32xf32>
    %cst_32 = arith.constant 0.000000e+00 : f32
    %134 = vector.broadcast %cst_32 : f32 to vector<8x32xf32>
    %135 = arith.maximumf %133, %134 : vector<8x32xf32>
    %cst_33 = arith.constant 0.000000e+00 : f32
    %136 = vector.broadcast %cst_33 : f32 to vector<1x32xf32>
    %137 = vector.extract_strided_slice %135 {offsets = [0, 0], sizes = [7, 32], strides = [1, 1]} : vector<8x32xf32> to vector<7x32xf32>
    %138 = tpu.concatenate %136, %137 in 0 : vector<1x32xf32>, vector<7x32xf32> -> vector<8x32xf32>
    %cst_34 = arith.constant 0.000000e+00 : f32
    %139 = vector.broadcast %cst_34 : f32 to vector<1x32xf32>
    %140 = vector.extract_strided_slice %135 {offsets = [1, 0], sizes = [7, 32], strides = [1, 1]} : vector<8x32xf32> to vector<7x32xf32>
    %141 = tpu.concatenate %140, %139 in 0 : vector<7x32xf32>, vector<1x32xf32> -> vector<8x32xf32>
    %142 = tpu.concatenate %138, %135, %141 in 1 : vector<8x32xf32>, vector<8x32xf32>, vector<8x32xf32> -> vector<8x96xf32>
    %c160 = arith.constant 160 : index
    %c0_35 = arith.constant 0 : index
    %143 = vector.load %arg2[%c160, %c0_35] : memref<1080x64xf32, #tpu.memory_space<vmem>>, vector<96x32xf32>
    %cst_36 = arith.constant dense<0.000000e+00> : vector<8x32xf32>
    %144 = tpu.matmul %142, %143, %cst_36 {dimension_numbers = #tpu.dot_dimension_numbers<[1], [0], [0], [1], [0, 0, 1, 1], [], []>} : vector<8x96xf32>, vector<96x32xf32>, vector<8x32xf32> -> vector<8x32xf32>
    %c5 = arith.constant 5 : index
    %c0_37 = arith.constant 0 : index
    %145 = vector.load %arg3[%c5, %c0_37] : memref<16x64xf32, #tpu.memory_space<vmem>>, vector<1x32xf32>
    %146 = vector.broadcast %145 : vector<1x32xf32> to vector<8x32xf32>
    %147 = arith.addf %144, %146 : vector<8x32xf32>
    %cst_38 = arith.constant 0.000000e+00 : f32
    %148 = vector.broadcast %cst_38 : f32 to vector<8x32xf32>
    %149 = arith.maximumf %147, %148 : vector<8x32xf32>
    %150 = vector.extract_strided_slice %149 {offsets = [0, 0], sizes = [1, 32], strides = [1, 1]} : vector<8x32xf32> to vector<1x32xf32>
    %151 = vector.extract_strided_slice %149 {offsets = [1, 0], sizes = [1, 32], strides = [1, 1]} : vector<8x32xf32> to vector<1x32xf32>
    %152 = arith.maximumf %150, %151 : vector<1x32xf32>
    %153 = vector.extract_strided_slice %149 {offsets = [1, 0], sizes = [1, 32], strides = [1, 1]} : vector<8x32xf32> to vector<1x32xf32>
    %154 = vector.extract_strided_slice %149 {offsets = [2, 0], sizes = [1, 32], strides = [1, 1]} : vector<8x32xf32> to vector<1x32xf32>
    %155 = arith.maximumf %153, %154 : vector<1x32xf32>
    %156 = vector.extract_strided_slice %149 {offsets = [2, 0], sizes = [1, 32], strides = [1, 1]} : vector<8x32xf32> to vector<1x32xf32>
    %157 = vector.extract_strided_slice %149 {offsets = [3, 0], sizes = [1, 32], strides = [1, 1]} : vector<8x32xf32> to vector<1x32xf32>
    %158 = arith.maximumf %156, %157 : vector<1x32xf32>
    %159 = vector.extract_strided_slice %149 {offsets = [4, 0], sizes = [1, 32], strides = [1, 1]} : vector<8x32xf32> to vector<1x32xf32>
    %160 = vector.extract_strided_slice %149 {offsets = [5, 0], sizes = [1, 32], strides = [1, 1]} : vector<8x32xf32> to vector<1x32xf32>
    %161 = arith.maximumf %159, %160 : vector<1x32xf32>
    %162 = vector.extract_strided_slice %149 {offsets = [5, 0], sizes = [1, 32], strides = [1, 1]} : vector<8x32xf32> to vector<1x32xf32>
    %163 = vector.extract_strided_slice %149 {offsets = [6, 0], sizes = [1, 32], strides = [1, 1]} : vector<8x32xf32> to vector<1x32xf32>
    %164 = arith.maximumf %162, %163 : vector<1x32xf32>
    %165 = vector.extract_strided_slice %149 {offsets = [6, 0], sizes = [1, 32], strides = [1, 1]} : vector<8x32xf32> to vector<1x32xf32>
    %166 = vector.extract_strided_slice %149 {offsets = [7, 0], sizes = [1, 32], strides = [1, 1]} : vector<8x32xf32> to vector<1x32xf32>
    %167 = arith.maximumf %165, %166 : vector<1x32xf32>
    %168 = tpu.concatenate %152, %155, %158, %161, %164, %167 in 0 : vector<1x32xf32>, vector<1x32xf32>, vector<1x32xf32>, vector<1x32xf32>, vector<1x32xf32>, vector<1x32xf32> -> vector<6x32xf32>
    %cst_39 = arith.constant 0.000000e+00 : f32
    %169 = vector.broadcast %cst_39 : f32 to vector<1x32xf32>
    %170 = vector.extract_strided_slice %168 {offsets = [0, 0], sizes = [5, 32], strides = [1, 1]} : vector<6x32xf32> to vector<5x32xf32>
    %171 = tpu.concatenate %169, %170 in 0 : vector<1x32xf32>, vector<5x32xf32> -> vector<6x32xf32>
    %cst_40 = arith.constant 0.000000e+00 : f32
    %172 = vector.broadcast %cst_40 : f32 to vector<1x32xf32>
    %173 = vector.extract_strided_slice %168 {offsets = [1, 0], sizes = [5, 32], strides = [1, 1]} : vector<6x32xf32> to vector<5x32xf32>
    %174 = tpu.concatenate %173, %172 in 0 : vector<5x32xf32>, vector<1x32xf32> -> vector<6x32xf32>
    %175 = tpu.concatenate %171, %168, %174 in 1 : vector<6x32xf32>, vector<6x32xf32>, vector<6x32xf32> -> vector<6x96xf32>
    %c256 = arith.constant 256 : index
    %c0_41 = arith.constant 0 : index
    %176 = vector.load %arg2[%c256, %c0_41] : memref<1080x64xf32, #tpu.memory_space<vmem>>, vector<96x64xf32>
    %cst_42 = arith.constant dense<0.000000e+00> : vector<6x64xf32>
    %177 = tpu.matmul %175, %176, %cst_42 {dimension_numbers = #tpu.dot_dimension_numbers<[1], [0], [0], [1], [0, 0, 1, 1], [], []>} : vector<6x96xf32>, vector<96x64xf32>, vector<6x64xf32> -> vector<6x64xf32>
    %c6 = arith.constant 6 : index
    %c0_43 = arith.constant 0 : index
    %178 = vector.load %arg3[%c6, %c0_43] : memref<16x64xf32, #tpu.memory_space<vmem>>, vector<1x64xf32>
    %179 = vector.broadcast %178 : vector<1x64xf32> to vector<6x64xf32>
    %180 = arith.addf %177, %179 : vector<6x64xf32>
    %cst_44 = arith.constant 0.000000e+00 : f32
    %181 = vector.broadcast %cst_44 : f32 to vector<6x64xf32>
    %182 = arith.maximumf %180, %181 : vector<6x64xf32>
    %cst_45 = arith.constant 0.000000e+00 : f32
    %183 = vector.broadcast %cst_45 : f32 to vector<1x64xf32>
    %184 = vector.extract_strided_slice %182 {offsets = [0, 0], sizes = [5, 64], strides = [1, 1]} : vector<6x64xf32> to vector<5x64xf32>
    %185 = tpu.concatenate %183, %184 in 0 : vector<1x64xf32>, vector<5x64xf32> -> vector<6x64xf32>
    %cst_46 = arith.constant 0.000000e+00 : f32
    %186 = vector.broadcast %cst_46 : f32 to vector<1x64xf32>
    %187 = vector.extract_strided_slice %182 {offsets = [1, 0], sizes = [5, 64], strides = [1, 1]} : vector<6x64xf32> to vector<5x64xf32>
    %188 = tpu.concatenate %187, %186 in 0 : vector<5x64xf32>, vector<1x64xf32> -> vector<6x64xf32>
    %189 = tpu.concatenate %185, %182, %188 in 1 : vector<6x64xf32>, vector<6x64xf32>, vector<6x64xf32> -> vector<6x192xf32>
    %c352 = arith.constant 352 : index
    %c0_47 = arith.constant 0 : index
    %190 = vector.load %arg2[%c352, %c0_47] : memref<1080x64xf32, #tpu.memory_space<vmem>>, vector<192x64xf32>
    %cst_48 = arith.constant dense<0.000000e+00> : vector<6x64xf32>
    %191 = tpu.matmul %189, %190, %cst_48 {dimension_numbers = #tpu.dot_dimension_numbers<[1], [0], [0], [1], [0, 0, 1, 1], [], []>} : vector<6x192xf32>, vector<192x64xf32>, vector<6x64xf32> -> vector<6x64xf32>
    %c7 = arith.constant 7 : index
    %c0_49 = arith.constant 0 : index
    %192 = vector.load %arg3[%c7, %c0_49] : memref<16x64xf32, #tpu.memory_space<vmem>>, vector<1x64xf32>
    %193 = vector.broadcast %192 : vector<1x64xf32> to vector<6x64xf32>
    %194 = arith.addf %191, %193 : vector<6x64xf32>
    %cst_50 = arith.constant 0.000000e+00 : f32
    %195 = vector.broadcast %cst_50 : f32 to vector<6x64xf32>
    %196 = arith.maximumf %194, %195 : vector<6x64xf32>
    %197 = vector.extract_strided_slice %196 {offsets = [0, 0], sizes = [1, 64], strides = [1, 1]} : vector<6x64xf32> to vector<1x64xf32>
    %198 = vector.extract_strided_slice %196 {offsets = [0, 0], sizes = [1, 64], strides = [1, 1]} : vector<6x64xf32> to vector<1x64xf32>
    %cst_51 = arith.constant 0.285714298 : f32
    %199 = vector.broadcast %cst_51 : f32 to vector<1x64xf32>
    %200 = arith.mulf %198, %199 : vector<1x64xf32>
    %201 = vector.extract_strided_slice %196 {offsets = [1, 0], sizes = [1, 64], strides = [1, 1]} : vector<6x64xf32> to vector<1x64xf32>
    %cst_52 = arith.constant 0.714285731 : f32
    %202 = vector.broadcast %cst_52 : f32 to vector<1x64xf32>
    %203 = arith.mulf %201, %202 : vector<1x64xf32>
    %204 = arith.addf %200, %203 : vector<1x64xf32>
    %205 = vector.extract_strided_slice %196 {offsets = [1, 0], sizes = [1, 64], strides = [1, 1]} : vector<6x64xf32> to vector<1x64xf32>
    %cst_53 = arith.constant 0.571428597 : f32
    %206 = vector.broadcast %cst_53 : f32 to vector<1x64xf32>
    %207 = arith.mulf %205, %206 : vector<1x64xf32>
    %208 = vector.extract_strided_slice %196 {offsets = [2, 0], sizes = [1, 64], strides = [1, 1]} : vector<6x64xf32> to vector<1x64xf32>
    %cst_54 = arith.constant 0.428571433 : f32
    %209 = vector.broadcast %cst_54 : f32 to vector<1x64xf32>
    %210 = arith.mulf %208, %209 : vector<1x64xf32>
    %211 = arith.addf %207, %210 : vector<1x64xf32>
    %212 = vector.extract_strided_slice %196 {offsets = [2, 0], sizes = [1, 64], strides = [1, 1]} : vector<6x64xf32> to vector<1x64xf32>
    %cst_55 = arith.constant 0.857142865 : f32
    %213 = vector.broadcast %cst_55 : f32 to vector<1x64xf32>
    %214 = arith.mulf %212, %213 : vector<1x64xf32>
    %215 = vector.extract_strided_slice %196 {offsets = [3, 0], sizes = [1, 64], strides = [1, 1]} : vector<6x64xf32> to vector<1x64xf32>
    %cst_56 = arith.constant 0.142857149 : f32
    %216 = vector.broadcast %cst_56 : f32 to vector<1x64xf32>
    %217 = arith.mulf %215, %216 : vector<1x64xf32>
    %218 = arith.addf %214, %217 : vector<1x64xf32>
    %219 = vector.extract_strided_slice %196 {offsets = [2, 0], sizes = [1, 64], strides = [1, 1]} : vector<6x64xf32> to vector<1x64xf32>
    %cst_57 = arith.constant 0.142857149 : f32
    %220 = vector.broadcast %cst_57 : f32 to vector<1x64xf32>
    %221 = arith.mulf %219, %220 : vector<1x64xf32>
    %222 = vector.extract_strided_slice %196 {offsets = [3, 0], sizes = [1, 64], strides = [1, 1]} : vector<6x64xf32> to vector<1x64xf32>
    %cst_58 = arith.constant 0.857142865 : f32
    %223 = vector.broadcast %cst_58 : f32 to vector<1x64xf32>
    %224 = arith.mulf %222, %223 : vector<1x64xf32>
    %225 = arith.addf %221, %224 : vector<1x64xf32>
    %226 = vector.extract_strided_slice %196 {offsets = [3, 0], sizes = [1, 64], strides = [1, 1]} : vector<6x64xf32> to vector<1x64xf32>
    %cst_59 = arith.constant 0.428571433 : f32
    %227 = vector.broadcast %cst_59 : f32 to vector<1x64xf32>
    %228 = arith.mulf %226, %227 : vector<1x64xf32>
    %229 = vector.extract_strided_slice %196 {offsets = [4, 0], sizes = [1, 64], strides = [1, 1]} : vector<6x64xf32> to vector<1x64xf32>
    %cst_60 = arith.constant 0.571428597 : f32
    %230 = vector.broadcast %cst_60 : f32 to vector<1x64xf32>
    %231 = arith.mulf %229, %230 : vector<1x64xf32>
    %232 = arith.addf %228, %231 : vector<1x64xf32>
    %233 = vector.extract_strided_slice %196 {offsets = [4, 0], sizes = [1, 64], strides = [1, 1]} : vector<6x64xf32> to vector<1x64xf32>
    %cst_61 = arith.constant 0.714285731 : f32
    %234 = vector.broadcast %cst_61 : f32 to vector<1x64xf32>
    %235 = arith.mulf %233, %234 : vector<1x64xf32>
    %236 = vector.extract_strided_slice %196 {offsets = [5, 0], sizes = [1, 64], strides = [1, 1]} : vector<6x64xf32> to vector<1x64xf32>
    %cst_62 = arith.constant 0.285714298 : f32
    %237 = vector.broadcast %cst_62 : f32 to vector<1x64xf32>
    %238 = arith.mulf %236, %237 : vector<1x64xf32>
    %239 = arith.addf %235, %238 : vector<1x64xf32>
    %240 = vector.extract_strided_slice %196 {offsets = [5, 0], sizes = [1, 64], strides = [1, 1]} : vector<6x64xf32> to vector<1x64xf32>
    %241 = tpu.concatenate %197, %204, %211, %218, %225, %232, %239, %240 in 0 : vector<1x64xf32>, vector<1x64xf32>, vector<1x64xf32>, vector<1x64xf32>, vector<1x64xf32>, vector<1x64xf32>, vector<1x64xf32>, vector<1x64xf32> -> vector<8x64xf32>
    %242 = tpu.concatenate %149, %241 in 1 : vector<8x32xf32>, vector<8x64xf32> -> vector<8x96xf32>
    %cst_63 = arith.constant 0.000000e+00 : f32
    %243 = vector.broadcast %cst_63 : f32 to vector<1x96xf32>
    %244 = vector.extract_strided_slice %242 {offsets = [0, 0], sizes = [7, 96], strides = [1, 1]} : vector<8x96xf32> to vector<7x96xf32>
    %245 = tpu.concatenate %243, %244 in 0 : vector<1x96xf32>, vector<7x96xf32> -> vector<8x96xf32>
    %cst_64 = arith.constant 0.000000e+00 : f32
    %246 = vector.broadcast %cst_64 : f32 to vector<1x96xf32>
    %247 = vector.extract_strided_slice %242 {offsets = [1, 0], sizes = [7, 96], strides = [1, 1]} : vector<8x96xf32> to vector<7x96xf32>
    %248 = tpu.concatenate %247, %246 in 0 : vector<7x96xf32>, vector<1x96xf32> -> vector<8x96xf32>
    %249 = tpu.concatenate %245, %242, %248 in 1 : vector<8x96xf32>, vector<8x96xf32>, vector<8x96xf32> -> vector<8x288xf32>
    %c544 = arith.constant 544 : index
    %c0_65 = arith.constant 0 : index
    %250 = vector.load %arg2[%c544, %c0_65] : memref<1080x64xf32, #tpu.memory_space<vmem>>, vector<288x16xf32>
    %cst_66 = arith.constant dense<0.000000e+00> : vector<8x16xf32>
    %251 = tpu.matmul %249, %250, %cst_66 {dimension_numbers = #tpu.dot_dimension_numbers<[1], [0], [0], [1], [0, 0, 1, 1], [], []>} : vector<8x288xf32>, vector<288x16xf32>, vector<8x16xf32> -> vector<8x16xf32>
    %c8 = arith.constant 8 : index
    %c0_67 = arith.constant 0 : index
    %252 = vector.load %arg3[%c8, %c0_67] : memref<16x64xf32, #tpu.memory_space<vmem>>, vector<1x16xf32>
    %253 = vector.broadcast %252 : vector<1x16xf32> to vector<8x16xf32>
    %254 = arith.addf %251, %253 : vector<8x16xf32>
    %cst_68 = arith.constant 0.000000e+00 : f32
    %255 = vector.broadcast %cst_68 : f32 to vector<8x16xf32>
    %256 = arith.maximumf %254, %255 : vector<8x16xf32>
    %cst_69 = arith.constant 0.000000e+00 : f32
    %257 = vector.broadcast %cst_69 : f32 to vector<1x16xf32>
    %258 = vector.extract_strided_slice %256 {offsets = [0, 0], sizes = [7, 16], strides = [1, 1]} : vector<8x16xf32> to vector<7x16xf32>
    %259 = tpu.concatenate %257, %258 in 0 : vector<1x16xf32>, vector<7x16xf32> -> vector<8x16xf32>
    %cst_70 = arith.constant 0.000000e+00 : f32
    %260 = vector.broadcast %cst_70 : f32 to vector<1x16xf32>
    %261 = vector.extract_strided_slice %256 {offsets = [1, 0], sizes = [7, 16], strides = [1, 1]} : vector<8x16xf32> to vector<7x16xf32>
    %262 = tpu.concatenate %261, %260 in 0 : vector<7x16xf32>, vector<1x16xf32> -> vector<8x16xf32>
    %263 = tpu.concatenate %259, %256, %262 in 1 : vector<8x16xf32>, vector<8x16xf32>, vector<8x16xf32> -> vector<8x48xf32>
    %c832 = arith.constant 832 : index
    %c0_71 = arith.constant 0 : index
    %264 = vector.load %arg2[%c832, %c0_71] : memref<1080x64xf32, #tpu.memory_space<vmem>>, vector<48x16xf32>
    %cst_72 = arith.constant dense<0.000000e+00> : vector<8x16xf32>
    %265 = tpu.matmul %263, %264, %cst_72 {dimension_numbers = #tpu.dot_dimension_numbers<[1], [0], [0], [1], [0, 0, 1, 1], [], []>} : vector<8x48xf32>, vector<48x16xf32>, vector<8x16xf32> -> vector<8x16xf32>
    %c9 = arith.constant 9 : index
    %c0_73 = arith.constant 0 : index
    %266 = vector.load %arg3[%c9, %c0_73] : memref<16x64xf32, #tpu.memory_space<vmem>>, vector<1x16xf32>
    %267 = vector.broadcast %266 : vector<1x16xf32> to vector<8x16xf32>
    %268 = arith.addf %265, %267 : vector<8x16xf32>
    %cst_74 = arith.constant 0.000000e+00 : f32
    %269 = vector.broadcast %cst_74 : f32 to vector<8x16xf32>
    %270 = arith.maximumf %268, %269 : vector<8x16xf32>
    %271 = vector.extract_strided_slice %270 {offsets = [0, 0], sizes = [1, 16], strides = [1, 1]} : vector<8x16xf32> to vector<1x16xf32>
    %272 = vector.extract_strided_slice %270 {offsets = [0, 0], sizes = [1, 16], strides = [1, 1]} : vector<8x16xf32> to vector<1x16xf32>
    %cst_75 = arith.constant 0.222222224 : f32
    %273 = vector.broadcast %cst_75 : f32 to vector<1x16xf32>
    %274 = arith.mulf %272, %273 : vector<1x16xf32>
    %275 = vector.extract_strided_slice %270 {offsets = [1, 0], sizes = [1, 16], strides = [1, 1]} : vector<8x16xf32> to vector<1x16xf32>
    %cst_76 = arith.constant 0.777777791 : f32
    %276 = vector.broadcast %cst_76 : f32 to vector<1x16xf32>
    %277 = arith.mulf %275, %276 : vector<1x16xf32>
    %278 = arith.addf %274, %277 : vector<1x16xf32>
    %279 = vector.extract_strided_slice %270 {offsets = [1, 0], sizes = [1, 16], strides = [1, 1]} : vector<8x16xf32> to vector<1x16xf32>
    %cst_77 = arith.constant 0.444444448 : f32
    %280 = vector.broadcast %cst_77 : f32 to vector<1x16xf32>
    %281 = arith.mulf %279, %280 : vector<1x16xf32>
    %282 = vector.extract_strided_slice %270 {offsets = [2, 0], sizes = [1, 16], strides = [1, 1]} : vector<8x16xf32> to vector<1x16xf32>
    %cst_78 = arith.constant 0.555555582 : f32
    %283 = vector.broadcast %cst_78 : f32 to vector<1x16xf32>
    %284 = arith.mulf %282, %283 : vector<1x16xf32>
    %285 = arith.addf %281, %284 : vector<1x16xf32>
    %286 = vector.extract_strided_slice %270 {offsets = [2, 0], sizes = [1, 16], strides = [1, 1]} : vector<8x16xf32> to vector<1x16xf32>
    %cst_79 = arith.constant 0.666666686 : f32
    %287 = vector.broadcast %cst_79 : f32 to vector<1x16xf32>
    %288 = arith.mulf %286, %287 : vector<1x16xf32>
    %289 = vector.extract_strided_slice %270 {offsets = [3, 0], sizes = [1, 16], strides = [1, 1]} : vector<8x16xf32> to vector<1x16xf32>
    %cst_80 = arith.constant 0.333333343 : f32
    %290 = vector.broadcast %cst_80 : f32 to vector<1x16xf32>
    %291 = arith.mulf %289, %290 : vector<1x16xf32>
    %292 = arith.addf %288, %291 : vector<1x16xf32>
    %293 = vector.extract_strided_slice %270 {offsets = [3, 0], sizes = [1, 16], strides = [1, 1]} : vector<8x16xf32> to vector<1x16xf32>
    %cst_81 = arith.constant 0.888888895 : f32
    %294 = vector.broadcast %cst_81 : f32 to vector<1x16xf32>
    %295 = arith.mulf %293, %294 : vector<1x16xf32>
    %296 = vector.extract_strided_slice %270 {offsets = [4, 0], sizes = [1, 16], strides = [1, 1]} : vector<8x16xf32> to vector<1x16xf32>
    %cst_82 = arith.constant 0.111111112 : f32
    %297 = vector.broadcast %cst_82 : f32 to vector<1x16xf32>
    %298 = arith.mulf %296, %297 : vector<1x16xf32>
    %299 = arith.addf %295, %298 : vector<1x16xf32>
    %300 = vector.extract_strided_slice %270 {offsets = [3, 0], sizes = [1, 16], strides = [1, 1]} : vector<8x16xf32> to vector<1x16xf32>
    %cst_83 = arith.constant 0.111111112 : f32
    %301 = vector.broadcast %cst_83 : f32 to vector<1x16xf32>
    %302 = arith.mulf %300, %301 : vector<1x16xf32>
    %303 = vector.extract_strided_slice %270 {offsets = [4, 0], sizes = [1, 16], strides = [1, 1]} : vector<8x16xf32> to vector<1x16xf32>
    %cst_84 = arith.constant 0.888888895 : f32
    %304 = vector.broadcast %cst_84 : f32 to vector<1x16xf32>
    %305 = arith.mulf %303, %304 : vector<1x16xf32>
    %306 = arith.addf %302, %305 : vector<1x16xf32>
    %307 = vector.extract_strided_slice %270 {offsets = [4, 0], sizes = [1, 16], strides = [1, 1]} : vector<8x16xf32> to vector<1x16xf32>
    %cst_85 = arith.constant 0.333333343 : f32
    %308 = vector.broadcast %cst_85 : f32 to vector<1x16xf32>
    %309 = arith.mulf %307, %308 : vector<1x16xf32>
    %310 = vector.extract_strided_slice %270 {offsets = [5, 0], sizes = [1, 16], strides = [1, 1]} : vector<8x16xf32> to vector<1x16xf32>
    %cst_86 = arith.constant 0.666666686 : f32
    %311 = vector.broadcast %cst_86 : f32 to vector<1x16xf32>
    %312 = arith.mulf %310, %311 : vector<1x16xf32>
    %313 = arith.addf %309, %312 : vector<1x16xf32>
    %314 = vector.extract_strided_slice %270 {offsets = [5, 0], sizes = [1, 16], strides = [1, 1]} : vector<8x16xf32> to vector<1x16xf32>
    %cst_87 = arith.constant 0.555555582 : f32
    %315 = vector.broadcast %cst_87 : f32 to vector<1x16xf32>
    %316 = arith.mulf %314, %315 : vector<1x16xf32>
    %317 = vector.extract_strided_slice %270 {offsets = [6, 0], sizes = [1, 16], strides = [1, 1]} : vector<8x16xf32> to vector<1x16xf32>
    %cst_88 = arith.constant 0.444444448 : f32
    %318 = vector.broadcast %cst_88 : f32 to vector<1x16xf32>
    %319 = arith.mulf %317, %318 : vector<1x16xf32>
    %320 = arith.addf %316, %319 : vector<1x16xf32>
    %321 = vector.extract_strided_slice %270 {offsets = [6, 0], sizes = [1, 16], strides = [1, 1]} : vector<8x16xf32> to vector<1x16xf32>
    %cst_89 = arith.constant 0.777777791 : f32
    %322 = vector.broadcast %cst_89 : f32 to vector<1x16xf32>
    %323 = arith.mulf %321, %322 : vector<1x16xf32>
    %324 = vector.extract_strided_slice %270 {offsets = [7, 0], sizes = [1, 16], strides = [1, 1]} : vector<8x16xf32> to vector<1x16xf32>
    %cst_90 = arith.constant 0.222222224 : f32
    %325 = vector.broadcast %cst_90 : f32 to vector<1x16xf32>
    %326 = arith.mulf %324, %325 : vector<1x16xf32>
    %327 = arith.addf %323, %326 : vector<1x16xf32>
    %328 = vector.extract_strided_slice %270 {offsets = [7, 0], sizes = [1, 16], strides = [1, 1]} : vector<8x16xf32> to vector<1x16xf32>
    %329 = tpu.concatenate %271, %278, %285, %292, %299, %306, %313, %320, %327, %328 in 0 : vector<1x16xf32>, vector<1x16xf32>, vector<1x16xf32>, vector<1x16xf32>, vector<1x16xf32>, vector<1x16xf32>, vector<1x16xf32>, vector<1x16xf32>, vector<1x16xf32>, vector<1x16xf32> -> vector<10x16xf32>
    %330 = tpu.concatenate %96, %329 in 1 : vector<10x16xf32>, vector<10x16xf32> -> vector<10x32xf32>
    %cst_91 = arith.constant 0.000000e+00 : f32
    %331 = vector.broadcast %cst_91 : f32 to vector<1x32xf32>
    %332 = vector.extract_strided_slice %330 {offsets = [0, 0], sizes = [9, 32], strides = [1, 1]} : vector<10x32xf32> to vector<9x32xf32>
    %333 = tpu.concatenate %331, %332 in 0 : vector<1x32xf32>, vector<9x32xf32> -> vector<10x32xf32>
    %cst_92 = arith.constant 0.000000e+00 : f32
    %334 = vector.broadcast %cst_92 : f32 to vector<1x32xf32>
    %335 = vector.extract_strided_slice %330 {offsets = [1, 0], sizes = [9, 32], strides = [1, 1]} : vector<10x32xf32> to vector<9x32xf32>
    %336 = tpu.concatenate %335, %334 in 0 : vector<9x32xf32>, vector<1x32xf32> -> vector<10x32xf32>
    %337 = tpu.concatenate %333, %330, %336 in 1 : vector<10x32xf32>, vector<10x32xf32>, vector<10x32xf32> -> vector<10x96xf32>
    %c880 = arith.constant 880 : index
    %c0_93 = arith.constant 0 : index
    %338 = vector.load %arg2[%c880, %c0_93] : memref<1080x64xf32, #tpu.memory_space<vmem>>, vector<96x8xf32>
    %cst_94 = arith.constant dense<0.000000e+00> : vector<10x8xf32>
    %339 = tpu.matmul %337, %338, %cst_94 {dimension_numbers = #tpu.dot_dimension_numbers<[1], [0], [0], [1], [0, 0, 1, 1], [], []>} : vector<10x96xf32>, vector<96x8xf32>, vector<10x8xf32> -> vector<10x8xf32>
    %c10 = arith.constant 10 : index
    %c0_95 = arith.constant 0 : index
    %340 = vector.load %arg3[%c10, %c0_95] : memref<16x64xf32, #tpu.memory_space<vmem>>, vector<1x8xf32>
    %341 = vector.broadcast %340 : vector<1x8xf32> to vector<10x8xf32>
    %342 = arith.addf %339, %341 : vector<10x8xf32>
    %cst_96 = arith.constant 0.000000e+00 : f32
    %343 = vector.broadcast %cst_96 : f32 to vector<10x8xf32>
    %344 = arith.maximumf %342, %343 : vector<10x8xf32>
    %cst_97 = arith.constant 0.000000e+00 : f32
    %345 = vector.broadcast %cst_97 : f32 to vector<1x8xf32>
    %346 = vector.extract_strided_slice %344 {offsets = [0, 0], sizes = [9, 8], strides = [1, 1]} : vector<10x8xf32> to vector<9x8xf32>
    %347 = tpu.concatenate %345, %346 in 0 : vector<1x8xf32>, vector<9x8xf32> -> vector<10x8xf32>
    %cst_98 = arith.constant 0.000000e+00 : f32
    %348 = vector.broadcast %cst_98 : f32 to vector<1x8xf32>
    %349 = vector.extract_strided_slice %344 {offsets = [1, 0], sizes = [9, 8], strides = [1, 1]} : vector<10x8xf32> to vector<9x8xf32>
    %350 = tpu.concatenate %349, %348 in 0 : vector<9x8xf32>, vector<1x8xf32> -> vector<10x8xf32>
    %351 = tpu.concatenate %347, %344, %350 in 1 : vector<10x8xf32>, vector<10x8xf32>, vector<10x8xf32> -> vector<10x24xf32>
    %c976 = arith.constant 976 : index
    %c0_99 = arith.constant 0 : index
    %352 = vector.load %arg2[%c976, %c0_99] : memref<1080x64xf32, #tpu.memory_space<vmem>>, vector<24x8xf32>
    %cst_100 = arith.constant dense<0.000000e+00> : vector<10x8xf32>
    %353 = tpu.matmul %351, %352, %cst_100 {dimension_numbers = #tpu.dot_dimension_numbers<[1], [0], [0], [1], [0, 0, 1, 1], [], []>} : vector<10x24xf32>, vector<24x8xf32>, vector<10x8xf32> -> vector<10x8xf32>
    %c11 = arith.constant 11 : index
    %c0_101 = arith.constant 0 : index
    %354 = vector.load %arg3[%c11, %c0_101] : memref<16x64xf32, #tpu.memory_space<vmem>>, vector<1x8xf32>
    %355 = vector.broadcast %354 : vector<1x8xf32> to vector<10x8xf32>
    %356 = arith.addf %353, %355 : vector<10x8xf32>
    %cst_102 = arith.constant 0.000000e+00 : f32
    %357 = vector.broadcast %cst_102 : f32 to vector<10x8xf32>
    %358 = arith.maximumf %356, %357 : vector<10x8xf32>
    %359 = vector.extract_strided_slice %358 {offsets = [0, 0], sizes = [1, 8], strides = [1, 1]} : vector<10x8xf32> to vector<1x8xf32>
    %360 = vector.extract_strided_slice %358 {offsets = [0, 0], sizes = [1, 8], strides = [1, 1]} : vector<10x8xf32> to vector<1x8xf32>
    %cst_103 = arith.constant 4.000000e-01 : f32
    %361 = vector.broadcast %cst_103 : f32 to vector<1x8xf32>
    %362 = arith.mulf %360, %361 : vector<1x8xf32>
    %363 = vector.extract_strided_slice %358 {offsets = [1, 0], sizes = [1, 8], strides = [1, 1]} : vector<10x8xf32> to vector<1x8xf32>
    %cst_104 = arith.constant 6.000000e-01 : f32
    %364 = vector.broadcast %cst_104 : f32 to vector<1x8xf32>
    %365 = arith.mulf %363, %364 : vector<1x8xf32>
    %366 = arith.addf %362, %365 : vector<1x8xf32>
    %367 = vector.extract_strided_slice %358 {offsets = [1, 0], sizes = [1, 8], strides = [1, 1]} : vector<10x8xf32> to vector<1x8xf32>
    %cst_105 = arith.constant 8.000000e-01 : f32
    %368 = vector.broadcast %cst_105 : f32 to vector<1x8xf32>
    %369 = arith.mulf %367, %368 : vector<1x8xf32>
    %370 = vector.extract_strided_slice %358 {offsets = [2, 0], sizes = [1, 8], strides = [1, 1]} : vector<10x8xf32> to vector<1x8xf32>
    %cst_106 = arith.constant 2.000000e-01 : f32
    %371 = vector.broadcast %cst_106 : f32 to vector<1x8xf32>
    %372 = arith.mulf %370, %371 : vector<1x8xf32>
    %373 = arith.addf %369, %372 : vector<1x8xf32>
    %374 = vector.extract_strided_slice %358 {offsets = [1, 0], sizes = [1, 8], strides = [1, 1]} : vector<10x8xf32> to vector<1x8xf32>
    %cst_107 = arith.constant 2.000000e-01 : f32
    %375 = vector.broadcast %cst_107 : f32 to vector<1x8xf32>
    %376 = arith.mulf %374, %375 : vector<1x8xf32>
    %377 = vector.extract_strided_slice %358 {offsets = [2, 0], sizes = [1, 8], strides = [1, 1]} : vector<10x8xf32> to vector<1x8xf32>
    %cst_108 = arith.constant 8.000000e-01 : f32
    %378 = vector.broadcast %cst_108 : f32 to vector<1x8xf32>
    %379 = arith.mulf %377, %378 : vector<1x8xf32>
    %380 = arith.addf %376, %379 : vector<1x8xf32>
    %381 = vector.extract_strided_slice %358 {offsets = [2, 0], sizes = [1, 8], strides = [1, 1]} : vector<10x8xf32> to vector<1x8xf32>
    %cst_109 = arith.constant 6.000000e-01 : f32
    %382 = vector.broadcast %cst_109 : f32 to vector<1x8xf32>
    %383 = arith.mulf %381, %382 : vector<1x8xf32>
    %384 = vector.extract_strided_slice %358 {offsets = [3, 0], sizes = [1, 8], strides = [1, 1]} : vector<10x8xf32> to vector<1x8xf32>
    %cst_110 = arith.constant 4.000000e-01 : f32
    %385 = vector.broadcast %cst_110 : f32 to vector<1x8xf32>
    %386 = arith.mulf %384, %385 : vector<1x8xf32>
    %387 = arith.addf %383, %386 : vector<1x8xf32>
    %388 = vector.extract_strided_slice %358 {offsets = [3, 0], sizes = [1, 8], strides = [1, 1]} : vector<10x8xf32> to vector<1x8xf32>
    %389 = vector.extract_strided_slice %358 {offsets = [3, 0], sizes = [1, 8], strides = [1, 1]} : vector<10x8xf32> to vector<1x8xf32>
    %cst_111 = arith.constant 4.000000e-01 : f32
    %390 = vector.broadcast %cst_111 : f32 to vector<1x8xf32>
    %391 = arith.mulf %389, %390 : vector<1x8xf32>
    %392 = vector.extract_strided_slice %358 {offsets = [4, 0], sizes = [1, 8], strides = [1, 1]} : vector<10x8xf32> to vector<1x8xf32>
    %cst_112 = arith.constant 6.000000e-01 : f32
    %393 = vector.broadcast %cst_112 : f32 to vector<1x8xf32>
    %394 = arith.mulf %392, %393 : vector<1x8xf32>
    %395 = arith.addf %391, %394 : vector<1x8xf32>
    %396 = vector.extract_strided_slice %358 {offsets = [4, 0], sizes = [1, 8], strides = [1, 1]} : vector<10x8xf32> to vector<1x8xf32>
    %cst_113 = arith.constant 8.000000e-01 : f32
    %397 = vector.broadcast %cst_113 : f32 to vector<1x8xf32>
    %398 = arith.mulf %396, %397 : vector<1x8xf32>
    %399 = vector.extract_strided_slice %358 {offsets = [5, 0], sizes = [1, 8], strides = [1, 1]} : vector<10x8xf32> to vector<1x8xf32>
    %cst_114 = arith.constant 2.000000e-01 : f32
    %400 = vector.broadcast %cst_114 : f32 to vector<1x8xf32>
    %401 = arith.mulf %399, %400 : vector<1x8xf32>
    %402 = arith.addf %398, %401 : vector<1x8xf32>
    %403 = vector.extract_strided_slice %358 {offsets = [4, 0], sizes = [1, 8], strides = [1, 1]} : vector<10x8xf32> to vector<1x8xf32>
    %cst_115 = arith.constant 2.000000e-01 : f32
    %404 = vector.broadcast %cst_115 : f32 to vector<1x8xf32>
    %405 = arith.mulf %403, %404 : vector<1x8xf32>
    %406 = vector.extract_strided_slice %358 {offsets = [5, 0], sizes = [1, 8], strides = [1, 1]} : vector<10x8xf32> to vector<1x8xf32>
    %cst_116 = arith.constant 8.000000e-01 : f32
    %407 = vector.broadcast %cst_116 : f32 to vector<1x8xf32>
    %408 = arith.mulf %406, %407 : vector<1x8xf32>
    %409 = arith.addf %405, %408 : vector<1x8xf32>
    %410 = vector.extract_strided_slice %358 {offsets = [5, 0], sizes = [1, 8], strides = [1, 1]} : vector<10x8xf32> to vector<1x8xf32>
    %cst_117 = arith.constant 6.000000e-01 : f32
    %411 = vector.broadcast %cst_117 : f32 to vector<1x8xf32>
    %412 = arith.mulf %410, %411 : vector<1x8xf32>
    %413 = vector.extract_strided_slice %358 {offsets = [6, 0], sizes = [1, 8], strides = [1, 1]} : vector<10x8xf32> to vector<1x8xf32>
    %cst_118 = arith.constant 4.000000e-01 : f32
    %414 = vector.broadcast %cst_118 : f32 to vector<1x8xf32>
    %415 = arith.mulf %413, %414 : vector<1x8xf32>
    %416 = arith.addf %412, %415 : vector<1x8xf32>
    %417 = vector.extract_strided_slice %358 {offsets = [6, 0], sizes = [1, 8], strides = [1, 1]} : vector<10x8xf32> to vector<1x8xf32>
    %418 = vector.extract_strided_slice %358 {offsets = [6, 0], sizes = [1, 8], strides = [1, 1]} : vector<10x8xf32> to vector<1x8xf32>
    %cst_119 = arith.constant 4.000000e-01 : f32
    %419 = vector.broadcast %cst_119 : f32 to vector<1x8xf32>
    %420 = arith.mulf %418, %419 : vector<1x8xf32>
    %421 = vector.extract_strided_slice %358 {offsets = [7, 0], sizes = [1, 8], strides = [1, 1]} : vector<10x8xf32> to vector<1x8xf32>
    %cst_120 = arith.constant 6.000000e-01 : f32
    %422 = vector.broadcast %cst_120 : f32 to vector<1x8xf32>
    %423 = arith.mulf %421, %422 : vector<1x8xf32>
    %424 = arith.addf %420, %423 : vector<1x8xf32>
    %425 = vector.extract_strided_slice %358 {offsets = [7, 0], sizes = [1, 8], strides = [1, 1]} : vector<10x8xf32> to vector<1x8xf32>
    %cst_121 = arith.constant 8.000000e-01 : f32
    %426 = vector.broadcast %cst_121 : f32 to vector<1x8xf32>
    %427 = arith.mulf %425, %426 : vector<1x8xf32>
    %428 = vector.extract_strided_slice %358 {offsets = [8, 0], sizes = [1, 8], strides = [1, 1]} : vector<10x8xf32> to vector<1x8xf32>
    %cst_122 = arith.constant 2.000000e-01 : f32
    %429 = vector.broadcast %cst_122 : f32 to vector<1x8xf32>
    %430 = arith.mulf %428, %429 : vector<1x8xf32>
    %431 = arith.addf %427, %430 : vector<1x8xf32>
    %432 = vector.extract_strided_slice %358 {offsets = [7, 0], sizes = [1, 8], strides = [1, 1]} : vector<10x8xf32> to vector<1x8xf32>
    %cst_123 = arith.constant 2.000000e-01 : f32
    %433 = vector.broadcast %cst_123 : f32 to vector<1x8xf32>
    %434 = arith.mulf %432, %433 : vector<1x8xf32>
    %435 = vector.extract_strided_slice %358 {offsets = [8, 0], sizes = [1, 8], strides = [1, 1]} : vector<10x8xf32> to vector<1x8xf32>
    %cst_124 = arith.constant 8.000000e-01 : f32
    %436 = vector.broadcast %cst_124 : f32 to vector<1x8xf32>
    %437 = arith.mulf %435, %436 : vector<1x8xf32>
    %438 = arith.addf %434, %437 : vector<1x8xf32>
    %439 = vector.extract_strided_slice %358 {offsets = [8, 0], sizes = [1, 8], strides = [1, 1]} : vector<10x8xf32> to vector<1x8xf32>
    %cst_125 = arith.constant 6.000000e-01 : f32
    %440 = vector.broadcast %cst_125 : f32 to vector<1x8xf32>
    %441 = arith.mulf %439, %440 : vector<1x8xf32>
    %442 = vector.extract_strided_slice %358 {offsets = [9, 0], sizes = [1, 8], strides = [1, 1]} : vector<10x8xf32> to vector<1x8xf32>
    %cst_126 = arith.constant 4.000000e-01 : f32
    %443 = vector.broadcast %cst_126 : f32 to vector<1x8xf32>
    %444 = arith.mulf %442, %443 : vector<1x8xf32>
    %445 = arith.addf %441, %444 : vector<1x8xf32>
    %446 = vector.extract_strided_slice %358 {offsets = [9, 0], sizes = [1, 8], strides = [1, 1]} : vector<10x8xf32> to vector<1x8xf32>
    %447 = tpu.concatenate %359, %366, %373, %380, %387, %388, %395, %402, %409, %416, %417, %424, %431, %438, %445, %446 in 0 : vector<1x8xf32>, vector<1x8xf32>, vector<1x8xf32>, vector<1x8xf32>, vector<1x8xf32>, vector<1x8xf32>, vector<1x8xf32>, vector<1x8xf32>, vector<1x8xf32>, vector<1x8xf32>, vector<1x8xf32>, vector<1x8xf32>, vector<1x8xf32>, vector<1x8xf32>, vector<1x8xf32>, vector<1x8xf32> -> vector<16x8xf32>
    %448 = tpu.concatenate %29, %447 in 1 : vector<16x8xf32>, vector<16x8xf32> -> vector<16x16xf32>
    %cst_127 = arith.constant 0.000000e+00 : f32
    %449 = vector.broadcast %cst_127 : f32 to vector<1x16xf32>
    %450 = vector.extract_strided_slice %448 {offsets = [0, 0], sizes = [15, 16], strides = [1, 1]} : vector<16x16xf32> to vector<15x16xf32>
    %451 = tpu.concatenate %449, %450 in 0 : vector<1x16xf32>, vector<15x16xf32> -> vector<16x16xf32>
    %cst_128 = arith.constant 0.000000e+00 : f32
    %452 = vector.broadcast %cst_128 : f32 to vector<1x16xf32>
    %453 = vector.extract_strided_slice %448 {offsets = [1, 0], sizes = [15, 16], strides = [1, 1]} : vector<16x16xf32> to vector<15x16xf32>
    %454 = tpu.concatenate %453, %452 in 0 : vector<15x16xf32>, vector<1x16xf32> -> vector<16x16xf32>
    %455 = tpu.concatenate %451, %448, %454 in 1 : vector<16x16xf32>, vector<16x16xf32>, vector<16x16xf32> -> vector<16x48xf32>
    %c1000 = arith.constant 1000 : index
    %c0_129 = arith.constant 0 : index
    %456 = vector.load %arg2[%c1000, %c0_129] : memref<1080x64xf32, #tpu.memory_space<vmem>>, vector<48x8xf32>
    %cst_130 = arith.constant dense<0.000000e+00> : vector<16x8xf32>
    %457 = tpu.matmul %455, %456, %cst_130 {dimension_numbers = #tpu.dot_dimension_numbers<[1], [0], [0], [1], [0, 0, 1, 1], [], []>} : vector<16x48xf32>, vector<48x8xf32>, vector<16x8xf32> -> vector<16x8xf32>
    %c12 = arith.constant 12 : index
    %c0_131 = arith.constant 0 : index
    %458 = vector.load %arg3[%c12, %c0_131] : memref<16x64xf32, #tpu.memory_space<vmem>>, vector<1x8xf32>
    %459 = vector.broadcast %458 : vector<1x8xf32> to vector<16x8xf32>
    %460 = arith.addf %457, %459 : vector<16x8xf32>
    %cst_132 = arith.constant 0.000000e+00 : f32
    %461 = vector.broadcast %cst_132 : f32 to vector<16x8xf32>
    %462 = arith.maximumf %460, %461 : vector<16x8xf32>
    %cst_133 = arith.constant 0.000000e+00 : f32
    %463 = vector.broadcast %cst_133 : f32 to vector<1x8xf32>
    %464 = vector.extract_strided_slice %462 {offsets = [0, 0], sizes = [15, 8], strides = [1, 1]} : vector<16x8xf32> to vector<15x8xf32>
    %465 = tpu.concatenate %463, %464 in 0 : vector<1x8xf32>, vector<15x8xf32> -> vector<16x8xf32>
    %cst_134 = arith.constant 0.000000e+00 : f32
    %466 = vector.broadcast %cst_134 : f32 to vector<1x8xf32>
    %467 = vector.extract_strided_slice %462 {offsets = [1, 0], sizes = [15, 8], strides = [1, 1]} : vector<16x8xf32> to vector<15x8xf32>
    %468 = tpu.concatenate %467, %466 in 0 : vector<15x8xf32>, vector<1x8xf32> -> vector<16x8xf32>
    %469 = tpu.concatenate %465, %462, %468 in 1 : vector<16x8xf32>, vector<16x8xf32>, vector<16x8xf32> -> vector<16x24xf32>
    %c1048 = arith.constant 1048 : index
    %c0_135 = arith.constant 0 : index
    %470 = vector.load %arg2[%c1048, %c0_135] : memref<1080x64xf32, #tpu.memory_space<vmem>>, vector<24x8xf32>
    %cst_136 = arith.constant dense<0.000000e+00> : vector<16x8xf32>
    %471 = tpu.matmul %469, %470, %cst_136 {dimension_numbers = #tpu.dot_dimension_numbers<[1], [0], [0], [1], [0, 0, 1, 1], [], []>} : vector<16x24xf32>, vector<24x8xf32>, vector<16x8xf32> -> vector<16x8xf32>
    %c13 = arith.constant 13 : index
    %c0_137 = arith.constant 0 : index
    %472 = vector.load %arg3[%c13, %c0_137] : memref<16x64xf32, #tpu.memory_space<vmem>>, vector<1x8xf32>
    %473 = vector.broadcast %472 : vector<1x8xf32> to vector<16x8xf32>
    %474 = arith.addf %471, %473 : vector<16x8xf32>
    %cst_138 = arith.constant 0.000000e+00 : f32
    %475 = vector.broadcast %cst_138 : f32 to vector<16x8xf32>
    %476 = arith.maximumf %474, %475 : vector<16x8xf32>
    %c1072 = arith.constant 1072 : index
    %c0_139 = arith.constant 0 : index
    %477 = vector.load %arg2[%c1072, %c0_139] : memref<1080x64xf32, #tpu.memory_space<vmem>>, vector<8x3xf32>
    %cst_140 = arith.constant dense<0.000000e+00> : vector<16x3xf32>
    %478 = tpu.matmul %476, %477, %cst_140 {dimension_numbers = #tpu.dot_dimension_numbers<[1], [0], [0], [1], [0, 0, 1, 1], [], []>} : vector<16x8xf32>, vector<8x3xf32>, vector<16x3xf32> -> vector<16x3xf32>
    %c14 = arith.constant 14 : index
    %c0_141 = arith.constant 0 : index
    %479 = vector.load %arg3[%c14, %c0_141] : memref<16x64xf32, #tpu.memory_space<vmem>>, vector<1x3xf32>
    %480 = vector.broadcast %479 : vector<1x3xf32> to vector<16x3xf32>
    %481 = arith.addf %478, %480 : vector<16x3xf32>
    %c0_142 = arith.constant 0 : index
    %c0_143 = arith.constant 0 : index
    %c0_144 = arith.constant 0 : index
    %482 = vector.load %arg4[%c0_142, %c0_143, %c0_144] : memref<1x16x3xf32, #tpu.memory_space<vmem>>, vector<1x16x3xf32>
    %483 = vector.shape_cast %482 : vector<1x16x3xf32> to vector<16x3xf32>
    %484 = vector.shape_cast %481 : vector<16x3xf32> to vector<1x16x3xf32>
    tpu.vector_store %arg4[%c0_142, %c0_143, %c0_144], %484 {strides = array<i32>} : memref<1x16x3xf32, #tpu.memory_space<vmem>>, vector<1x16x3xf32>,
    return
  }
  func.func @transform_0(%arg0: i32) -> (i32, i32, i32) {
    %c0_i32 = arith.constant 0 : i32
    %c0_i32_0 = arith.constant 0 : i32
    %c0_i32_1 = arith.constant 0 : i32
    return %arg0, %c0_i32, %c0_i32_0 : i32, i32, i32
  }
  func.func @transform_1(%arg0: i32) -> (i32, i32) {
    %c0_i32 = arith.constant 0 : i32
    %c0_i32_0 = arith.constant 0 : i32
    %c0_i32_1 = arith.constant 0 : i32
    return %c0_i32, %c0_i32_0 : i32, i32
  }
  func.func @transform_2(%arg0: i32) -> (i32, i32) {
    %c0_i32 = arith.constant 0 : i32
    %c0_i32_0 = arith.constant 0 : i32
    %c0_i32_1 = arith.constant 0 : i32
    return %c0_i32, %c0_i32_0 : i32, i32
  }
  func.func @transform_3(%arg0: i32) -> (i32, i32, i32) {
    %c0_i32 = arith.constant 0 : i32
    %c0_i32_0 = arith.constant 0 : i32
    %c0_i32_1 = arith.constant 0 : i32
    return %arg0, %c0_i32, %c0_i32_0 : i32, i32, i32
  }
}

</mosaic_0001>

<llo_original>
// kernel: _lambda_.1
$region0: #{_lambda_.1}
  #allocation0 [shape = 'u32[]', space=smem, size = 0x4, offset = 0x4, fixed_abs, tag = 'smem constant byte address 0x4 - core index']
  #allocation1 [shape = 'u32[144,128]{1,0:T(1,128)}', space=vmem, size = 0x12000, scoped, tag = 'internal scratch']
  %s0 = inlined_call_operand.vmem [shape: f32[2,16,4], index: 0, kind: input, shape index: {}]
  %s1 = inlined_call_operand.hbm [shape: f32[1080,64], index: 1, kind: input, shape index: {}]
  %s2 = inlined_call_operand.vmem [shape: f32[16,64], index: 2, kind: input, shape index: {}]
  %s3 = inlined_call_operand.vmem [shape: f32[2,16,3], index: 3, kind: output, shape index: {}]
  %s4 = sld [smem:[#allocation0]]
  $region49: #{_lambda_.1} parent=0
    _
  %s6 = ssub.s32 1, %s4
  %s7 = scalar_select 0, %s6, %s4
  $region1: #{_lambda_.1} parent=0
    #allocation2 [shape = 'u8[552960]{0}', space=vmem, size = 0x87000, scoped, tag = 'input window, operand 1, single buffered']
    #allocation3 [shape = 's32[2]{0}', space=sflag, size = 0x8, scoped, tag = 'scoped memory for _lambda_.1']
    %8 = vsyncpa [#allocation3], 0
    loop: start=0, step=1, limit=4
    $region2: #{_lambda_.1} parent=1 // loop_pre_header
      _
    $region3: #{_lambda_.1} parent=1 // loop_header
      %s10 = sphi 0, %s14
      %p11 = scmp.ge.s32.totalorder %s10, 4
      %s20 = sphi 0, %s22
      %s23 = sphi 0, %s20
      %s24 = sphi 0, %s23
      %s40 = sphi 0, %s24
      %s44 = sphi 0, %s44
      %s46 = sphi 0, %s44
      %s47 = sphi 0, %s46
      %s61 = sphi 0, %s47
      %s65 = sphi 0, %s65
      %s67 = sphi 0, %s65
      %s68 = sphi 0, %s67
      %s82 = sphi 0, %s68
      %s88 = sphi 0, %s90
      %s91 = sphi 0, %s88
      %s92 = sphi 0, %s91
      %s108 = sphi 0, %s92
    $region4: #{_lambda_.1} parent=1 // loop_header_branch
      %13 = sbr.rel (%p11) target = $region8
    $region5: #{_lambda_.1} parent=1 // loop_body
      %s15 = ssub.s32 %s10, 1
      %s16 = ssub.s32 %s10, 2
      %s17 = sadd.s32 %s10, 1
      %s18 = ssub.s32 %s10, %s17
      %p19 = scmp.eq.s32.totalorder %s18, 0
      %s21 = sadd.s32 %s20, 1
      %s22 = scalar_select %p19, %s20, %s21
      %p25 = pneg %p19
      %p26 = scmp.eq.s32.totalorder %s10, 1
      %p27 = por %p25, %p26
      %p28 = scmp.ne.s32.totalorder %s20, %s23
      %p29 = scmp.eq.s32.totalorder %s10, 0
      %p30 = por %p28, %p29
      %p31 = scmp.ne.s32.totalorder %s20, %s23
      %p32 = scmp.eq.s32.totalorder %s15, 1
      %p33 = por %p31, %p32
      %p34 = scmp.ne.s32.totalorder %s23, %s24
      %p35 = scmp.eq.s32.totalorder %s15, 0
      %p36 = por %p34, %p35
      %p37 = scmp.ne.s32.totalorder %s23, %s24
      %p38 = scmp.eq.s32.totalorder %s16, 1
      %p39 = por %p37, %p38
      %p41 = scmp.ne.s32.totalorder %s24, %s40
      %p42 = scmp.eq.s32.totalorder %s16, 0
      %p43 = por %p41, %p42
      %s45 = sadd.s32 %s44, 1
      %p48 = scmp.eq.s32.totalorder %s10, 1
      %p49 = scmp.ne.s32.totalorder %s44, %s46
      %p50 = scmp.eq.s32.totalorder %s10, 0
      %p51 = por %p49, %p50
      %p52 = scmp.ne.s32.totalorder %s44, %s46
      %p53 = scmp.eq.s32.totalorder %s15, 1
      %p54 = por %p52, %p53
      %p55 = scmp.ne.s32.totalorder %s46, %s47
      %p56 = scmp.eq.s32.totalorder %s15, 0
      %p57 = por %p55, %p56
      %p58 = scmp.ne.s32.totalorder %s46, %s47
      %p59 = scmp.eq.s32.totalorder %s16, 1
      %p60 = por %p58, %p59
      %p62 = scmp.ne.s32.totalorder %s47, %s61
      %p63 = scmp.eq.s32.totalorder %s16, 0
      %p64 = por %p62, %p63
      %s66 = sadd.s32 %s65, 1
      %p69 = scmp.eq.s32.totalorder %s10, 1
      %p70 = scmp.ne.s32.totalorder %s65, %s67
      %p71 = scmp.eq.s32.totalorder %s10, 0
      %p72 = por %p70, %p71
      %p73 = scmp.ne.s32.totalorder %s65, %s67
      %p74 = scmp.eq.s32.totalorder %s15, 1
      %p75 = por %p73, %p74
      %p76 = scmp.ne.s32.totalorder %s67, %s68
      %p77 = scmp.eq.s32.totalorder %s15, 0
      %p78 = por %p76, %p77
      %p79 = scmp.ne.s32.totalorder %s67, %s68
      %p80 = scmp.eq.s32.totalorder %s16, 1
      %p81 = por %p79, %p80
      %p83 = scmp.ne.s32.totalorder %s68, %s82
      %p84 = scmp.eq.s32.totalorder %s16, 0
      %p85 = por %p83, %p84
      %s86 = ssub.s32 %s10, %s17
      %p87 = scmp.eq.s32.totalorder %s86, 0
      %s89 = sadd.s32 %s88, 1
      %s90 = scalar_select %p87, %s88, %s89
      %p93 = pneg %p87
      %p94 = scmp.eq.s32.totalorder %s10, 1
      %p95 = por %p93, %p94
      %p96 = scmp.ne.s32.totalorder %s88, %s91
      %p97 = scmp.eq.s32.totalorder %s10, 0
      %p98 = por %p96, %p97
      %p99 = scmp.ne.s32.totalorder %s88, %s91
      %p100 = scmp.eq.s32.totalorder %s15, 1
      %p101 = por %p99, %p100
      %p102 = scmp.ne.s32.totalorder %s91, %s92
      %p103 = scmp.eq.s32.totalorder %s15, 0
      %p104 = por %p102, %p103
      %p105 = scmp.ne.s32.totalorder %s91, %s92
      %p106 = scmp.eq.s32.totalorder %s16, 1
      %p107 = por %p105, %p106
      %p109 = scmp.ne.s32.totalorder %s92, %s108
      %p110 = scmp.eq.s32.totalorder %s16, 0
      %p111 = por %p109, %p110
      %p112 = scmp.le.s32.totalorder 1, %s10
      %p113 = scmp.lt.s32.totalorder %s10, 3
      %p114 = pnand %p112, %p113
      %p115 = pneg %p114
      // Predicated region
      $region9: #{_lambda_.1} parent=5 // pred_check
        _
      $region10: #{_lambda_.1} parent=5 // pred_check_branch
        %117 = sbr.rel (%p114) target = $region12
      $region11: #{_lambda_.1} parent=5 // pred_region
        %s118 = ssub.s32 %s10, 1
        // Predicated region
        $region13: #{_lambda_.1} parent=11 // pred_check
          %p119 = pneg %p57
        $region14: #{_lambda_.1} parent=11 // pred_check_branch
          %121 = sbr.rel (%p119) target = $region16
        $region15: #{_lambda_.1} parent=11 // pred_region
          %s123 = ssub.s32 17280, 17280
          %124 = vsyncadd [#allocation3], %s123
          %s125 = sshll.u32 [#allocation2], 4
          %s126 = int_to_ptr.vmem [resolvable:$true] %s125
          %131 = dma.hbm_to_vmem [thread:$0]  %s1, 17280, %s126, [#allocation3], 128, 128, 8
        $region16: #{_lambda_.1} parent=11 // pred_fallthru
          _
        // Predicated region
        $region17: #{_lambda_.1} parent=11 // pred_check
          %p132 = pneg %p78
        $region18: #{_lambda_.1} parent=11 // pred_check_branch
          %134 = sbr.rel (%p132) target = $region20
        $region19: #{_lambda_.1} parent=11 // pred_region
          _
        $region20: #{_lambda_.1} parent=11 // pred_fallthru
          _
      $region12: #{_lambda_.1} parent=5 // pred_fallthru
        _
      %p135 = scmp.lt.s32.totalorder %s10, 2
      // Predicated region
      $region21: #{_lambda_.1} parent=5 // pred_check
        %p136 = pneg %p135
      $region22: #{_lambda_.1} parent=5 // pred_check_branch
        %138 = sbr.rel (%p136) target = $region24
      $region23: #{_lambda_.1} parent=5 // pred_region
        // Predicated region
        $region25: #{_lambda_.1} parent=23 // pred_check
          %p139 = pneg %p30
        $region26: #{_lambda_.1} parent=23 // pred_check_branch
          %141 = sbr.rel (%p139) target = $region28
        $region27: #{_lambda_.1} parent=23 // pred_region
          %p142 = scmp.lt.s32.totalorder %s10, 1
          %s143 = scalar_select %p142, %s10, 1
          %s144 = smul.addr %s143, 2
          %s145 = smul.addr %s144, 8
          %s146 = scalar_lea.vmem %s0, %s145
        $region28: #{_lambda_.1} parent=23 // pred_fallthru
          _
      $region24: #{_lambda_.1} parent=5 // pred_fallthru
        _
      %p147 = scmp.le.s32.totalorder 1, %s10
      %p148 = scmp.lt.s32.totalorder %s10, 3
      %p149 = pnand %p147, %p148
      %p150 = pneg %p149
      // Predicated region
      $region29: #{_lambda_.1} parent=5 // pred_check
        _
      $region30: #{_lambda_.1} parent=5 // pred_check_branch
        %152 = sbr.rel (%p149) target = $region32
      $region31: #{_lambda_.1} parent=5 // pred_region
        %s153 = ssub.s32 %s10, 1
        // Predicated region
        $region33: #{_lambda_.1} parent=31 // pred_check
          %p154 = pneg %p57
        $region34: #{_lambda_.1} parent=31 // pred_check_branch
          %156 = sbr.rel (%p154) target = $region36
        $region35: #{_lambda_.1} parent=31 // pred_region
          %157 = dma.done [#allocation3], 17280
        $region36: #{_lambda_.1} parent=31 // pred_fallthru
          _
        %p158 = scmp.lt.s32.totalorder %s15, 1
        %s159 = scalar_select %p158, %s15, 1
        %s160 = smul.addr %s159, 2
        %s161 = smul.addr %s160, 8
        %s162 = scalar_lea.vmem %s0, %s161
        %p163 = pneg %p36
        %p164 = pneg %p33
        %p165 = pneg %p57
        %p166 = pneg %p54
        %p167 = pneg %p78
        %p168 = pneg %p75
        %p169 = pneg %p104
        %p170 = pneg %p101
        %p171 = scmp.lt.s32.totalorder %s15, 1
        %s172 = scalar_select %p171, %s15, 1
        %s173 = smul.addr %s172, 2
        %s174 = smul.addr %s173, 8
        %s175 = scalar_lea.vmem %s3, %s174
        %p176 = scmp.lt.s32.totalorder %s15, 1
        %s177 = scalar_select %p176, %s15, 1
        %s178 = smul.addr %s177, 2
        %s179 = smul.addr %s178, 8
        %s180 = scalar_lea.vmem %s0, %s179
        %p181 = scmp.lt.s32.totalorder %s15, 1
        %s182 = scalar_select %p181, %s15, 1
        %s183 = smul.addr %s182, 2
        %s184 = smul.addr %s183, 8
        %s185 = scalar_lea.vmem %s3, %s184
        %v186 = vld [vmem:[%s180] sm:$0xff]
        %v187 = vld [vmem:[%s180 + $0x8] sm:$0xff]
        %vm190 = vcmask 1040384
        %v191 = vrot.slane %v186, 7
        %v192 = vrot.slane %v187, 7
        %v193 = vsel %vm190, %v191, %v192
        %v196 = vsel %vm190, 0.0, %v191
        %vm197 = vcmask 1046528
        %v198 = vrot.slane %v186, 1
        %v199 = vrot.slane %v187, 1
        %v200 = vsel %vm197, %v198, %v199
        %v202 = vsel %vm197, %v199, 0.0
        %203 = vrot.lane.b32.xlu0 %v186, 4
        %v204 = vpop.permute.xlu0 %203
        %205 = vrot.lane.b32.xlu0 %v187, 4
        %v206 = vpop.permute.xlu0 %205
        %210 = vrot.lane.b32.xlu0 %v200, 8
        %v211 = vpop.permute.xlu0 %210
        %212 = vrot.lane.b32.xlu0 %v202, 8
        %v213 = vpop.permute.xlu0 %212
        %vm216 = vcmask 31744
        %v217 = vsel %vm216, %v196, %v204
        %v218 = vsel %vm216, %v193, %v206
        %vm219 = vcmask 64512
        %v220 = vsel %vm219, %v217, %v211
        %v221 = vsel %vm219, %v218, %v213
        %v222 = vld [vmem:[#allocation2] sm:$0xff]
        %v223 = vld [vmem:[#allocation2 + $0x8] sm:$0xf]
        %v224 = vld [vmem:[%s2] sm:$0x1]
        %v225 = vlaneseq
        %v226 = vshrl.u32 %v225, 7
        %v227 = vsub.s32 0, %v226
        %v228 = vrot.slane %v224, %v227
        %vm229 = vcmask 97280
        %v231 = vsel %vm229, %v220, 0
        %v234 = vsel %vm229, %v221, 0
        %vm236 = vcmask 1043456
        %v238 = vsel %vm236, %v223, 0
        %240 = vmatprep.subr.mxu0 0.0
        %241 = vmatpush1.msra.mxu0 %v222
        %242 = vmatprep.subr.mxu0 0.0
        %243 = vmatpush1.msra.mxu0 %v238
        %244 = vmatprep.subr.mxu0 0.0
        %245 = vmatpush1.msra.mxu0 0.0
        %246 = vmatprep.subr.mxu0 0.0
        %247 = vmatpush1.msra.mxu0 0.0
        %248 = vmatprep.subr.mxu0 0.0
        %249 = vmatpush1.msra.mxu0 0.0
        %250 = vmatprep.subr.mxu0 0.0
        %251 = vmatpush1.msra.mxu0 0.0
        %252 = vmatprep.subr.mxu0 0.0
        %253 = vmatpush1.msra.mxu0 0.0
        %254 = vmatprep.subr.mxu0 0.0
        %255 = vmatpush1.msra.mxu0 0.0
        %256 = vmatprep.subr.mxu0 0.0
        %257 = vmatpush1.msra.mxu0 0.0
        %258 = vmatprep.subr.mxu0 0.0
        %259 = vmatpush1.msra.mxu0 0.0
        %260 = vmatprep.subr.mxu0 0.0
        %261 = vmatpush1.msra.mxu0 0.0
        %262 = vmatprep.subr.mxu0 0.0
        %263 = vmatpush1.msra.mxu0 0.0
        %264 = vmatprep.subr.mxu0 0.0
        %265 = vmatpush1.msra.mxu0 0.0
        %266 = vmatprep.subr.mxu0 0.0
        %267 = vmatpush1.msra.mxu0 0.0
        %268 = vmatprep.subr.mxu0 0.0
        %269 = vmatpush1.msra.mxu0 0.0
        %270 = vmatprep.subr.mxu0 0.0
        %271 = vmatpush1.msra.mxu0 0.0
        %272 = vmatprep.subr.mxu0 0.0
        %273 = vmatpush1.msra.mxu0 0.0
        %274 = vmatprep.subr.mxu0 0.0
        %275 = vmatpush1.msra.mxu0 0.0
        %276 = vmatprep.subr.mxu0 0.0
        %277 = vmatpush1.msra.mxu0 0.0
        %278 = vmatprep.subr.mxu0 0.0
        %279 = vmatpush1.msra.mxu0 0.0
        %280 = vmatprep.subr.mxu0 0.0
        %281 = vmatpush1.msra.mxu0 0.0
        %282 = vmatprep.subr.mxu0 0.0
        %283 = vmatpush1.msra.mxu0 0.0
        %284 = vmatprep.subr.mxu0 0.0
        %285 = vmatpush1.msra.mxu0 0.0
        %286 = vmatprep.subr.mxu0 0.0
        %287 = vmatpush1.msra.mxu0 0.0
        %288 = vmatprep.subr.mxu0 0.0
        %289 = vmatpush1.msra.mxu0 0.0
        %290 = vmatprep.subr.mxu0 0.0
        %291 = vmatpush1.msra.mxu0 0.0
        %292 = vmatprep.subr.mxu0 0.0
        %293 = vmatpush1.msra.mxu0 0.0
        %294 = vmatprep.subr.mxu0 0.0
        %295 = vmatpush1.msra.mxu0 0.0
        %296 = vmatprep.subr.mxu0 0.0
        %297 = vmatpush1.msra.mxu0 0.0
        %298 = vmatprep.subr.mxu0 0.0
        %299 = vmatpush1.msra.mxu0 0.0
        %300 = vmatprep.subr.mxu0 0.0
        %301 = vmatpush1.msra.mxu0 0.0
        %302 = vmatprep.subr.mxu0 0.0
        %303 = vmatpush1.msra.mxu0 0.0
        %304 = vmatprep.mubr.f32.mxu0 0.0
        %305 = vmatmul.mubr.f32.gmra.mrb[0].mxu0 %v231
        %v306 = vpop.f32.mrb[0].mxu0
        %v307 = vadd.f32 %v228, %v306
        %v308 = vpop.f32.mrb[0].mxu0
        %309 = vmatprep.mubr.f32.mxu0 0.0
        %310 = vmatmul.mubr.f32.gmra.mrb[0].mxu0 %v234
        %v311 = vpop.f32.mrb[0].mxu0
        %v312 = vadd.f32 %v228, %v311
        %v313 = vpop.f32.mrb[0].mxu0
        %314 = vdwg.mxu0
        %v315 = vmax.f32 %v307, 0.0
        %v316 = vmax.f32 %v312, 0.0
        %v319 = vrot.slane %v315, 7
        %v320 = vrot.slane %v316, 7
        %v321 = vsel %vm190, %v319, %v320
        %v324 = vsel %vm190, 0.0, %v319
        %v325 = vrot.slane %v315, 1
        %v326 = vrot.slane %v316, 1
        %v327 = vsel %vm197, %v325, %v326
        %v329 = vsel %vm197, %v326, 0.0
        %330 = vrot.lane.b32.xlu0 %v315, 8
        %v331 = vpop.permute.xlu0 %330
        %332 = vrot.lane.b32.xlu0 %v316, 8
        %v333 = vpop.permute.xlu0 %332
        %337 = vrot.lane.b32.xlu0 %v327, 16
        %v338 = vpop.permute.xlu0 %337
        %339 = vrot.lane.b32.xlu0 %v329, 16
        %v340 = vpop.permute.xlu0 %339
        %v343 = vsel %vm219, %v324, %v331
        %v344 = vsel %vm219, %v321, %v333
        %vm345 = vcmask 130048
        %v346 = vsel %vm345, %v343, %v338
        %v347 = vsel %vm345, %v344, %v340
        %v348 = vld [vmem:[#allocation2 + $0x10] sm:$0xff]
        %v349 = vld [vmem:[#allocation2 + $0x18] sm:$0xff]
        %v350 = vld [vmem:[#allocation2 + $0x20] sm:$0xff]
        %v351 = vld [vmem:[%s2 + $0x1] sm:$0x1]
        %v352 = vlaneseq
        %v353 = vshrl.u32 %v352, 7
        %v354 = vsub.s32 0, %v353
        %v355 = vrot.slane %v351, %v354
        %vm356 = vcmask 195584
        %v358 = vsel %vm356, %v346, 0
        %v361 = vsel %vm356, %v347, 0
        %363 = vmatprep.subr.mxu0 0.0
        %364 = vmatpush1.msra.mxu0 %v348
        %365 = vmatprep.subr.mxu0 0.0
        %366 = vmatpush1.msra.mxu0 %v349
        %367 = vmatprep.subr.mxu0 0.0
        %368 = vmatpush1.msra.mxu0 %v350
        %369 = vmatprep.subr.mxu0 0.0
        %370 = vmatpush1.msra.mxu0 0.0
        %371 = vmatprep.subr.mxu0 0.0
        %372 = vmatpush1.msra.mxu0 0.0
        %373 = vmatprep.subr.mxu0 0.0
        %374 = vmatpush1.msra.mxu0 0.0
        %375 = vmatprep.subr.mxu0 0.0
        %376 = vmatpush1.msra.mxu0 0.0
        %377 = vmatprep.subr.mxu0 0.0
        %378 = vmatpush1.msra.mxu0 0.0
        %379 = vmatprep.subr.mxu0 0.0
        %380 = vmatpush1.msra.mxu0 0.0
        %381 = vmatprep.subr.mxu0 0.0
        %382 = vmatpush1.msra.mxu0 0.0
        %383 = vmatprep.subr.mxu0 0.0
        %384 = vmatpush1.msra.mxu0 0.0
        %385 = vmatprep.subr.mxu0 0.0
        %386 = vmatpush1.msra.mxu0 0.0
        %387 = vmatprep.subr.mxu0 0.0
        %388 = vmatpush1.msra.mxu0 0.0
        %389 = vmatprep.subr.mxu0 0.0
        %390 = vmatpush1.msra.mxu0 0.0
        %391 = vmatprep.subr.mxu0 0.0
        %392 = vmatpush1.msra.mxu0 0.0
        %393 = vmatprep.subr.mxu0 0.0
        %394 = vmatpush1.msra.mxu0 0.0
        %395 = vmatprep.subr.mxu0 0.0
        %396 = vmatpush1.msra.mxu0 0.0
        %397 = vmatprep.subr.mxu0 0.0
        %398 = vmatpush1.msra.mxu0 0.0
        %399 = vmatprep.subr.mxu0 0.0
        %400 = vmatpush1.msra.mxu0 0.0
        %401 = vmatprep.subr.mxu0 0.0
        %402 = vmatpush1.msra.mxu0 0.0
        %403 = vmatprep.subr.mxu0 0.0
        %404 = vmatpush1.msra.mxu0 0.0
        %405 = vmatprep.subr.mxu0 0.0
        %406 = vmatpush1.msra.mxu0 0.0
        %407 = vmatprep.subr.mxu0 0.0
        %408 = vmatpush1.msra.mxu0 0.0
        %409 = vmatprep.subr.mxu0 0.0
        %410 = vmatpush1.msra.mxu0 0.0
        %411 = vmatprep.subr.mxu0 0.0
        %412 = vmatpush1.msra.mxu0 0.0
        %413 = vmatprep.subr.mxu0 0.0
        %414 = vmatpush1.msra.mxu0 0.0
        %415 = vmatprep.subr.mxu0 0.0
        %416 = vmatpush1.msra.mxu0 0.0
        %417 = vmatprep.subr.mxu0 0.0
        %418 = vmatpush1.msra.mxu0 0.0
        %419 = vmatprep.subr.mxu0 0.0
        %420 = vmatpush1.msra.mxu0 0.0
        %421 = vmatprep.subr.mxu0 0.0
        %422 = vmatpush1.msra.mxu0 0.0
        %423 = vmatprep.subr.mxu0 0.0
        %424 = vmatpush1.msra.mxu0 0.0
        %425 = vmatprep.subr.mxu0 0.0
        %426 = vmatpush1.msra.mxu0 0.0
        %427 = vmatprep.mubr.f32.mxu0 0.0
        %428 = vmatmul.mubr.f32.gmra.mrb[0].mxu0 %v358
        %v429 = vpop.f32.mrb[0].mxu0
        %v430 = vadd.f32 %v355, %v429
        %v431 = vpop.f32.mrb[0].mxu0
        %432 = vmatprep.mubr.f32.mxu0 0.0
        %433 = vmatmul.mubr.f32.gmra.mrb[0].mxu0 %v361
        %v434 = vpop.f32.mrb[0].mxu0
        %v435 = vadd.f32 %v355, %v434
        %v436 = vpop.f32.mrb[0].mxu0
        %437 = vdwg.mxu0
        %v438 = vmax.f32 %v430, 0.0
        %v439 = vmax.f32 %v435, 0.0
        %v441 = vrot.slane %v438, 1
        %v443 = vmax.f32 %v438, %v441
        %v444 = vrot.slane %v438, 2
        %v446 = vmax.f32 %v443, %v444
        %v448 = vrot.slane %v439, 1
        %v450 = vmax.f32 %v439, %v448
        %v451 = vrot.slane %v439, 2
        %v453 = vmax.f32 %v450, %v451
        %v455 = vrot.slane %v443, 1
        %v458 = vrot.slane %v446, 1
        %v460 = vrot.slane %v443, 2
        %v463 = vrot.slane %v450, 3
        %v466 = vrot.slane %v453, 3
        %v468 = vrot.slane %v450, 4
        %v470 = vrot.slane %v453, 4
        %v472 = vrot.slane %v450, 5
        %v474 = vsel %vm190, %v443, %v446
        %vm475 = vcmask 1041408
        %v476 = vsel %vm475, %v474, %v455
        %vm477 = vcmask 1042432
        %v478 = vsel %vm477, %v476, %v458
        %v479 = vsel %vm236, %v478, %v460
        %vm480 = vcmask 1044480
        %v481 = vsel %vm480, %v479, %v463
        %vm482 = vcmask 1045504
        %v483 = vsel %vm482, %v481, %v466
        %v484 = vsel %vm197, %v483, %v468
        %v485 = vsel %vm190, %v470, %v472
        %v488 = vrot.slane %v484, 7
        %v489 = vrot.slane %v485, 7
        %v490 = vsel %vm190, %v488, %v489
        %v493 = vsel %vm190, 0.0, %v488
        %v494 = vrot.slane %v484, 1
        %v495 = vrot.slane %v485, 1
        %v496 = vsel %vm197, %v494, %v495
        %v498 = vsel %vm190, %v495, 0.0
        %499 = vrot.lane.b32.xlu0 %v484, 8
        %v500 = vpop.permute.xlu0 %499
        %501 = vrot.lane.b32.xlu0 %v485, 8
        %v502 = vpop.permute.xlu0 %501
        %506 = vrot.lane.b32.xlu0 %v496, 16
        %v507 = vpop.permute.xlu0 %506
        %508 = vrot.lane.b32.xlu0 %v498, 16
        %v509 = vpop.permute.xlu0 %508
        %v512 = vsel %vm219, %v493, %v500
        %v513 = vsel %vm219, %v490, %v502
        %v514 = vsel %vm345, %v512, %v507
        %v515 = vsel %vm345, %v513, %v509
        %v516 = vld [vmem:[#allocation2 + $0x28] sm:$0xff]
        %v517 = vld [vmem:[#allocation2 + $0x30] sm:$0xff]
        %v518 = vld [vmem:[#allocation2 + $0x38] sm:$0xff]
        %v519 = vld [vmem:[%s2 + $0x2] sm:$0x1]
        %v520 = vlaneseq
        %v521 = vshrl.u32 %v520, 7
        %v522 = vsub.s32 0, %v521
        %v523 = vrot.slane %v519, %v522
        %v525 = vsel %vm356, %v514, 0
        %v528 = vsel %vm356, %v515, 0
        %530 = vmatprep.subr.mxu0 0.0
        %531 = vmatpush1.msra.mxu0 %v516
        %532 = vmatprep.subr.mxu0 0.0
        %533 = vmatpush1.msra.mxu0 %v517
        %534 = vmatprep.subr.mxu0 0.0
        %535 = vmatpush1.msra.mxu0 %v518
        %536 = vmatprep.subr.mxu0 0.0
        %537 = vmatpush1.msra.mxu0 0.0
        %538 = vmatprep.subr.mxu0 0.0
        %539 = vmatpush1.msra.mxu0 0.0
        %540 = vmatprep.subr.mxu0 0.0
        %541 = vmatpush1.msra.mxu0 0.0
        %542 = vmatprep.subr.mxu0 0.0
        %543 = vmatpush1.msra.mxu0 0.0
        %544 = vmatprep.subr.mxu0 0.0
        %545 = vmatpush1.msra.mxu0 0.0
        %546 = vmatprep.subr.mxu0 0.0
        %547 = vmatpush1.msra.mxu0 0.0
        %548 = vmatprep.subr.mxu0 0.0
        %549 = vmatpush1.msra.mxu0 0.0
        %550 = vmatprep.subr.mxu0 0.0
        %551 = vmatpush1.msra.mxu0 0.0
        %552 = vmatprep.subr.mxu0 0.0
        %553 = vmatpush1.msra.mxu0 0.0
        %554 = vmatprep.subr.mxu0 0.0
        %555 = vmatpush1.msra.mxu0 0.0
        %556 = vmatprep.subr.mxu0 0.0
        %557 = vmatpush1.msra.mxu0 0.0
        %558 = vmatprep.subr.mxu0 0.0
        %559 = vmatpush1.msra.mxu0 0.0
        %560 = vmatprep.subr.mxu0 0.0
        %561 = vmatpush1.msra.mxu0 0.0
        %562 = vmatprep.subr.mxu0 0.0
        %563 = vmatpush1.msra.mxu0 0.0
        %564 = vmatprep.subr.mxu0 0.0
        %565 = vmatpush1.msra.mxu0 0.0
        %566 = vmatprep.subr.mxu0 0.0
        %567 = vmatpush1.msra.mxu0 0.0
        %568 = vmatprep.subr.mxu0 0.0
        %569 = vmatpush1.msra.mxu0 0.0
        %570 = vmatprep.subr.mxu0 0.0
        %571 = vmatpush1.msra.mxu0 0.0
        %572 = vmatprep.subr.mxu0 0.0
        %573 = vmatpush1.msra.mxu0 0.0
        %574 = vmatprep.subr.mxu0 0.0
        %575 = vmatpush1.msra.mxu0 0.0
        %576 = vmatprep.subr.mxu0 0.0
        %577 = vmatpush1.msra.mxu0 0.0
        %578 = vmatprep.subr.mxu0 0.0
        %579 = vmatpush1.msra.mxu0 0.0
        %580 = vmatprep.subr.mxu0 0.0
        %581 = vmatpush1.msra.mxu0 0.0
        %582 = vmatprep.subr.mxu0 0.0
        %583 = vmatpush1.msra.mxu0 0.0
        %584 = vmatprep.subr.mxu0 0.0
        %585 = vmatpush1.msra.mxu0 0.0
        %586 = vmatprep.subr.mxu0 0.0
        %587 = vmatpush1.msra.mxu0 0.0
        %588 = vmatprep.subr.mxu0 0.0
        %589 = vmatpush1.msra.mxu0 0.0
        %590 = vmatprep.subr.mxu0 0.0
        %591 = vmatpush1.msra.mxu0 0.0
        %592 = vmatprep.subr.mxu0 0.0
        %593 = vmatpush1.msra.mxu0 0.0
        %594 = vmatprep.mubr.f32.mxu0 0.0
        %595 = vmatmul.mubr.f32.gmra.mrb[0].mxu0 %v525
        %v596 = vpop.f32.mrb[0].mxu0
        %v597 = vadd.f32 %v523, %v596
        %v598 = vpop.f32.mrb[0].mxu0
        %599 = vmatprep.mubr.f32.mxu0 0.0
        %600 = vmatmul.mubr.f32.gmra.mrb[0].mxu0 %v528
        %v601 = vpop.f32.mrb[0].mxu0
        %v602 = vadd.f32 %v523, %v601
        %v603 = vpop.f32.mrb[0].mxu0
        %604 = vdwg.mxu0
        %v605 = vmax.f32 %v597, 0.0
        %v606 = vmax.f32 %v602, 0.0
        %v609 = vrot.slane %v605, 7
        %v610 = vrot.slane %v606, 7
        %v611 = vsel %vm190, %v609, %v610
        %v614 = vsel %vm190, 0.0, %v609
        %v615 = vrot.slane %v605, 1
        %v616 = vrot.slane %v606, 1
        %v617 = vsel %vm197, %v615, %v616
        %v619 = vsel %vm190, %v616, 0.0
        %620 = vrot.lane.b32.xlu0 %v605, 16
        %v621 = vpop.permute.xlu0 %620
        %622 = vrot.lane.b32.xlu0 %v606, 16
        %v623 = vpop.permute.xlu0 %622
        %627 = vrot.lane.b32.xlu0 %v617, 32
        %v628 = vpop.permute.xlu0 %627
        %629 = vrot.lane.b32.xlu0 %v619, 32
        %v630 = vpop.permute.xlu0 %629
        %v633 = vsel %vm345, %v614, %v621
        %v634 = vsel %vm345, %v611, %v623
        %vm635 = vcmask 261120
        %v636 = vsel %vm635, %v633, %v628
        %v637 = vsel %vm635, %v634, %v630
        %v638 = vld [vmem:[#allocation2 + $0x40] sm:$0xff]
        %v639 = vld [vmem:[#allocation2 + $0x48] sm:$0xff]
        %v640 = vld [vmem:[#allocation2 + $0x50] sm:$0xff]
        %v641 = vld [vmem:[#allocation2 + $0x58] sm:$0xff]
        %v642 = vld [vmem:[#allocation2 + $0x60] sm:$0xff]
        %v643 = vld [vmem:[#allocation2 + $0x68] sm:$0xff]
        %v644 = vld [vmem:[%s2 + $0x3] sm:$0x1]
        %v645 = vlaneseq
        %v646 = vshrl.u32 %v645, 7
        %v647 = vsub.s32 0, %v646
        %v648 = vrot.slane %v644, %v647
        %vm649 = vcmask 392192
        %v651 = vsel %vm649, %v636, 0
        %v654 = vsel %vm649, %v637, 0
        %656 = vmatprep.subr.mxu0 0.0
        %657 = vmatpush1.msra.mxu0 %v638
        %658 = vmatprep.subr.mxu0 0.0
        %659 = vmatpush1.msra.mxu0 %v639
        %660 = vmatprep.subr.mxu0 0.0
        %661 = vmatpush1.msra.mxu0 %v640
        %662 = vmatprep.subr.mxu0 0.0
        %663 = vmatpush1.msra.mxu0 %v641
        %664 = vmatprep.subr.mxu0 0.0
        %665 = vmatpush1.msra.mxu0 %v642
        %666 = vmatprep.subr.mxu0 0.0
        %667 = vmatpush1.msra.mxu0 %v643
        %668 = vmatprep.subr.mxu0 0.0
        %669 = vmatpush1.msra.mxu0 0.0
        %670 = vmatprep.subr.mxu0 0.0
        %671 = vmatpush1.msra.mxu0 0.0
        %672 = vmatprep.subr.mxu0 0.0
        %673 = vmatpush1.msra.mxu0 0.0
        %674 = vmatprep.subr.mxu0 0.0
        %675 = vmatpush1.msra.mxu0 0.0
        %676 = vmatprep.subr.mxu0 0.0
        %677 = vmatpush1.msra.mxu0 0.0
        %678 = vmatprep.subr.mxu0 0.0
        %679 = vmatpush1.msra.mxu0 0.0
        %680 = vmatprep.subr.mxu0 0.0
        %681 = vmatpush1.msra.mxu0 0.0
        %682 = vmatprep.subr.mxu0 0.0
        %683 = vmatpush1.msra.mxu0 0.0
        %684 = vmatprep.subr.mxu0 0.0
        %685 = vmatpush1.msra.mxu0 0.0
        %686 = vmatprep.subr.mxu0 0.0
        %687 = vmatpush1.msra.mxu0 0.0
        %688 = vmatprep.subr.mxu0 0.0
        %689 = vmatpush1.msra.mxu0 0.0
        %690 = vmatprep.subr.mxu0 0.0
        %691 = vmatpush1.msra.mxu0 0.0
        %692 = vmatprep.subr.mxu0 0.0
        %693 = vmatpush1.msra.mxu0 0.0
        %694 = vmatprep.subr.mxu0 0.0
        %695 = vmatpush1.msra.mxu0 0.0
        %696 = vmatprep.subr.mxu0 0.0
        %697 = vmatpush1.msra.mxu0 0.0
        %698 = vmatprep.subr.mxu0 0.0
        %699 = vmatpush1.msra.mxu0 0.0
        %700 = vmatprep.subr.mxu0 0.0
        %701 = vmatpush1.msra.mxu0 0.0
        %702 = vmatprep.subr.mxu0 0.0
        %703 = vmatpush1.msra.mxu0 0.0
        %704 = vmatprep.subr.mxu0 0.0
        %705 = vmatpush1.msra.mxu0 0.0
        %706 = vmatprep.subr.mxu0 0.0
        %707 = vmatpush1.msra.mxu0 0.0
        %708 = vmatprep.subr.mxu0 0.0
        %709 = vmatpush1.msra.mxu0 0.0
        %710 = vmatprep.subr.mxu0 0.0
        %711 = vmatpush1.msra.mxu0 0.0
        %712 = vmatprep.subr.mxu0 0.0
        %713 = vmatpush1.msra.mxu0 0.0
        %714 = vmatprep.subr.mxu0 0.0
        %715 = vmatpush1.msra.mxu0 0.0
        %716 = vmatprep.subr.mxu0 0.0
        %717 = vmatpush1.msra.mxu0 0.0
        %718 = vmatprep.subr.mxu0 0.0
        %719 = vmatpush1.msra.mxu0 0.0
        %720 = vmatprep.mubr.f32.mxu0 0.0
        %721 = vmatmul.mubr.f32.gmra.mrb[0].mxu0 %v651
        %v722 = vpop.f32.mrb[0].mxu0
        %v723 = vadd.f32 %v648, %v722
        %v724 = vpop.f32.mrb[0].mxu0
        %725 = vmatprep.mubr.f32.mxu0 0.0
        %726 = vmatmul.mubr.f32.gmra.mrb[0].mxu0 %v654
        %v727 = vpop.f32.mrb[0].mxu0
        %v728 = vadd.f32 %v648, %v727
        %v729 = vpop.f32.mrb[0].mxu0
        %730 = vdwg.mxu0
        %v731 = vmax.f32 %v723, 0.0
        %v732 = vmax.f32 %v728, 0.0
        %v734 = vrot.slane %v731, 1
        %v736 = vmax.f32 %v731, %v734
        %v738 = vrot.slane %v732, 1
        %v740 = vmax.f32 %v731, %v738
        %v741 = vmax.f32 %v732, %v738
        %v743 = vrot.slane %v736, 1
        %v746 = vrot.slane %v740, 1
        %v749 = vrot.slane %v741, 1
        %v751 = vsel %vm475, %v736, %v736
        %v752 = vsel %vm477, %v751, %v736
        %v753 = vsel %vm236, %v752, %v743
        %v754 = vsel %vm480, %v753, %v743
        %v755 = vsel %vm482, %v754, %v746
        %v756 = vsel %vm197, %v755, %v749
        %v758 = vrot.slane %v756, 7
        %v760 = vsel %vm190, 0.0, %v758
        %v761 = vrot.slane %v756, 1
        %v763 = vsel %vm197, %v761, 0.0
        %764 = vrot.lane.b32.xlu0 %v756, 16
        %v765 = vpop.permute.xlu0 %764
        %768 = vrot.lane.b32.xlu0 %v763, 32
        %v769 = vpop.permute.xlu0 %768
        %v771 = vsel %vm345, %v760, %v765
        %v772 = vsel %vm635, %v771, %v769
        %v773 = vld [vmem:[#allocation2 + $0x70] sm:$0xff]
        %v774 = vld [vmem:[#allocation2 + $0x78] sm:$0xff]
        %v775 = vld [vmem:[#allocation2 + $0x80] sm:$0xff]
        %v776 = vld [vmem:[#allocation2 + $0x88] sm:$0xff]
        %v777 = vld [vmem:[#allocation2 + $0x90] sm:$0xff]
        %v778 = vld [vmem:[#allocation2 + $0x98] sm:$0xff]
        %v779 = vld [vmem:[%s2 + $0x4] sm:$0x1]
        %v780 = vlaneseq
        %v781 = vshrl.u32 %v780, 7
        %v782 = vsub.s32 0, %v781
        %v783 = vrot.slane %v779, %v782
        %v785 = vsel %vm649, %v772, 0
        %787 = vmatprep.subr.mxu0 0.0
        %788 = vmatpush1.msra.mxu0 %v773
        %789 = vmatprep.subr.mxu0 0.0
        %790 = vmatpush1.msra.mxu0 %v774
        %791 = vmatprep.subr.mxu0 0.0
        %792 = vmatpush1.msra.mxu0 %v775
        %793 = vmatprep.subr.mxu0 0.0
        %794 = vmatpush1.msra.mxu0 %v776
        %795 = vmatprep.subr.mxu0 0.0
        %796 = vmatpush1.msra.mxu0 %v777
        %797 = vmatprep.subr.mxu0 0.0
        %798 = vmatpush1.msra.mxu0 %v778
        %799 = vmatprep.subr.mxu0 0.0
        %800 = vmatpush1.msra.mxu0 0.0
        %801 = vmatprep.subr.mxu0 0.0
        %802 = vmatpush1.msra.mxu0 0.0
        %803 = vmatprep.subr.mxu0 0.0
        %804 = vmatpush1.msra.mxu0 0.0
        %805 = vmatprep.subr.mxu0 0.0
        %806 = vmatpush1.msra.mxu0 0.0
        %807 = vmatprep.subr.mxu0 0.0
        %808 = vmatpush1.msra.mxu0 0.0
        %809 = vmatprep.subr.mxu0 0.0
        %810 = vmatpush1.msra.mxu0 0.0
        %811 = vmatprep.subr.mxu0 0.0
        %812 = vmatpush1.msra.mxu0 0.0
        %813 = vmatprep.subr.mxu0 0.0
        %814 = vmatpush1.msra.mxu0 0.0
        %815 = vmatprep.subr.mxu0 0.0
        %816 = vmatpush1.msra.mxu0 0.0
        %817 = vmatprep.subr.mxu0 0.0
        %818 = vmatpush1.msra.mxu0 0.0
        %819 = vmatprep.subr.mxu0 0.0
        %820 = vmatpush1.msra.mxu0 0.0
        %821 = vmatprep.subr.mxu0 0.0
        %822 = vmatpush1.msra.mxu0 0.0
        %823 = vmatprep.subr.mxu0 0.0
        %824 = vmatpush1.msra.mxu0 0.0
        %825 = vmatprep.subr.mxu0 0.0
        %826 = vmatpush1.msra.mxu0 0.0
        %827 = vmatprep.subr.mxu0 0.0
        %828 = vmatpush1.msra.mxu0 0.0
        %829 = vmatprep.subr.mxu0 0.0
        %830 = vmatpush1.msra.mxu0 0.0
        %831 = vmatprep.subr.mxu0 0.0
        %832 = vmatpush1.msra.mxu0 0.0
        %833 = vmatprep.subr.mxu0 0.0
        %834 = vmatpush1.msra.mxu0 0.0
        %835 = vmatprep.subr.mxu0 0.0
        %836 = vmatpush1.msra.mxu0 0.0
        %837 = vmatprep.subr.mxu0 0.0
        %838 = vmatpush1.msra.mxu0 0.0
        %839 = vmatprep.subr.mxu0 0.0
        %840 = vmatpush1.msra.mxu0 0.0
        %841 = vmatprep.subr.mxu0 0.0
        %842 = vmatpush1.msra.mxu0 0.0
        %843 = vmatprep.subr.mxu0 0.0
        %844 = vmatpush1.msra.mxu0 0.0
        %845 = vmatprep.subr.mxu0 0.0
        %846 = vmatpush1.msra.mxu0 0.0
        %847 = vmatprep.subr.mxu0 0.0
        %848 = vmatpush1.msra.mxu0 0.0
        %849 = vmatprep.subr.mxu0 0.0
        %850 = vmatpush1.msra.mxu0 0.0
        %851 = vmatprep.mubr.f32.mxu0 0.0
        %852 = vmatmul.mubr.f32.gmra.mrb[0].mxu0 %v785
        %v853 = vpop.f32.mrb[0].mxu0
        %v854 = vadd.f32 %v783, %v853
        %v855 = vpop.f32.mrb[0].mxu0
        %856 = vdwg.mxu0
        %v857 = vmax.f32 %v854, 0.0
        %v859 = vrot.slane %v857, 7
        %v861 = vsel %vm190, 0.0, %v859
        %v862 = vrot.slane %v857, 1
        %v864 = vsel %vm197, %v862, 0.0
        %865 = vrot.lane.b32.xlu0 %v857, 32
        %v866 = vpop.permute.xlu0 %865
        %869 = vrot.lane.b32.xlu0 %v864, 64
        %v870 = vpop.permute.xlu0 %869
        %v872 = vsel %vm635, %v861, %v866
        %vm873 = vcmask 523264
        %v874 = vsel %vm873, %v872, %v870
        %v875 = vld [vmem:[#allocation2 + $0xa0] sm:$0xff]
        %v876 = vld [vmem:[#allocation2 + $0xa8] sm:$0xff]
        %v877 = vld [vmem:[#allocation2 + $0xb0] sm:$0xff]
        %v878 = vld [vmem:[#allocation2 + $0xb8] sm:$0xff]
        %v879 = vld [vmem:[#allocation2 + $0xc0] sm:$0xff]
        %v880 = vld [vmem:[#allocation2 + $0xc8] sm:$0xff]
        %v881 = vld [vmem:[#allocation2 + $0xd0] sm:$0xff]
        %v882 = vld [vmem:[#allocation2 + $0xd8] sm:$0xff]
        %v883 = vld [vmem:[#allocation2 + $0xe0] sm:$0xff]
        %v884 = vld [vmem:[#allocation2 + $0xe8] sm:$0xff]
        %v885 = vld [vmem:[#allocation2 + $0xf0] sm:$0xff]
        %v886 = vld [vmem:[#allocation2 + $0xf8] sm:$0xff]
        %v887 = vld [vmem:[%s2 + $0x5] sm:$0x1]
        %v888 = vlaneseq
        %v889 = vshrl.u32 %v888, 7
        %v890 = vsub.s32 0, %v889
        %v891 = vrot.slane %v887, %v890
        %vm892 = vcmask 785408
        %v894 = vsel %vm892, %v874, 0
        %896 = vmatprep.subr.mxu0 0.0
        %897 = vmatpush1.msra.mxu0 %v875
        %898 = vmatprep.subr.mxu0 0.0
        %899 = vmatpush1.msra.mxu0 %v876
        %900 = vmatprep.subr.mxu0 0.0
        %901 = vmatpush1.msra.mxu0 %v877
        %902 = vmatprep.subr.mxu0 0.0
        %903 = vmatpush1.msra.mxu0 %v878
        %904 = vmatprep.subr.mxu0 0.0
        %905 = vmatpush1.msra.mxu0 %v879
        %906 = vmatprep.subr.mxu0 0.0
        %907 = vmatpush1.msra.mxu0 %v880
        %908 = vmatprep.subr.mxu0 0.0
        %909 = vmatpush1.msra.mxu0 %v881
        %910 = vmatprep.subr.mxu0 0.0
        %911 = vmatpush1.msra.mxu0 %v882
        %912 = vmatprep.subr.mxu0 0.0
        %913 = vmatpush1.msra.mxu0 %v883
        %914 = vmatprep.subr.mxu0 0.0
        %915 = vmatpush1.msra.mxu0 %v884
        %916 = vmatprep.subr.mxu0 0.0
        %917 = vmatpush1.msra.mxu0 %v885
        %918 = vmatprep.subr.mxu0 0.0
        %919 = vmatpush1.msra.mxu0 %v886
        %920 = vmatprep.subr.mxu0 0.0
        %921 = vmatpush1.msra.mxu0 0.0
        %922 = vmatprep.subr.mxu0 0.0
        %923 = vmatpush1.msra.mxu0 0.0
        %924 = vmatprep.subr.mxu0 0.0
        %925 = vmatpush1.msra.mxu0 0.0
        %926 = vmatprep.subr.mxu0 0.0
        %927 = vmatpush1.msra.mxu0 0.0
        %928 = vmatprep.subr.mxu0 0.0
        %929 = vmatpush1.msra.mxu0 0.0
        %930 = vmatprep.subr.mxu0 0.0
        %931 = vmatpush1.msra.mxu0 0.0
        %932 = vmatprep.subr.mxu0 0.0
        %933 = vmatpush1.msra.mxu0 0.0
        %934 = vmatprep.subr.mxu0 0.0
        %935 = vmatpush1.msra.mxu0 0.0
        %936 = vmatprep.subr.mxu0 0.0
        %937 = vmatpush1.msra.mxu0 0.0
        %938 = vmatprep.subr.mxu0 0.0
        %939 = vmatpush1.msra.mxu0 0.0
        %940 = vmatprep.subr.mxu0 0.0
        %941 = vmatpush1.msra.mxu0 0.0
        %942 = vmatprep.subr.mxu0 0.0
        %943 = vmatpush1.msra.mxu0 0.0
        %944 = vmatprep.subr.mxu0 0.0
        %945 = vmatpush1.msra.mxu0 0.0
        %946 = vmatprep.subr.mxu0 0.0
        %947 = vmatpush1.msra.mxu0 0.0
        %948 = vmatprep.subr.mxu0 0.0
        %949 = vmatpush1.msra.mxu0 0.0
        %950 = vmatprep.subr.mxu0 0.0
        %951 = vmatpush1.msra.mxu0 0.0
        %952 = vmatprep.subr.mxu0 0.0
        %953 = vmatpush1.msra.mxu0 0.0
        %954 = vmatprep.subr.mxu0 0.0
        %955 = vmatpush1.msra.mxu0 0.0
        %956 = vmatprep.subr.mxu0 0.0
        %957 = vmatpush1.msra.mxu0 0.0
        %958 = vmatprep.subr.mxu0 0.0
        %959 = vmatpush1.msra.mxu0 0.0
        %960 = vmatprep.mubr.f32.mxu0 0.0
        %961 = vmatmul.mubr.f32.gmra.mrb[0].mxu0 %v894
        %v962 = vpop.f32.mrb[0].mxu0
        %v963 = vadd.f32 %v891, %v962
        %v964 = vpop.f32.mrb[0].mxu0
        %965 = vdwg.mxu0
        %v966 = vmax.f32 %v963, 0.0
        %v968 = vrot.slane %v966, 1
        %v970 = vmax.f32 %v966, %v968
        %v972 = vrot.slane %v970, 1
        %v974 = vsel %vm475, %v970, %v970
        %v975 = vsel %vm477, %v974, %v972
        %v976 = vsel %vm236, %v975, %v972
        %v977 = vsel %vm480, %v976, %v972
        %v979 = vrot.slane %v977, 7
        %v981 = vsel %vm190, 0.0, %v979
        %v982 = vrot.slane %v977, 1
        %v984 = vsel %vm480, %v982, 0.0
        %985 = vrot.lane.b32.xlu0 %v977, 32
        %v986 = vpop.permute.xlu0 %985
        %989 = vrot.lane.b32.xlu0 %v984, 64
        %v990 = vpop.permute.xlu0 %989
        %v992 = vsel %vm635, %v981, %v986
        %v993 = vsel %vm873, %v992, %v990
        %v994 = vld [vmem:[#allocation2 + $0x100] sm:$0xff]
        %v995 = vld [vmem:[#allocation2 + $0x108] sm:$0xff]
        %v996 = vld [vmem:[#allocation2 + $0x110] sm:$0xff]
        %v997 = vld [vmem:[#allocation2 + $0x118] sm:$0xff]
        %v998 = vld [vmem:[#allocation2 + $0x120] sm:$0xff]
        %v999 = vld [vmem:[#allocation2 + $0x128] sm:$0xff]
        %v1000 = vld [vmem:[#allocation2 + $0x130] sm:$0xff]
        %v1001 = vld [vmem:[#allocation2 + $0x138] sm:$0xff]
        %v1002 = vld [vmem:[#allocation2 + $0x140] sm:$0xff]
        %v1003 = vld [vmem:[#allocation2 + $0x148] sm:$0xff]
        %v1004 = vld [vmem:[#allocation2 + $0x150] sm:$0xff]
        %v1005 = vld [vmem:[#allocation2 + $0x158] sm:$0xff]
        %v1006 = vld [vmem:[%s2 + $0x6] sm:$0x1]
        %v1007 = vlaneseq
        %v1008 = vshrl.u32 %v1007, 7
        %v1009 = vsub.s32 0, %v1008
        %v1010 = vrot.slane %v1006, %v1009
        %v1012 = vsel %vm892, %v993, 0
        %1014 = vmatprep.subr.mxu0 0.0
        %1015 = vmatpush1.msra.mxu0 %v994
        %1016 = vmatprep.subr.mxu0 0.0
        %1017 = vmatpush1.msra.mxu0 %v995
        %1018 = vmatprep.subr.mxu0 0.0
        %1019 = vmatpush1.msra.mxu0 %v996
        %1020 = vmatprep.subr.mxu0 0.0
        %1021 = vmatpush1.msra.mxu0 %v997
        %1022 = vmatprep.subr.mxu0 0.0
        %1023 = vmatpush1.msra.mxu0 %v998
        %1024 = vmatprep.subr.mxu0 0.0
        %1025 = vmatpush1.msra.mxu0 %v999
        %1026 = vmatprep.subr.mxu0 0.0
        %1027 = vmatpush1.msra.mxu0 %v1000
        %1028 = vmatprep.subr.mxu0 0.0
        %1029 = vmatpush1.msra.mxu0 %v1001
        %1030 = vmatprep.subr.mxu0 0.0
        %1031 = vmatpush1.msra.mxu0 %v1002
        %1032 = vmatprep.subr.mxu0 0.0
        %1033 = vmatpush1.msra.mxu0 %v1003
        %1034 = vmatprep.subr.mxu0 0.0
        %1035 = vmatpush1.msra.mxu0 %v1004
        %1036 = vmatprep.subr.mxu0 0.0
        %1037 = vmatpush1.msra.mxu0 %v1005
        %1038 = vmatprep.subr.mxu0 0.0
        %1039 = vmatpush1.msra.mxu0 0.0
        %1040 = vmatprep.subr.mxu0 0.0
        %1041 = vmatpush1.msra.mxu0 0.0
        %1042 = vmatprep.subr.mxu0 0.0
        %1043 = vmatpush1.msra.mxu0 0.0
        %1044 = vmatprep.subr.mxu0 0.0
        %1045 = vmatpush1.msra.mxu0 0.0
        %1046 = vmatprep.subr.mxu0 0.0
        %1047 = vmatpush1.msra.mxu0 0.0
        %1048 = vmatprep.subr.mxu0 0.0
        %1049 = vmatpush1.msra.mxu0 0.0
        %1050 = vmatprep.subr.mxu0 0.0
        %1051 = vmatpush1.msra.mxu0 0.0
        %1052 = vmatprep.subr.mxu0 0.0
        %1053 = vmatpush1.msra.mxu0 0.0
        %1054 = vmatprep.subr.mxu0 0.0
        %1055 = vmatpush1.msra.mxu0 0.0
        %1056 = vmatprep.subr.mxu0 0.0
        %1057 = vmatpush1.msra.mxu0 0.0
        %1058 = vmatprep.subr.mxu0 0.0
        %1059 = vmatpush1.msra.mxu0 0.0
        %1060 = vmatprep.subr.mxu0 0.0
        %1061 = vmatpush1.msra.mxu0 0.0
        %1062 = vmatprep.subr.mxu0 0.0
        %1063 = vmatpush1.msra.mxu0 0.0
        %1064 = vmatprep.subr.mxu0 0.0
        %1065 = vmatpush1.msra.mxu0 0.0
        %1066 = vmatprep.subr.mxu0 0.0
        %1067 = vmatpush1.msra.mxu0 0.0
        %1068 = vmatprep.subr.mxu0 0.0
        %1069 = vmatpush1.msra.mxu0 0.0
        %1070 = vmatprep.subr.mxu0 0.0
        %1071 = vmatpush1.msra.mxu0 0.0
        %1072 = vmatprep.subr.mxu0 0.0
        %1073 = vmatpush1.msra.mxu0 0.0
        %1074 = vmatprep.subr.mxu0 0.0
        %1075 = vmatpush1.msra.mxu0 0.0
        %1076 = vmatprep.subr.mxu0 0.0
        %1077 = vmatpush1.msra.mxu0 0.0
        %1078 = vmatprep.mubr.f32.mxu0 0.0
        %1079 = vmatmul.mubr.f32.gmra.mrb[0].mxu0 %v1012
        %v1080 = vpop.f32.mrb[0].mxu0
        %v1081 = vadd.f32 %v1010, %v1080
        %v1082 = vpop.f32.mrb[0].mxu0
        %1083 = vdwg.mxu0
        %v1084 = vmax.f32 %v1081, 0.0
        %v1086 = vrot.slane %v1084, 7
        %v1088 = vsel %vm190, 0.0, %v1086
        %v1089 = vrot.slane %v1084, 1
        %v1091 = vsel %vm480, %v1089, 0.0
        %1092 = vrot.lane.b32.xlu0 %v1084, 64
        %v1093 = vpop.permute.xlu0 %1092
        %v1095 = vsel %vm873, %v1088, %v1093
        %v1096 = vld [vmem:[#allocation2 + $0x160] sm:$0xff]
        %v1097 = vld [vmem:[#allocation2 + $0x168] sm:$0xff]
        %v1098 = vld [vmem:[#allocation2 + $0x170] sm:$0xff]
        %v1099 = vld [vmem:[#allocation2 + $0x178] sm:$0xff]
        %v1100 = vld [vmem:[#allocation2 + $0x180] sm:$0xff]
        %v1101 = vld [vmem:[#allocation2 + $0x188] sm:$0xff]
        %v1102 = vld [vmem:[#allocation2 + $0x190] sm:$0xff]
        %v1103 = vld [vmem:[#allocation2 + $0x198] sm:$0xff]
        %v1104 = vld [vmem:[#allocation2 + $0x1a0] sm:$0xff]
        %v1105 = vld [vmem:[#allocation2 + $0x1a8] sm:$0xff]
        %v1106 = vld [vmem:[#allocation2 + $0x1b0] sm:$0xff]
        %v1107 = vld [vmem:[#allocation2 + $0x1b8] sm:$0xff]
        %v1108 = vld [vmem:[#allocation2 + $0x1c0] sm:$0xff]
        %v1109 = vld [vmem:[#allocation2 + $0x1c8] sm:$0xff]
        %v1110 = vld [vmem:[#allocation2 + $0x1d0] sm:$0xff]
        %v1111 = vld [vmem:[#allocation2 + $0x1d8] sm:$0xff]
        %v1112 = vld [vmem:[#allocation2 + $0x1e0] sm:$0xff]
        %v1113 = vld [vmem:[#allocation2 + $0x1e8] sm:$0xff]
        %v1114 = vld [vmem:[#allocation2 + $0x1f0] sm:$0xff]
        %v1115 = vld [vmem:[#allocation2 + $0x1f8] sm:$0xff]
        %v1116 = vld [vmem:[#allocation2 + $0x200] sm:$0xff]
        %v1117 = vld [vmem:[#allocation2 + $0x208] sm:$0xff]
        %v1118 = vld [vmem:[#allocation2 + $0x210] sm:$0xff]
        %v1119 = vld [vmem:[#allocation2 + $0x218] sm:$0xff]
        %v1120 = vld [vmem:[%s2 + $0x7] sm:$0x1]
        %v1121 = vlaneseq
        %v1122 = vshrl.u32 %v1121, 7
        %v1123 = vsub.s32 0, %v1122
        %v1124 = vrot.slane %v1120, %v1123
        %v1126 = vsel %vm873, %v1091, 0
        %1128 = vmatprep.subr.mxu0 0.0
        %1129 = vmatpush1.msra.mxu0 %v1096
        %1130 = vmatprep.subr.mxu0 0.0
        %1131 = vmatpush1.msra.mxu0 %v1097
        %1132 = vmatprep.subr.mxu0 0.0
        %1133 = vmatpush1.msra.mxu0 %v1098
        %1134 = vmatprep.subr.mxu0 0.0
        %1135 = vmatpush1.msra.mxu0 %v1099
        %1136 = vmatprep.subr.mxu0 0.0
        %1137 = vmatpush1.msra.mxu0 %v1100
        %1138 = vmatprep.subr.mxu0 0.0
        %1139 = vmatpush1.msra.mxu0 %v1101
        %1140 = vmatprep.subr.mxu0 0.0
        %1141 = vmatpush1.msra.mxu0 %v1102
        %1142 = vmatprep.subr.mxu0 0.0
        %1143 = vmatpush1.msra.mxu0 %v1103
        %1144 = vmatprep.subr.mxu0 0.0
        %1145 = vmatpush1.msra.mxu0 %v1104
        %1146 = vmatprep.subr.mxu0 0.0
        %1147 = vmatpush1.msra.mxu0 %v1105
        %1148 = vmatprep.subr.mxu0 0.0
        %1149 = vmatpush1.msra.mxu0 %v1106
        %1150 = vmatprep.subr.mxu0 0.0
        %1151 = vmatpush1.msra.mxu0 %v1107
        %1152 = vmatprep.subr.mxu0 0.0
        %1153 = vmatpush1.msra.mxu0 %v1108
        %1154 = vmatprep.subr.mxu0 0.0
        %1155 = vmatpush1.msra.mxu0 %v1109
        %1156 = vmatprep.subr.mxu0 0.0
        %1157 = vmatpush1.msra.mxu0 %v1110
        %1158 = vmatprep.subr.mxu0 0.0
        %1159 = vmatpush1.msra.mxu0 %v1111
        %1160 = vmatprep.subr.mxu0 0.0
        %1161 = vmatpush1.msra.mxu0 %v1112
        %1162 = vmatprep.subr.mxu0 0.0
        %1163 = vmatpush1.msra.mxu0 %v1113
        %1164 = vmatprep.subr.mxu0 0.0
        %1165 = vmatpush1.msra.mxu0 %v1114
        %1166 = vmatprep.subr.mxu0 0.0
        %1167 = vmatpush1.msra.mxu0 %v1115
        %1168 = vmatprep.subr.mxu0 0.0
        %1169 = vmatpush1.msra.mxu0 %v1116
        %1170 = vmatprep.subr.mxu0 0.0
        %1171 = vmatpush1.msra.mxu0 %v1117
        %1172 = vmatprep.subr.mxu0 0.0
        %1173 = vmatpush1.msra.mxu0 %v1118
        %1174 = vmatprep.subr.mxu0 0.0
        %1175 = vmatpush1.msra.mxu0 %v1119
        %1176 = vmatprep.subr.mxu0 0.0
        %1177 = vmatpush1.msra.mxu0 0.0
        %1178 = vmatprep.subr.mxu0 0.0
        %1179 = vmatpush1.msra.mxu0 0.0
        %1180 = vmatprep.subr.mxu0 0.0
        %1181 = vmatpush1.msra.mxu0 0.0
        %1182 = vmatprep.subr.mxu0 0.0
        %1183 = vmatpush1.msra.mxu0 0.0
        %1184 = vmatprep.subr.mxu0 0.0
        %1185 = vmatpush1.msra.mxu0 0.0
        %1186 = vmatprep.subr.mxu0 0.0
        %1187 = vmatpush1.msra.mxu0 0.0
        %1188 = vmatprep.subr.mxu0 0.0
        %1189 = vmatpush1.msra.mxu0 0.0
        %1190 = vmatprep.subr.mxu0 0.0
        %1191 = vmatpush1.msra.mxu0 0.0
        %1192 = vmatprep.mubr.f32.mxu0 %v1126
        %1193 = vmatmul.mubr.f32.gmra.mrb[0].mxu0 %v1095
        %v1194 = vpop.f32.mrb[0].mxu0
        %v1195 = vadd.f32 %v1124, %v1194
        %v1196 = vpop.f32.mrb[0].mxu0
        %1197 = vdwg.mxu0
        %v1198 = vmax.f32 %v1195, 0.0
        %v1199 = vmul.f32 %v1198, 0.2857143
        %v1200 = vmul.f32 %v1198, 0.71428573
        %v1202 = vrot.slane %v1200, 1
        %v1204 = vadd.f32 %v1199, %v1202
        %v1205 = vmul.f32 %v1198, 0.5714286
        %v1206 = vmul.f32 %v1198, 0.42857143
        %v1208 = vrot.slane %v1206, 1
        %v1210 = vadd.f32 %v1205, %v1208
        %v1211 = vmul.f32 %v1198, 0.85714287
        %v1212 = vmul.f32 %v1198, 0.14285715
        %v1214 = vrot.slane %v1212, 1
        %v1216 = vadd.f32 %v1211, %v1214
        %v1218 = vrot.slane %v1211, 1
        %v1220 = vadd.f32 %v1212, %v1218
        %v1222 = vrot.slane %v1205, 1
        %v1224 = vadd.f32 %v1206, %v1222
        %v1226 = vrot.slane %v1199, 1
        %v1228 = vadd.f32 %v1200, %v1226
        %v1230 = vrot.slane %v1204, 7
        %v1233 = vrot.slane %v1210, 7
        %v1236 = vrot.slane %v1216, 7
        %v1239 = vrot.slane %v1220, 6
        %v1242 = vrot.slane %v1224, 6
        %v1245 = vrot.slane %v1228, 6
        %v1248 = vrot.slane %v1198, 6
        %v1250 = vsel %vm190, %v1198, %v1230
        %v1251 = vsel %vm475, %v1250, %v1233
        %v1252 = vsel %vm477, %v1251, %v1236
        %v1253 = vsel %vm236, %v1252, %v1239
        %v1254 = vsel %vm480, %v1253, %v1242
        %v1255 = vsel %vm482, %v1254, %v1245
        %v1256 = vsel %vm197, %v1255, %v1248
        %1258 = vrot.lane.b32.xlu0 %v1256, 32
        %v1259 = vpop.permute.xlu0 %1258
        %v1261 = vsel %vm635, %v966, %v1259
        %v1263 = vrot.slane %v1261, 7
        %v1265 = vsel %vm190, 0.0, %v1263
        %v1266 = vrot.slane %v1261, 1
        %v1268 = vsel %vm197, %v1266, 0.0
        %1269 = vrot.lane.b32.xlu0 %v1261, 96
        %v1270 = vpop.permute.xlu0 %1269
        %1273 = vrot.lane.b32.xlu0 %v1268, 64
        %v1274 = vpop.permute.xlu0 %1273
        %v1276 = vsel %vm892, %v1265, %v1270
        %v1277 = vsel %vm873, %v1270, %v1274
        %v1278 = vld [vmem:[#allocation2 + $0x220] sm:$0xff]
        %v1279 = vld [vmem:[#allocation2 + $0x228] sm:$0xff]
        %v1280 = vld [vmem:[#allocation2 + $0x230] sm:$0xff]
        %v1281 = vld [vmem:[#allocation2 + $0x238] sm:$0xff]
        %v1282 = vld [vmem:[#allocation2 + $0x240] sm:$0xff]
        %v1283 = vld [vmem:[#allocation2 + $0x248] sm:$0xff]
        %v1284 = vld [vmem:[#allocation2 + $0x250] sm:$0xff]
        %v1285 = vld [vmem:[#allocation2 + $0x258] sm:$0xff]
        %v1286 = vld [vmem:[#allocation2 + $0x260] sm:$0xff]
        %v1287 = vld [vmem:[#allocation2 + $0x268] sm:$0xff]
        %v1288 = vld [vmem:[#allocation2 + $0x270] sm:$0xff]
        %v1289 = vld [vmem:[#allocation2 + $0x278] sm:$0xff]
        %v1290 = vld [vmem:[#allocation2 + $0x280] sm:$0xff]
        %v1291 = vld [vmem:[#allocation2 + $0x288] sm:$0xff]
        %v1292 = vld [vmem:[#allocation2 + $0x290] sm:$0xff]
        %v1293 = vld [vmem:[#allocation2 + $0x298] sm:$0xff]
        %v1294 = vld [vmem:[#allocation2 + $0x2a0] sm:$0xff]
        %v1295 = vld [vmem:[#allocation2 + $0x2a8] sm:$0xff]
        %v1296 = vld [vmem:[#allocation2 + $0x2b0] sm:$0xff]
        %v1297 = vld [vmem:[#allocation2 + $0x2b8] sm:$0xff]
        %v1298 = vld [vmem:[#allocation2 + $0x2c0] sm:$0xff]
        %v1299 = vld [vmem:[#allocation2 + $0x2c8] sm:$0xff]
        %v1300 = vld [vmem:[#allocation2 + $0x2d0] sm:$0xff]
        %v1301 = vld [vmem:[#allocation2 + $0x2d8] sm:$0xff]
        %v1302 = vld [vmem:[#allocation2 + $0x2e0] sm:$0xff]
        %v1303 = vld [vmem:[#allocation2 + $0x2e8] sm:$0xff]
        %v1304 = vld [vmem:[#allocation2 + $0x2f0] sm:$0xff]
        %v1305 = vld [vmem:[#allocation2 + $0x2f8] sm:$0xff]
        %v1306 = vld [vmem:[#allocation2 + $0x300] sm:$0xff]
        %v1307 = vld [vmem:[#allocation2 + $0x308] sm:$0xff]
        %v1308 = vld [vmem:[#allocation2 + $0x310] sm:$0xff]
        %v1309 = vld [vmem:[#allocation2 + $0x318] sm:$0xff]
        %v1310 = vld [vmem:[#allocation2 + $0x320] sm:$0xff]
        %v1311 = vld [vmem:[#allocation2 + $0x328] sm:$0xff]
        %v1312 = vld [vmem:[#allocation2 + $0x330] sm:$0xff]
        %v1313 = vld [vmem:[#allocation2 + $0x338] sm:$0xff]
        %v1314 = vld [vmem:[%s2 + $0x8] sm:$0x1]
        %v1315 = vlaneseq
        %v1316 = vshrl.u32 %v1315, 7
        %v1317 = vsub.s32 0, %v1316
        %v1318 = vrot.slane %v1314, %v1317
        %v1319 = vsel %vm635, %v1274, 0
        %1321 = vmatprep.subr.mxu0 0.0
        %1322 = vmatpush1.msra.mxu0 %v1278
        %1323 = vmatprep.subr.mxu0 0.0
        %1324 = vmatpush1.msra.mxu0 %v1279
        %1325 = vmatprep.subr.mxu0 0.0
        %1326 = vmatpush1.msra.mxu0 %v1280
        %1327 = vmatprep.subr.mxu0 0.0
        %1328 = vmatpush1.msra.mxu0 %v1281
        %1329 = vmatprep.subr.mxu0 0.0
        %1330 = vmatpush1.msra.mxu0 %v1282
        %1331 = vmatprep.subr.mxu0 0.0
        %1332 = vmatpush1.msra.mxu0 %v1283
        %1333 = vmatprep.subr.mxu0 0.0
        %1334 = vmatpush1.msra.mxu0 %v1284
        %1335 = vmatprep.subr.mxu0 0.0
        %1336 = vmatpush1.msra.mxu0 %v1285
        %1337 = vmatprep.subr.mxu0 0.0
        %1338 = vmatpush1.msra.mxu0 %v1286
        %1339 = vmatprep.subr.mxu0 0.0
        %1340 = vmatpush1.msra.mxu0 %v1287
        %1341 = vmatprep.subr.mxu0 0.0
        %1342 = vmatpush1.msra.mxu0 %v1288
        %1343 = vmatprep.subr.mxu0 0.0
        %1344 = vmatpush1.msra.mxu0 %v1289
        %1345 = vmatprep.subr.mxu0 0.0
        %1346 = vmatpush1.msra.mxu0 %v1290
        %1347 = vmatprep.subr.mxu0 0.0
        %1348 = vmatpush1.msra.mxu0 %v1291
        %1349 = vmatprep.subr.mxu0 0.0
        %1350 = vmatpush1.msra.mxu0 %v1292
        %1351 = vmatprep.subr.mxu0 0.0
        %1352 = vmatpush1.msra.mxu0 %v1293
        %1353 = vmatprep.subr.mxu0 0.0
        %1354 = vmatpush1.msra.mxu0 %v1294
        %1355 = vmatprep.subr.mxu0 0.0
        %1356 = vmatpush1.msra.mxu0 %v1295
        %1357 = vmatprep.subr.mxu0 0.0
        %1358 = vmatpush1.msra.mxu0 %v1296
        %1359 = vmatprep.subr.mxu0 0.0
        %1360 = vmatpush1.msra.mxu0 %v1297
        %1361 = vmatprep.subr.mxu0 0.0
        %1362 = vmatpush1.msra.mxu0 %v1298
        %1363 = vmatprep.subr.mxu0 0.0
        %1364 = vmatpush1.msra.mxu0 %v1299
        %1365 = vmatprep.subr.mxu0 0.0
        %1366 = vmatpush1.msra.mxu0 %v1300
        %1367 = vmatprep.subr.mxu0 0.0
        %1368 = vmatpush1.msra.mxu0 %v1301
        %1369 = vmatprep.subr.mxu0 0.0
        %1370 = vmatpush1.msra.mxu0 %v1302
        %1371 = vmatprep.subr.mxu0 0.0
        %1372 = vmatpush1.msra.mxu0 %v1303
        %1373 = vmatprep.subr.mxu0 0.0
        %1374 = vmatpush1.msra.mxu0 %v1304
        %1375 = vmatprep.subr.mxu0 0.0
        %1376 = vmatpush1.msra.mxu0 %v1305
        %1377 = vmatprep.subr.mxu0 0.0
        %1378 = vmatpush1.msra.mxu0 %v1306
        %1379 = vmatprep.subr.mxu0 0.0
        %1380 = vmatpush1.msra.mxu0 %v1307
        %1381 = vmatprep.subr.mxu0 0.0
        %1382 = vmatpush1.msra.mxu0 %v1308
        %1383 = vmatprep.subr.mxu0 0.0
        %1384 = vmatpush1.msra.mxu0 %v1309
        %1385 = vmatprep.mubr.f32.mxu0 %v1277
        %1386 = vmatmul.mubr.f32.gmra.mrb[0].mxu0 %v1276
        %v1387 = vpop.f32.mrb[0].mxu0
        %v1388 = vadd.f32 %v1318, %v1387
        %v1389 = vpop.f32.mrb[0].mxu0
        %1390 = vdwg.mxu0
        %1391 = vmatprep.subr.mxu0 0.0
        %1392 = vmatpush1.msra.mxu0 %v1310
        %1393 = vmatprep.subr.mxu0 0.0
        %1394 = vmatpush1.msra.mxu0 %v1311
        %1395 = vmatprep.subr.mxu0 0.0
        %1396 = vmatpush1.msra.mxu0 %v1312
        %1397 = vmatprep.subr.mxu0 0.0
        %1398 = vmatpush1.msra.mxu0 %v1313
        %1399 = vmatprep.subr.mxu0 0.0
        %1400 = vmatpush1.msra.mxu0 0.0
        %1401 = vmatprep.subr.mxu0 0.0
        %1402 = vmatpush1.msra.mxu0 0.0
        %1403 = vmatprep.subr.mxu0 0.0
        %1404 = vmatpush1.msra.mxu0 0.0
        %1405 = vmatprep.subr.mxu0 0.0
        %1406 = vmatpush1.msra.mxu0 0.0
        %1407 = vmatprep.subr.mxu0 0.0
        %1408 = vmatpush1.msra.mxu0 0.0
        %1409 = vmatprep.subr.mxu0 0.0
        %1410 = vmatpush1.msra.mxu0 0.0
        %1411 = vmatprep.subr.mxu0 0.0
        %1412 = vmatpush1.msra.mxu0 0.0
        %1413 = vmatprep.subr.mxu0 0.0
        %1414 = vmatpush1.msra.mxu0 0.0
        %1415 = vmatprep.subr.mxu0 0.0
        %1416 = vmatpush1.msra.mxu0 0.0
        %1417 = vmatprep.subr.mxu0 0.0
        %1418 = vmatpush1.msra.mxu0 0.0
        %1419 = vmatprep.subr.mxu0 0.0
        %1420 = vmatpush1.msra.mxu0 0.0
        %1421 = vmatprep.subr.mxu0 0.0
        %1422 = vmatpush1.msra.mxu0 0.0
        %1423 = vmatprep.subr.mxu0 0.0
        %1424 = vmatpush1.msra.mxu0 0.0
        %1425 = vmatprep.subr.mxu0 0.0
        %1426 = vmatpush1.msra.mxu0 0.0
        %1427 = vmatprep.subr.mxu0 0.0
        %1428 = vmatpush1.msra.mxu0 0.0
        %1429 = vmatprep.subr.mxu0 0.0
        %1430 = vmatpush1.msra.mxu0 0.0
        %1431 = vmatprep.subr.mxu0 0.0
        %1432 = vmatpush1.msra.mxu0 0.0
        %1433 = vmatprep.subr.mxu0 0.0
        %1434 = vmatpush1.msra.mxu0 0.0
        %1435 = vmatprep.subr.mxu0 0.0
        %1436 = vmatpush1.msra.mxu0 0.0
        %1437 = vmatprep.subr.mxu0 0.0
        %1438 = vmatpush1.msra.mxu0 0.0
        %1439 = vmatprep.subr.mxu0 0.0
        %1440 = vmatpush1.msra.mxu0 0.0
        %1441 = vmatprep.subr.mxu0 0.0
        %1442 = vmatpush1.msra.mxu0 0.0
        %1443 = vmatprep.subr.mxu0 0.0
        %1444 = vmatpush1.msra.mxu0 0.0
        %1445 = vmatprep.subr.mxu0 0.0
        %1446 = vmatpush1.msra.mxu0 0.0
        %1447 = vmatprep.subr.mxu0 0.0
        %1448 = vmatpush1.msra.mxu0 0.0
        %1449 = vmatprep.subr.mxu0 0.0
        %1450 = vmatpush1.msra.mxu0 0.0
        %1451 = vmatprep.subr.mxu0 0.0
        %1452 = vmatpush1.msra.mxu0 0.0
        %1453 = vmatprep.subr.mxu0 0.0
        %1454 = vmatpush1.msra.mxu0 0.0
        %1455 = vmatprep.mubr.f32.mxu0 0.0
        %1456 = vmatmul.mubr.f32.gmra.mrb[0].mxu0 %v1319
        %v1457 = vpop.f32.mrb[0].mxu0
        %v1458 = vadd.f32 %v1388, %v1457
        %v1459 = vpop.f32.mrb[0].mxu0
        %1460 = vdwg.mxu0
        %v1461 = vmax.f32 %v1458, 0.0
        %v1463 = vrot.slane %v1461, 7
        %v1465 = vsel %vm190, 0.0, %v1463
        %v1466 = vrot.slane %v1461, 1
        %v1468 = vsel %vm197, %v1466, 0.0
        %1469 = vrot.lane.b32.xlu0 %v1461, 16
        %v1470 = vpop.permute.xlu0 %1469
        %1473 = vrot.lane.b32.xlu0 %v1468, 32
        %v1474 = vpop.permute.xlu0 %1473
        %v1476 = vsel %vm345, %v1465, %v1470
        %v1477 = vsel %vm635, %v1476, %v1474
        %v1478 = vld [vmem:[#allocation2 + $0x340] sm:$0xff]
        %v1479 = vld [vmem:[#allocation2 + $0x348] sm:$0xff]
        %v1480 = vld [vmem:[#allocation2 + $0x350] sm:$0xff]
        %v1481 = vld [vmem:[#allocation2 + $0x358] sm:$0xff]
        %v1482 = vld [vmem:[#allocation2 + $0x360] sm:$0xff]
        %v1483 = vld [vmem:[#allocation2 + $0x368] sm:$0xff]
        %v1484 = vld [vmem:[%s2 + $0x9] sm:$0x1]
        %v1485 = vlaneseq
        %v1486 = vshrl.u32 %v1485, 7
        %v1487 = vsub.s32 0, %v1486
        %v1488 = vrot.slane %v1484, %v1487
        %v1490 = vsel %vm649, %v1477, 0
        %1492 = vmatprep.subr.mxu0 0.0
        %1493 = vmatpush1.msra.mxu0 %v1478
        %1494 = vmatprep.subr.mxu0 0.0
        %1495 = vmatpush1.msra.mxu0 %v1479
        %1496 = vmatprep.subr.mxu0 0.0
        %1497 = vmatpush1.msra.mxu0 %v1480
        %1498 = vmatprep.subr.mxu0 0.0
        %1499 = vmatpush1.msra.mxu0 %v1481
        %1500 = vmatprep.subr.mxu0 0.0
        %1501 = vmatpush1.msra.mxu0 %v1482
        %1502 = vmatprep.subr.mxu0 0.0
        %1503 = vmatpush1.msra.mxu0 %v1483
        %1504 = vmatprep.subr.mxu0 0.0
        %1505 = vmatpush1.msra.mxu0 0.0
        %1506 = vmatprep.subr.mxu0 0.0
        %1507 = vmatpush1.msra.mxu0 0.0
        %1508 = vmatprep.subr.mxu0 0.0
        %1509 = vmatpush1.msra.mxu0 0.0
        %1510 = vmatprep.subr.mxu0 0.0
        %1511 = vmatpush1.msra.mxu0 0.0
        %1512 = vmatprep.subr.mxu0 0.0
        %1513 = vmatpush1.msra.mxu0 0.0
        %1514 = vmatprep.subr.mxu0 0.0
        %1515 = vmatpush1.msra.mxu0 0.0
        %1516 = vmatprep.subr.mxu0 0.0
        %1517 = vmatpush1.msra.mxu0 0.0
        %1518 = vmatprep.subr.mxu0 0.0
        %1519 = vmatpush1.msra.mxu0 0.0
        %1520 = vmatprep.subr.mxu0 0.0
        %1521 = vmatpush1.msra.mxu0 0.0
        %1522 = vmatprep.subr.mxu0 0.0
        %1523 = vmatpush1.msra.mxu0 0.0
        %1524 = vmatprep.subr.mxu0 0.0
        %1525 = vmatpush1.msra.mxu0 0.0
        %1526 = vmatprep.subr.mxu0 0.0
        %1527 = vmatpush1.msra.mxu0 0.0
        %1528 = vmatprep.subr.mxu0 0.0
        %1529 = vmatpush1.msra.mxu0 0.0
        %1530 = vmatprep.subr.mxu0 0.0
        %1531 = vmatpush1.msra.mxu0 0.0
        %1532 = vmatprep.subr.mxu0 0.0
        %1533 = vmatpush1.msra.mxu0 0.0
        %1534 = vmatprep.subr.mxu0 0.0
        %1535 = vmatpush1.msra.mxu0 0.0
        %1536 = vmatprep.subr.mxu0 0.0
        %1537 = vmatpush1.msra.mxu0 0.0
        %1538 = vmatprep.subr.mxu0 0.0
        %1539 = vmatpush1.msra.mxu0 0.0
        %1540 = vmatprep.subr.mxu0 0.0
        %1541 = vmatpush1.msra.mxu0 0.0
        %1542 = vmatprep.subr.mxu0 0.0
        %1543 = vmatpush1.msra.mxu0 0.0
        %1544 = vmatprep.subr.mxu0 0.0
        %1545 = vmatpush1.msra.mxu0 0.0
        %1546 = vmatprep.subr.mxu0 0.0
        %1547 = vmatpush1.msra.mxu0 0.0
        %1548 = vmatprep.subr.mxu0 0.0
        %1549 = vmatpush1.msra.mxu0 0.0
        %1550 = vmatprep.subr.mxu0 0.0
        %1551 = vmatpush1.msra.mxu0 0.0
        %1552 = vmatprep.subr.mxu0 0.0
        %1553 = vmatpush1.msra.mxu0 0.0
        %1554 = vmatprep.subr.mxu0 0.0
        %1555 = vmatpush1.msra.mxu0 0.0
        %1556 = vmatprep.mubr.f32.mxu0 0.0
        %1557 = vmatmul.mubr.f32.gmra.mrb[0].mxu0 %v1490
        %v1558 = vpop.f32.mrb[0].mxu0
        %v1559 = vadd.f32 %v1488, %v1558
        %v1560 = vpop.f32.mrb[0].mxu0
        %1561 = vdwg.mxu0
        %v1562 = vmax.f32 %v1559, 0.0
        %v1563 = vmul.f32 %v1562, 0.22222222
        %v1564 = vmul.f32 %v1562, 0.7777778
        %v1566 = vrot.slane %v1564, 1
        %v1568 = vadd.f32 %v1563, %v1566
        %v1569 = vmul.f32 %v1562, 0.44444445
        %v1570 = vmul.f32 %v1562, 0.5555556
        %v1572 = vrot.slane %v1570, 1
        %v1574 = vadd.f32 %v1569, %v1572
        %v1575 = vmul.f32 %v1562, 0.6666667
        %v1576 = vmul.f32 %v1562, 0.33333334
        %v1578 = vrot.slane %v1576, 1
        %v1580 = vadd.f32 %v1575, %v1578
        %v1581 = vmul.f32 %v1562, 0.8888889
        %v1582 = vmul.f32 %v1562, 0.11111111
        %v1584 = vrot.slane %v1582, 1
        %v1586 = vadd.f32 %v1581, %v1584
        %v1588 = vrot.slane %v1581, 1
        %v1590 = vadd.f32 %v1582, %v1588
        %v1592 = vrot.slane %v1575, 1
        %v1594 = vadd.f32 %v1576, %v1592
        %v1596 = vrot.slane %v1569, 1
        %v1598 = vadd.f32 %v1570, %v1596
        %v1600 = vrot.slane %v1563, 1
        %v1602 = vadd.f32 %v1564, %v1600
        %v1604 = vrot.slane %v1568, 7
        %v1607 = vrot.slane %v1574, 7
        %v1610 = vrot.slane %v1580, 7
        %v1613 = vrot.slane %v1586, 7
        %v1616 = vrot.slane %v1590, 6
        %v1619 = vrot.slane %v1594, 6
        %v1622 = vrot.slane %v1598, 6
        %v1625 = vrot.slane %v1602, 6
        %v1628 = vrot.slane %v1562, 6
        %v1630 = vsel %vm190, %v1562, %v1604
        %v1631 = vsel %vm475, %v1630, %v1607
        %v1632 = vsel %vm477, %v1631, %v1610
        %v1633 = vsel %vm236, %v1632, %v1613
        %v1634 = vsel %vm480, %v1633, %v1616
        %v1635 = vsel %vm482, %v1634, %v1619
        %v1636 = vsel %vm197, %v1635, %v1622
        %v1637 = vsel %vm190, %v1625, %v1628
        %1640 = vrot.lane.b32.xlu0 %v1636, 16
        %v1641 = vpop.permute.xlu0 %1640
        %1642 = vrot.lane.b32.xlu0 %v1637, 16
        %v1643 = vpop.permute.xlu0 %1642
        %v1646 = vsel %vm345, %v731, %v1641
        %v1647 = vsel %vm345, %v732, %v1643
        %v1650 = vrot.slane %v1646, 7
        %v1651 = vrot.slane %v1647, 7
        %v1652 = vsel %vm190, %v1650, %v1651
        %v1655 = vsel %vm190, 0.0, %v1650
        %v1656 = vrot.slane %v1646, 1
        %v1657 = vrot.slane %v1647, 1
        %v1658 = vsel %vm197, %v1656, %v1657
        %v1660 = vsel %vm190, %v1657, 0.0
        %1661 = vrot.lane.b32.xlu0 %v1646, 32
        %v1662 = vpop.permute.xlu0 %1661
        %1663 = vrot.lane.b32.xlu0 %v1647, 32
        %v1664 = vpop.permute.xlu0 %1663
        %1668 = vrot.lane.b32.xlu0 %v1658, 64
        %v1669 = vpop.permute.xlu0 %1668
        %1670 = vrot.lane.b32.xlu0 %v1660, 64
        %v1671 = vpop.permute.xlu0 %1670
        %v1674 = vsel %vm635, %v1655, %v1662
        %v1675 = vsel %vm635, %v1652, %v1664
        %v1676 = vsel %vm873, %v1674, %v1669
        %v1677 = vsel %vm873, %v1675, %v1671
        %v1678 = vld [vmem:[#allocation2 + $0x370] sm:$0xff]
        %v1679 = vld [vmem:[#allocation2 + $0x378] sm:$0xff]
        %v1680 = vld [vmem:[#allocation2 + $0x380] sm:$0xff]
        %v1681 = vld [vmem:[#allocation2 + $0x388] sm:$0xff]
        %v1682 = vld [vmem:[#allocation2 + $0x390] sm:$0xff]
        %v1683 = vld [vmem:[#allocation2 + $0x398] sm:$0xff]
        %v1684 = vld [vmem:[#allocation2 + $0x3a0] sm:$0xff]
        %v1685 = vld [vmem:[#allocation2 + $0x3a8] sm:$0xff]
        %v1686 = vld [vmem:[#allocation2 + $0x3b0] sm:$0xff]
        %v1687 = vld [vmem:[#allocation2 + $0x3b8] sm:$0xff]
        %v1688 = vld [vmem:[#allocation2 + $0x3c0] sm:$0xff]
        %v1689 = vld [vmem:[#allocation2 + $0x3c8] sm:$0xff]
        %v1690 = vld [vmem:[%s2 + $0xa] sm:$0x1]
        %v1691 = vlaneseq
        %v1692 = vshrl.u32 %v1691, 7
        %v1693 = vsub.s32 0, %v1692
        %v1694 = vrot.slane %v1690, %v1693
        %v1696 = vsel %vm892, %v1676, 0
        %v1699 = vsel %vm892, %v1677, 0
        %1701 = vmatprep.subr.mxu0 0.0
        %1702 = vmatpush1.msra.mxu0 %v1678
        %1703 = vmatprep.subr.mxu0 0.0
        %1704 = vmatpush1.msra.mxu0 %v1679
        %1705 = vmatprep.subr.mxu0 0.0
        %1706 = vmatpush1.msra.mxu0 %v1680
        %1707 = vmatprep.subr.mxu0 0.0
        %1708 = vmatpush1.msra.mxu0 %v1681
        %1709 = vmatprep.subr.mxu0 0.0
        %1710 = vmatpush1.msra.mxu0 %v1682
        %1711 = vmatprep.subr.mxu0 0.0
        %1712 = vmatpush1.msra.mxu0 %v1683
        %1713 = vmatprep.subr.mxu0 0.0
        %1714 = vmatpush1.msra.mxu0 %v1684
        %1715 = vmatprep.subr.mxu0 0.0
        %1716 = vmatpush1.msra.mxu0 %v1685
        %1717 = vmatprep.subr.mxu0 0.0
        %1718 = vmatpush1.msra.mxu0 %v1686
        %1719 = vmatprep.subr.mxu0 0.0
        %1720 = vmatpush1.msra.mxu0 %v1687
        %1721 = vmatprep.subr.mxu0 0.0
        %1722 = vmatpush1.msra.mxu0 %v1688
        %1723 = vmatprep.subr.mxu0 0.0
        %1724 = vmatpush1.msra.mxu0 %v1689
        %1725 = vmatprep.subr.mxu0 0.0
        %1726 = vmatpush1.msra.mxu0 0.0
        %1727 = vmatprep.subr.mxu0 0.0
        %1728 = vmatpush1.msra.mxu0 0.0
        %1729 = vmatprep.subr.mxu0 0.0
        %1730 = vmatpush1.msra.mxu0 0.0
        %1731 = vmatprep.subr.mxu0 0.0
        %1732 = vmatpush1.msra.mxu0 0.0
        %1733 = vmatprep.subr.mxu0 0.0
        %1734 = vmatpush1.msra.mxu0 0.0
        %1735 = vmatprep.subr.mxu0 0.0
        %1736 = vmatpush1.msra.mxu0 0.0
        %1737 = vmatprep.subr.mxu0 0.0
        %1738 = vmatpush1.msra.mxu0 0.0
        %1739 = vmatprep.subr.mxu0 0.0
        %1740 = vmatpush1.msra.mxu0 0.0
        %1741 = vmatprep.subr.mxu0 0.0
        %1742 = vmatpush1.msra.mxu0 0.0
        %1743 = vmatprep.subr.mxu0 0.0
        %1744 = vmatpush1.msra.mxu0 0.0
        %1745 = vmatprep.subr.mxu0 0.0
        %1746 = vmatpush1.msra.mxu0 0.0
        %1747 = vmatprep.subr.mxu0 0.0
        %1748 = vmatpush1.msra.mxu0 0.0
        %1749 = vmatprep.subr.mxu0 0.0
        %1750 = vmatpush1.msra.mxu0 0.0
        %1751 = vmatprep.subr.mxu0 0.0
        %1752 = vmatpush1.msra.mxu0 0.0
        %1753 = vmatprep.subr.mxu0 0.0
        %1754 = vmatpush1.msra.mxu0 0.0
        %1755 = vmatprep.subr.mxu0 0.0
        %1756 = vmatpush1.msra.mxu0 0.0
        %1757 = vmatprep.subr.mxu0 0.0
        %1758 = vmatpush1.msra.mxu0 0.0
        %1759 = vmatprep.subr.mxu0 0.0
        %1760 = vmatpush1.msra.mxu0 0.0
        %1761 = vmatprep.subr.mxu0 0.0
        %1762 = vmatpush1.msra.mxu0 0.0
        %1763 = vmatprep.subr.mxu0 0.0
        %1764 = vmatpush1.msra.mxu0 0.0
        %1765 = vmatprep.mubr.f32.mxu0 0.0
        %1766 = vmatmul.mubr.f32.gmra.mrb[0].mxu0 %v1696
        %v1767 = vpop.f32.mrb[0].mxu0
        %v1768 = vadd.f32 %v1694, %v1767
        %v1769 = vpop.f32.mrb[0].mxu0
        %1770 = vmatprep.mubr.f32.mxu0 0.0
        %1771 = vmatmul.mubr.f32.gmra.mrb[0].mxu0 %v1699
        %v1772 = vpop.f32.mrb[0].mxu0
        %v1773 = vadd.f32 %v1694, %v1772
        %v1774 = vpop.f32.mrb[0].mxu0
        %1775 = vdwg.mxu0
        %v1776 = vmax.f32 %v1768, 0.0
        %v1777 = vmax.f32 %v1773, 0.0
        %v1780 = vrot.slane %v1776, 7
        %v1781 = vrot.slane %v1777, 7
        %v1782 = vsel %vm190, %v1780, %v1781
        %v1785 = vsel %vm190, 0.0, %v1780
        %v1786 = vrot.slane %v1776, 1
        %v1787 = vrot.slane %v1777, 1
        %v1788 = vsel %vm197, %v1786, %v1787
        %v1790 = vsel %vm190, %v1787, 0.0
        %1791 = vrot.lane.b32.xlu0 %v1776, 8
        %v1792 = vpop.permute.xlu0 %1791
        %1793 = vrot.lane.b32.xlu0 %v1777, 8
        %v1794 = vpop.permute.xlu0 %1793
        %1798 = vrot.lane.b32.xlu0 %v1788, 16
        %v1799 = vpop.permute.xlu0 %1798
        %1800 = vrot.lane.b32.xlu0 %v1790, 16
        %v1801 = vpop.permute.xlu0 %1800
        %v1804 = vsel %vm219, %v1785, %v1792
        %v1805 = vsel %vm219, %v1782, %v1794
        %v1806 = vsel %vm345, %v1804, %v1799
        %v1807 = vsel %vm345, %v1805, %v1801
        %v1808 = vld [vmem:[#allocation2 + $0x3d0] sm:$0xff]
        %v1809 = vld [vmem:[#allocation2 + $0x3d8] sm:$0xff]
        %v1810 = vld [vmem:[#allocation2 + $0x3e0] sm:$0xff]
        %v1811 = vld [vmem:[%s2 + $0xb] sm:$0x1]
        %v1812 = vlaneseq
        %v1813 = vshrl.u32 %v1812, 7
        %v1814 = vsub.s32 0, %v1813
        %v1815 = vrot.slane %v1811, %v1814
        %v1817 = vsel %vm356, %v1806, 0
        %v1820 = vsel %vm356, %v1807, 0
        %1822 = vmatprep.subr.mxu0 0.0
        %1823 = vmatpush1.msra.mxu0 %v1808
        %1824 = vmatprep.subr.mxu0 0.0
        %1825 = vmatpush1.msra.mxu0 %v1809
        %1826 = vmatprep.subr.mxu0 0.0
        %1827 = vmatpush1.msra.mxu0 %v1810
        %1828 = vmatprep.subr.mxu0 0.0
        %1829 = vmatpush1.msra.mxu0 0.0
        %1830 = vmatprep.subr.mxu0 0.0
        %1831 = vmatpush1.msra.mxu0 0.0
        %1832 = vmatprep.subr.mxu0 0.0
        %1833 = vmatpush1.msra.mxu0 0.0
        %1834 = vmatprep.subr.mxu0 0.0
        %1835 = vmatpush1.msra.mxu0 0.0
        %1836 = vmatprep.subr.mxu0 0.0
        %1837 = vmatpush1.msra.mxu0 0.0
        %1838 = vmatprep.subr.mxu0 0.0
        %1839 = vmatpush1.msra.mxu0 0.0
        %1840 = vmatprep.subr.mxu0 0.0
        %1841 = vmatpush1.msra.mxu0 0.0
        %1842 = vmatprep.subr.mxu0 0.0
        %1843 = vmatpush1.msra.mxu0 0.0
        %1844 = vmatprep.subr.mxu0 0.0
        %1845 = vmatpush1.msra.mxu0 0.0
        %1846 = vmatprep.subr.mxu0 0.0
        %1847 = vmatpush1.msra.mxu0 0.0
        %1848 = vmatprep.subr.mxu0 0.0
        %1849 = vmatpush1.msra.mxu0 0.0
        %1850 = vmatprep.subr.mxu0 0.0
        %1851 = vmatpush1.msra.mxu0 0.0
        %1852 = vmatprep.subr.mxu0 0.0
        %1853 = vmatpush1.msra.mxu0 0.0
        %1854 = vmatprep.subr.mxu0 0.0
        %1855 = vmatpush1.msra.mxu0 0.0
        %1856 = vmatprep.subr.mxu0 0.0
        %1857 = vmatpush1.msra.mxu0 0.0
        %1858 = vmatprep.subr.mxu0 0.0
        %1859 = vmatpush1.msra.mxu0 0.0
        %1860 = vmatprep.subr.mxu0 0.0
        %1861 = vmatpush1.msra.mxu0 0.0
        %1862 = vmatprep.subr.mxu0 0.0
        %1863 = vmatpush1.msra.mxu0 0.0
        %1864 = vmatprep.subr.mxu0 0.0
        %1865 = vmatpush1.msra.mxu0 0.0
        %1866 = vmatprep.subr.mxu0 0.0
        %1867 = vmatpush1.msra.mxu0 0.0
        %1868 = vmatprep.subr.mxu0 0.0
        %1869 = vmatpush1.msra.mxu0 0.0
        %1870 = vmatprep.subr.mxu0 0.0
        %1871 = vmatpush1.msra.mxu0 0.0
        %1872 = vmatprep.subr.mxu0 0.0
        %1873 = vmatpush1.msra.mxu0 0.0
        %1874 = vmatprep.subr.mxu0 0.0
        %1875 = vmatpush1.msra.mxu0 0.0
        %1876 = vmatprep.subr.mxu0 0.0
        %1877 = vmatpush1.msra.mxu0 0.0
        %1878 = vmatprep.subr.mxu0 0.0
        %1879 = vmatpush1.msra.mxu0 0.0
        %1880 = vmatprep.subr.mxu0 0.0
        %1881 = vmatpush1.msra.mxu0 0.0
        %1882 = vmatprep.subr.mxu0 0.0
        %1883 = vmatpush1.msra.mxu0 0.0
        %1884 = vmatprep.subr.mxu0 0.0
        %1885 = vmatpush1.msra.mxu0 0.0
        %1886 = vmatprep.mubr.f32.mxu0 0.0
        %1887 = vmatmul.mubr.f32.gmra.mrb[0].mxu0 %v1817
        %v1888 = vpop.f32.mrb[0].mxu0
        %v1889 = vadd.f32 %v1815, %v1888
        %v1890 = vpop.f32.mrb[0].mxu0
        %1891 = vmatprep.mubr.f32.mxu0 0.0
        %1892 = vmatmul.mubr.f32.gmra.mrb[0].mxu0 %v1820
        %v1893 = vpop.f32.mrb[0].mxu0
        %v1894 = vadd.f32 %v1815, %v1893
        %v1895 = vpop.f32.mrb[0].mxu0
        %1896 = vdwg.mxu0
        %v1897 = vmax.f32 %v1889, 0.0
        %v1898 = vmax.f32 %v1894, 0.0
        %v1899 = vmul.f32 %v1897, 0.4
        %v1900 = vmul.f32 %v1897, 0.6
        %v1902 = vrot.slane %v1900, 1
        %v1904 = vadd.f32 %v1899, %v1902
        %v1905 = vmul.f32 %v1897, 0.8
        %v1906 = vmul.f32 %v1897, 0.2
        %v1908 = vrot.slane %v1906, 1
        %v1910 = vadd.f32 %v1905, %v1908
        %v1912 = vrot.slane %v1905, 1
        %v1914 = vadd.f32 %v1906, %v1912
        %v1916 = vrot.slane %v1899, 1
        %v1918 = vadd.f32 %v1900, %v1916
        %v1919 = vmul.f32 %v1898, 0.2
        %v1921 = vrot.slane %v1919, 1
        %v1923 = vadd.f32 %v1905, %v1921
        %v1924 = vmul.f32 %v1898, 0.8
        %v1926 = vrot.slane %v1924, 1
        %v1928 = vadd.f32 %v1906, %v1926
        %v1929 = vmul.f32 %v1898, 0.6
        %v1930 = vmul.f32 %v1898, 0.4
        %v1932 = vrot.slane %v1930, 1
        %v1934 = vadd.f32 %v1929, %v1932
        %v1936 = vrot.slane %v1904, 7
        %v1939 = vrot.slane %v1910, 7
        %v1942 = vrot.slane %v1914, 6
        %v1945 = vrot.slane %v1918, 6
        %v1948 = vrot.slane %v1897, 6
        %v1950 = vrot.slane %v1904, 5
        %v1952 = vrot.slane %v1910, 5
        %v1954 = vrot.slane %v1914, 4
        %v1956 = vrot.slane %v1918, 4
        %v1958 = vrot.slane %v1897, 4
        %v1960 = vrot.slane %v1904, 3
        %v1963 = vrot.slane %v1923, 3
        %v1966 = vrot.slane %v1928, 2
        %v1969 = vrot.slane %v1934, 2
        %v1972 = vrot.slane %v1898, 2
        %v1974 = vsel %vm190, %v1897, %v1936
        %v1975 = vsel %vm475, %v1974, %v1939
        %v1976 = vsel %vm477, %v1975, %v1942
        %v1977 = vsel %vm236, %v1976, %v1945
        %v1978 = vsel %vm480, %v1977, %v1948
        %v1979 = vsel %vm482, %v1978, %v1950
        %v1980 = vsel %vm197, %v1979, %v1952
        %v1981 = vsel %vm190, %v1954, %v1956
        %v1982 = vsel %vm475, %v1981, %v1958
        %v1983 = vsel %vm477, %v1982, %v1960
        %v1984 = vsel %vm236, %v1983, %v1963
        %v1985 = vsel %vm480, %v1984, %v1966
        %v1986 = vsel %vm482, %v1985, %v1969
        %v1987 = vsel %vm197, %v1986, %v1972
        %1990 = vrot.lane.b32.xlu0 %v1980, 8
        %v1991 = vpop.permute.xlu0 %1990
        %1992 = vrot.lane.b32.xlu0 %v1987, 8
        %v1993 = vpop.permute.xlu0 %1992
        %v1996 = vsel %vm219, %v438, %v1991
        %v1997 = vsel %vm219, %v439, %v1993
        %v2000 = vrot.slane %v1996, 7
        %v2001 = vrot.slane %v1997, 7
        %v2002 = vsel %vm190, %v2000, %v2001
        %v2005 = vsel %vm190, 0.0, %v2000
        %v2006 = vrot.slane %v1996, 1
        %v2007 = vrot.slane %v1997, 1
        %v2008 = vsel %vm197, %v2006, %v2007
        %v2010 = vsel %vm197, %v2007, 0.0
        %2011 = vrot.lane.b32.xlu0 %v1996, 16
        %v2012 = vpop.permute.xlu0 %2011
        %2013 = vrot.lane.b32.xlu0 %v1997, 16
        %v2014 = vpop.permute.xlu0 %2013
        %2018 = vrot.lane.b32.xlu0 %v2008, 32
        %v2019 = vpop.permute.xlu0 %2018
        %2020 = vrot.lane.b32.xlu0 %v2010, 32
        %v2021 = vpop.permute.xlu0 %2020
        %v2024 = vsel %vm345, %v2005, %v2012
        %v2025 = vsel %vm345, %v2002, %v2014
        %v2026 = vsel %vm635, %v2024, %v2019
        %v2027 = vsel %vm635, %v2025, %v2021
        %v2028 = vld [vmem:[#allocation2 + $0x3e8] sm:$0xff]
        %v2029 = vld [vmem:[#allocation2 + $0x3f0] sm:$0xff]
        %v2030 = vld [vmem:[#allocation2 + $0x3f8] sm:$0xff]
        %v2031 = vld [vmem:[#allocation2 + $0x400] sm:$0xff]
        %v2032 = vld [vmem:[#allocation2 + $0x408] sm:$0xff]
        %v2033 = vld [vmem:[#allocation2 + $0x410] sm:$0xff]
        %v2034 = vld [vmem:[%s2 + $0xc] sm:$0x1]
        %v2035 = vlaneseq
        %v2036 = vshrl.u32 %v2035, 7
        %v2037 = vsub.s32 0, %v2036
        %v2038 = vrot.slane %v2034, %v2037
        %v2040 = vsel %vm649, %v2026, 0
        %v2043 = vsel %vm649, %v2027, 0
        %2045 = vmatprep.subr.mxu0 0.0
        %2046 = vmatpush1.msra.mxu0 %v2028
        %2047 = vmatprep.subr.mxu0 0.0
        %2048 = vmatpush1.msra.mxu0 %v2029
        %2049 = vmatprep.subr.mxu0 0.0
        %2050 = vmatpush1.msra.mxu0 %v2030
        %2051 = vmatprep.subr.mxu0 0.0
        %2052 = vmatpush1.msra.mxu0 %v2031
        %2053 = vmatprep.subr.mxu0 0.0
        %2054 = vmatpush1.msra.mxu0 %v2032
        %2055 = vmatprep.subr.mxu0 0.0
        %2056 = vmatpush1.msra.mxu0 %v2033
        %2057 = vmatprep.subr.mxu0 0.0
        %2058 = vmatpush1.msra.mxu0 0.0
        %2059 = vmatprep.subr.mxu0 0.0
        %2060 = vmatpush1.msra.mxu0 0.0
        %2061 = vmatprep.subr.mxu0 0.0
        %2062 = vmatpush1.msra.mxu0 0.0
        %2063 = vmatprep.subr.mxu0 0.0
        %2064 = vmatpush1.msra.mxu0 0.0
        %2065 = vmatprep.subr.mxu0 0.0
        %2066 = vmatpush1.msra.mxu0 0.0
        %2067 = vmatprep.subr.mxu0 0.0
        %2068 = vmatpush1.msra.mxu0 0.0
        %2069 = vmatprep.subr.mxu0 0.0
        %2070 = vmatpush1.msra.mxu0 0.0
        %2071 = vmatprep.subr.mxu0 0.0
        %2072 = vmatpush1.msra.mxu0 0.0
        %2073 = vmatprep.subr.mxu0 0.0
        %2074 = vmatpush1.msra.mxu0 0.0
        %2075 = vmatprep.subr.mxu0 0.0
        %2076 = vmatpush1.msra.mxu0 0.0
        %2077 = vmatprep.subr.mxu0 0.0
        %2078 = vmatpush1.msra.mxu0 0.0
        %2079 = vmatprep.subr.mxu0 0.0
        %2080 = vmatpush1.msra.mxu0 0.0
        %2081 = vmatprep.subr.mxu0 0.0
        %2082 = vmatpush1.msra.mxu0 0.0
        %2083 = vmatprep.subr.mxu0 0.0
        %2084 = vmatpush1.msra.mxu0 0.0
        %2085 = vmatprep.subr.mxu0 0.0
        %2086 = vmatpush1.msra.mxu0 0.0
        %2087 = vmatprep.subr.mxu0 0.0
        %2088 = vmatpush1.msra.mxu0 0.0
        %2089 = vmatprep.subr.mxu0 0.0
        %2090 = vmatpush1.msra.mxu0 0.0
        %2091 = vmatprep.subr.mxu0 0.0
        %2092 = vmatpush1.msra.mxu0 0.0
        %2093 = vmatprep.subr.mxu0 0.0
        %2094 = vmatpush1.msra.mxu0 0.0
        %2095 = vmatprep.subr.mxu0 0.0
        %2096 = vmatpush1.msra.mxu0 0.0
        %2097 = vmatprep.subr.mxu0 0.0
        %2098 = vmatpush1.msra.mxu0 0.0
        %2099 = vmatprep.subr.mxu0 0.0
        %2100 = vmatpush1.msra.mxu0 0.0
        %2101 = vmatprep.subr.mxu0 0.0
        %2102 = vmatpush1.msra.mxu0 0.0
        %2103 = vmatprep.subr.mxu0 0.0
        %2104 = vmatpush1.msra.mxu0 0.0
        %2105 = vmatprep.subr.mxu0 0.0
        %2106 = vmatpush1.msra.mxu0 0.0
        %2107 = vmatprep.subr.mxu0 0.0
        %2108 = vmatpush1.msra.mxu0 0.0
        %2109 = vmatprep.mubr.f32.mxu0 0.0
        %2110 = vmatmul.mubr.f32.gmra.mrb[0].mxu0 %v2040
        %v2111 = vpop.f32.mrb[0].mxu0
        %v2112 = vadd.f32 %v2038, %v2111
        %v2113 = vpop.f32.mrb[0].mxu0
        %2114 = vmatprep.mubr.f32.mxu0 0.0
        %2115 = vmatmul.mubr.f32.gmra.mrb[0].mxu0 %v2043
        %v2116 = vpop.f32.mrb[0].mxu0
        %v2117 = vadd.f32 %v2038, %v2116
        %v2118 = vpop.f32.mrb[0].mxu0
        %2119 = vdwg.mxu0
        %v2120 = vmax.f32 %v2112, 0.0
        %v2121 = vmax.f32 %v2117, 0.0
        %v2124 = vrot.slane %v2120, 7
        %v2125 = vrot.slane %v2121, 7
        %v2126 = vsel %vm190, %v2124, %v2125
        %v2129 = vsel %vm190, 0.0, %v2124
        %v2130 = vrot.slane %v2120, 1
        %v2131 = vrot.slane %v2121, 1
        %v2132 = vsel %vm197, %v2130, %v2131
        %v2134 = vsel %vm197, %v2131, 0.0
        %2135 = vrot.lane.b32.xlu0 %v2120, 8
        %v2136 = vpop.permute.xlu0 %2135
        %2137 = vrot.lane.b32.xlu0 %v2121, 8
        %v2138 = vpop.permute.xlu0 %2137
        %2142 = vrot.lane.b32.xlu0 %v2132, 16
        %v2143 = vpop.permute.xlu0 %2142
        %2144 = vrot.lane.b32.xlu0 %v2134, 16
        %v2145 = vpop.permute.xlu0 %2144
        %v2148 = vsel %vm219, %v2129, %v2136
        %v2149 = vsel %vm219, %v2126, %v2138
        %v2150 = vsel %vm345, %v2148, %v2143
        %v2151 = vsel %vm345, %v2149, %v2145
        %v2152 = vld [vmem:[#allocation2 + $0x418] sm:$0xff]
        %v2153 = vld [vmem:[#allocation2 + $0x420] sm:$0xff]
        %v2154 = vld [vmem:[#allocation2 + $0x428] sm:$0xff]
        %v2155 = vld [vmem:[%s2 + $0xd] sm:$0x1]
        %v2156 = vlaneseq
        %v2157 = vshrl.u32 %v2156, 7
        %v2158 = vsub.s32 0, %v2157
        %v2159 = vrot.slane %v2155, %v2158
        %v2161 = vsel %vm356, %v2150, 0
        %v2164 = vsel %vm356, %v2151, 0
        %2166 = vmatprep.subr.mxu0 0.0
        %2167 = vmatpush1.msra.mxu0 %v2152
        %2168 = vmatprep.subr.mxu0 0.0
        %2169 = vmatpush1.msra.mxu0 %v2153
        %2170 = vmatprep.subr.mxu0 0.0
        %2171 = vmatpush1.msra.mxu0 %v2154
        %2172 = vmatprep.subr.mxu0 0.0
        %2173 = vmatpush1.msra.mxu0 0.0
        %2174 = vmatprep.subr.mxu0 0.0
        %2175 = vmatpush1.msra.mxu0 0.0
        %2176 = vmatprep.subr.mxu0 0.0
        %2177 = vmatpush1.msra.mxu0 0.0
        %2178 = vmatprep.subr.mxu0 0.0
        %2179 = vmatpush1.msra.mxu0 0.0
        %2180 = vmatprep.subr.mxu0 0.0
        %2181 = vmatpush1.msra.mxu0 0.0
        %2182 = vmatprep.subr.mxu0 0.0
        %2183 = vmatpush1.msra.mxu0 0.0
        %2184 = vmatprep.subr.mxu0 0.0
        %2185 = vmatpush1.msra.mxu0 0.0
        %2186 = vmatprep.subr.mxu0 0.0
        %2187 = vmatpush1.msra.mxu0 0.0
        %2188 = vmatprep.subr.mxu0 0.0
        %2189 = vmatpush1.msra.mxu0 0.0
        %2190 = vmatprep.subr.mxu0 0.0
        %2191 = vmatpush1.msra.mxu0 0.0
        %2192 = vmatprep.subr.mxu0 0.0
        %2193 = vmatpush1.msra.mxu0 0.0
        %2194 = vmatprep.subr.mxu0 0.0
        %2195 = vmatpush1.msra.mxu0 0.0
        %2196 = vmatprep.subr.mxu0 0.0
        %2197 = vmatpush1.msra.mxu0 0.0
        %2198 = vmatprep.subr.mxu0 0.0
        %2199 = vmatpush1.msra.mxu0 0.0
        %2200 = vmatprep.subr.mxu0 0.0
        %2201 = vmatpush1.msra.mxu0 0.0
        %2202 = vmatprep.subr.mxu0 0.0
        %2203 = vmatpush1.msra.mxu0 0.0
        %2204 = vmatprep.subr.mxu0 0.0
        %2205 = vmatpush1.msra.mxu0 0.0
        %2206 = vmatprep.subr.mxu0 0.0
        %2207 = vmatpush1.msra.mxu0 0.0
        %2208 = vmatprep.subr.mxu0 0.0
        %2209 = vmatpush1.msra.mxu0 0.0
        %2210 = vmatprep.subr.mxu0 0.0
        %2211 = vmatpush1.msra.mxu0 0.0
        %2212 = vmatprep.subr.mxu0 0.0
        %2213 = vmatpush1.msra.mxu0 0.0
        %2214 = vmatprep.subr.mxu0 0.0
        %2215 = vmatpush1.msra.mxu0 0.0
        %2216 = vmatprep.subr.mxu0 0.0
        %2217 = vmatpush1.msra.mxu0 0.0
        %2218 = vmatprep.subr.mxu0 0.0
        %2219 = vmatpush1.msra.mxu0 0.0
        %2220 = vmatprep.subr.mxu0 0.0
        %2221 = vmatpush1.msra.mxu0 0.0
        %2222 = vmatprep.subr.mxu0 0.0
        %2223 = vmatpush1.msra.mxu0 0.0
        %2224 = vmatprep.subr.mxu0 0.0
        %2225 = vmatpush1.msra.mxu0 0.0
        %2226 = vmatprep.subr.mxu0 0.0
        %2227 = vmatpush1.msra.mxu0 0.0
        %2228 = vmatprep.subr.mxu0 0.0
        %2229 = vmatpush1.msra.mxu0 0.0
        %2230 = vmatprep.mubr.f32.mxu0 0.0
        %2231 = vmatmul.mubr.f32.gmra.mrb[0].mxu0 %v2161
        %v2232 = vpop.f32.mrb[0].mxu0
        %v2233 = vadd.f32 %v2159, %v2232
        %v2234 = vpop.f32.mrb[0].mxu0
        %2235 = vmatprep.mubr.f32.mxu0 0.0
        %2236 = vmatmul.mubr.f32.gmra.mrb[0].mxu0 %v2164
        %v2237 = vpop.f32.mrb[0].mxu0
        %v2238 = vadd.f32 %v2159, %v2237
        %v2239 = vpop.f32.mrb[0].mxu0
        %2240 = vdwg.mxu0
        %v2241 = vmax.f32 %v2233, 0.0
        %v2242 = vmax.f32 %v2238, 0.0
        %v2243 = vld [vmem:[#allocation2 + $0x430] sm:$0xff]
        %v2244 = vld [vmem:[%s2 + $0xe] sm:$0x1]
        %v2245 = vlaneseq
        %v2246 = vshrl.u32 %v2245, 7
        %v2247 = vsub.s32 0, %v2246
        %v2248 = vrot.slane %v2244, %v2247
        %v2250 = vsel %vm219, %v2241, 0
        %v2253 = vsel %vm219, %v2242, 0
        %2255 = vmatprep.subr.mxu0 0.0
        %2256 = vmatpush1.msra.mxu0 %v2243
        %2257 = vmatprep.subr.mxu0 0.0
        %2258 = vmatpush1.msra.mxu0 0.0
        %2259 = vmatprep.subr.mxu0 0.0
        %2260 = vmatpush1.msra.mxu0 0.0
        %2261 = vmatprep.subr.mxu0 0.0
        %2262 = vmatpush1.msra.mxu0 0.0
        %2263 = vmatprep.subr.mxu0 0.0
        %2264 = vmatpush1.msra.mxu0 0.0
        %2265 = vmatprep.subr.mxu0 0.0
        %2266 = vmatpush1.msra.mxu0 0.0
        %2267 = vmatprep.subr.mxu0 0.0
        %2268 = vmatpush1.msra.mxu0 0.0
        %2269 = vmatprep.subr.mxu0 0.0
        %2270 = vmatpush1.msra.mxu0 0.0
        %2271 = vmatprep.subr.mxu0 0.0
        %2272 = vmatpush1.msra.mxu0 0.0
        %2273 = vmatprep.subr.mxu0 0.0
        %2274 = vmatpush1.msra.mxu0 0.0
        %2275 = vmatprep.subr.mxu0 0.0
        %2276 = vmatpush1.msra.mxu0 0.0
        %2277 = vmatprep.subr.mxu0 0.0
        %2278 = vmatpush1.msra.mxu0 0.0
        %2279 = vmatprep.subr.mxu0 0.0
        %2280 = vmatpush1.msra.mxu0 0.0
        %2281 = vmatprep.subr.mxu0 0.0
        %2282 = vmatpush1.msra.mxu0 0.0
        %2283 = vmatprep.subr.mxu0 0.0
        %2284 = vmatpush1.msra.mxu0 0.0
        %2285 = vmatprep.subr.mxu0 0.0
        %2286 = vmatpush1.msra.mxu0 0.0
        %2287 = vmatprep.subr.mxu0 0.0
        %2288 = vmatpush1.msra.mxu0 0.0
        %2289 = vmatprep.subr.mxu0 0.0
        %2290 = vmatpush1.msra.mxu0 0.0
        %2291 = vmatprep.subr.mxu0 0.0
        %2292 = vmatpush1.msra.mxu0 0.0
        %2293 = vmatprep.subr.mxu0 0.0
        %2294 = vmatpush1.msra.mxu0 0.0
        %2295 = vmatprep.subr.mxu0 0.0
        %2296 = vmatpush1.msra.mxu0 0.0
        %2297 = vmatprep.subr.mxu0 0.0
        %2298 = vmatpush1.msra.mxu0 0.0
        %2299 = vmatprep.subr.mxu0 0.0
        %2300 = vmatpush1.msra.mxu0 0.0
        %2301 = vmatprep.subr.mxu0 0.0
        %2302 = vmatpush1.msra.mxu0 0.0
        %2303 = vmatprep.subr.mxu0 0.0
        %2304 = vmatpush1.msra.mxu0 0.0
        %2305 = vmatprep.subr.mxu0 0.0
        %2306 = vmatpush1.msra.mxu0 0.0
        %2307 = vmatprep.subr.mxu0 0.0
        %2308 = vmatpush1.msra.mxu0 0.0
        %2309 = vmatprep.subr.mxu0 0.0
        %2310 = vmatpush1.msra.mxu0 0.0
        %2311 = vmatprep.subr.mxu0 0.0
        %2312 = vmatpush1.msra.mxu0 0.0
        %2313 = vmatprep.subr.mxu0 0.0
        %2314 = vmatpush1.msra.mxu0 0.0
        %2315 = vmatprep.subr.mxu0 0.0
        %2316 = vmatpush1.msra.mxu0 0.0
        %2317 = vmatprep.subr.mxu0 0.0
        %2318 = vmatpush1.msra.mxu0 0.0
        %2319 = vmatprep.mubr.f32.mxu0 0.0
        %2320 = vmatmul.mubr.f32.gmra.mrb[0].mxu0 %v2250
        %v2321 = vpop.f32.mrb[0].mxu0
        %v2322 = vadd.f32 %v2248, %v2321
        %v2323 = vpop.f32.mrb[0].mxu0
        %2324 = vmatprep.mubr.f32.mxu0 0.0
        %2325 = vmatmul.mubr.f32.gmra.mrb[0].mxu0 %v2253
        %v2326 = vpop.f32.mrb[0].mxu0
        %v2327 = vadd.f32 %v2248, %v2326
        %v2328 = vpop.f32.mrb[0].mxu0
        %2329 = vdwg.mxu0
        %vm2330 = vcmask 23552
        %2331 = vst.msk [vmem:[%s185] sm:$0xff] %vm2330, %v2322
        %2332 = vst.msk [vmem:[%s185 + $0x8] sm:$0xff] %vm2330, %v2327
        %p2333 = scmp.lt.s32.totalorder %s15, 1
        %s2334 = scalar_select %p2333, %s15, 1
        %s2335 = smul.addr %s2334, 2
        %s2336 = smul.addr %s2335, 8
        %s2337 = scalar_lea.vmem %s3, %s2336
        // Predicated region
        $region37: #{_lambda_.1} parent=31 // pred_check
          %p2338 = pneg %p101
        $region38: #{_lambda_.1} parent=31 // pred_check_branch
          %2340 = sbr.rel (%p2338) target = $region40
        $region39: #{_lambda_.1} parent=31 // pred_region
          _
        $region40: #{_lambda_.1} parent=31 // pred_fallthru
          _
      $region32: #{_lambda_.1} parent=5 // pred_fallthru
        _
      %p2341 = scmp.le.s32.totalorder 2, %s10
      // Predicated region
      $region41: #{_lambda_.1} parent=5 // pred_check
        %p2342 = pneg %p2341
      $region42: #{_lambda_.1} parent=5 // pred_check_branch
        %2344 = sbr.rel (%p2342) target = $region44
      $region43: #{_lambda_.1} parent=5 // pred_region
        %s2345 = ssub.s32 %s10, 2
        // Predicated region
        $region45: #{_lambda_.1} parent=43 // pred_check
          %p2346 = pneg %p107
        $region46: #{_lambda_.1} parent=43 // pred_check_branch
          %2348 = sbr.rel (%p2346) target = $region48
        $region47: #{_lambda_.1} parent=43 // pred_region
          %p2349 = scmp.lt.s32.totalorder %s16, 1
          %s2350 = scalar_select %p2349, %s16, 1
          %s2351 = smul.addr %s2350, 2
          %s2352 = smul.addr %s2351, 8
          %s2353 = scalar_lea.vmem %s3, %s2352
        $region48: #{_lambda_.1} parent=43 // pred_fallthru
          _
      $region44: #{_lambda_.1} parent=5 // pred_fallthru
        _
    $region6: #{_lambda_.1} parent=1 // loop_footer
      %s14 = sadd.s32 1, %s10
    $region7: #{_lambda_.1} parent=1 // loop_footer_branch
      %9 = sbr.rel target = $region3
    $region8: #{_lambda_.1} parent=1 // loop_exit
      _
    %2354 = vsyncpa [#allocation3], 1
    %s2355 = scalar_lea.sflag [#allocation3], 1
    %2356 = vsyncpa %s2355, 1

</llo_original>
